<compile_context>
chip_gen: v7x
topology: tpu7x:2x2x1
jax: 0.10.0
libtpu: 0.0.40
codegen_flags: <defaults>
</compile_context>

<pallas_src>
import math
from functools import partial

import numpy as np
import jax
import jax.numpy as jnp
from jax import lax
from jax.experimental import pallas as pl
from jax.experimental.pallas import tpu as pltpu

# ----------------------------- config -------------------------------------
PATCH = 4          # patch size
IN_CH = 4          # input channels
IMG = 16           # spatial size
EMBED_DIM = 32     # hidden size
NUM_HEADS = 4
HEAD_DIM = EMBED_DIM // NUM_HEADS
MLP_DIM = 4 * EMBED_DIM
DEPTH = 2
NUM_PATCHES = (IMG // PATCH) ** 2      # 16
SEQ = NUM_PATCHES + 1                  # 17 (cls + patches)
LN_EPS = 1e-6
NEG_INF = -1e30                        # additive mask, scores stay in f32


# --------------------------- fused ViT kernel ------------------------------
def _vit_kernel(patches_ref, base_ref, bias_ref, pw_ref,
                ln1g_ref, ln1b_ref, wqkv_ref, bqkv_ref, wo_ref, bo_ref,
                ln2g_ref, ln2b_ref, w1_ref, b1_ref, w2_ref, b2_ref,
                ng_ref, nb_ref, o_ref):
    """forward_features for one block of images (M = imgs_per_block * T_pad rows).

    patches_ref : (M, C*p*p) f32   rows for cls / pad positions are zero
    base_ref    : (M, D)     f32   cls token + pos embed (+ patch bias) per row
    bias_ref    : (M, M)     f32   per-image block-diagonal additive mask
    weights     : stacked over DEPTH (leading layer axis); matmul weights bf16
    """
    f32, bf16 = jnp.float32, jnp.bfloat16
    D, H, hd = EMBED_DIM, NUM_HEADS, HEAD_DIM

    def ln(x, g, b):
        mu = jnp.mean(x, axis=-1, keepdims=True)
        xc = x - mu
        var = jnp.mean(xc * xc, axis=-1, keepdims=True)
        return xc * lax.rsqrt(var + LN_EPS) * g + b

    # ---- patch embedding (bias + pos + cls are pre-folded into `base`) ----
    emb = jnp.dot(patches_ref[...].astype(bf16), pw_ref[...],
                  preferred_element_type=f32)
    x = base_ref[...] + emb                       # (M, D) f32 residual stream
    bias = bias_ref[...]                          # (M, M) f32
    num_layers = wqkv_ref.shape[0]

    for l in range(num_layers):                   # static unroll over DEPTH
        # -------- attention: fused QKV, lane-dense bias add + cast --------
        h1 = ln(x, ln1g_ref[l], ln1b_ref[l]).astype(bf16)            # (M, D)
        qkv = jnp.dot(h1, wqkv_ref[l],
                      preferred_element_type=f32) + bqkv_ref[l]      # (M, 3D)
        qkv = qkv.astype(bf16)                    # single dense cast in (M,96)

        ctx_heads = []
        for h in range(H):                        # per-head 2-D score/context
            qh = qkv[:, h * hd:(h + 1) * hd]                  # (M, hd) bf16
            kh = qkv[:, D + h * hd:D + (h + 1) * hd]
            vh = qkv[:, 2 * D + h * hd:2 * D + (h + 1) * hd]
            # q @ k^T (scale pre-folded into the Q columns of Wqkv / bqkv)
            s = lax.dot_general(qh, kh, (((1,), (1,)), ((), ())),
                                preferred_element_type=f32) + bias   # (M, M)
            s = s - jnp.max(s, axis=-1, keepdims=True)
            p = jnp.exp(s)
            p = p / jnp.sum(p, axis=-1, keepdims=True)        # exact softmax
            ctx_heads.append(jnp.dot(p.astype(bf16), vh,
                                     preferred_element_type=f32))    # (M, hd)

        # dense output projection on the concatenated heads
        ctx = jnp.concatenate(ctx_heads, axis=-1).astype(bf16)       # (M, D)
        x = x + jnp.dot(ctx, wo_ref[l], preferred_element_type=f32) + bo_ref[l]

        # ------------------------------ MLP ------------------------------
        h2 = ln(x, ln2g_ref[l], ln2b_ref[l]).astype(bf16)
        m = jnp.dot(h2, w1_ref[l], preferred_element_type=f32) + b1_ref[l]
        m = jax.nn.gelu(m, approximate=True)  # TODO(synk): nn.GELU uses exact erf
        m = jnp.dot(m.astype(bf16), w2_ref[l],
                    preferred_element_type=f32) + b2_ref[l]
        x = x + m

    o_ref[...] = ln(x, ng_ref[...], nb_ref[...])


# ---------------------- one-time host-side weight packing ------------------
def pack_params(params):
    """Stack per-layer weights, fuse QKV, fold the attention scale into the Q
    columns, and pre-cast matmul weights to bf16.  Called ONCE at init (kept
    out of the per-call jit)."""
    D = EMBED_DIM
    scale = 1.0 / math.sqrt(HEAD_DIM)
    blocks = params["blocks"]

    def stack(fn):
        return jnp.stack([fn(b) for b in blocks])

    def fused_wqkv(b):                        # (D, 3D), columns [q | k | v]
        w = b["wqkv"]
        return jnp.concatenate([w[:, :D] * scale, w[:, D:]], axis=1)

    def fused_bqkv(b):                        # (1, 3D)
        bb = b["bqkv"]
        return jnp.concatenate([bb[:, :D] * scale, bb[:, D:]], axis=1)

    return {
        "patch_w": params["patch_w"].astype(jnp.bfloat16),
        "patch_b": params["patch_b"],
        "cls_token": params["cls_token"][0],          # (1, D)
        "pos_embed": params["pos_embed"][0],          # (T, D)
        "norm_g": params["norm_g"],
        "norm_b": params["norm_b"],
        "ln1_g": stack(lambda b: b["ln1_g"]),
        "ln1_b": stack(lambda b: b["ln1_b"]),
        "wqkv": stack(fused_wqkv).astype(jnp.bfloat16),   # (L, D, 3D)
        "bqkv": stack(fused_bqkv),                        # (L, 1, 3D) f32
        "wo": stack(lambda b: b["wo"]).astype(jnp.bfloat16),
        "bo": stack(lambda b: b["bo"]),
        "ln2_g": stack(lambda b: b["ln2_g"]),
        "ln2_b": stack(lambda b: b["ln2_b"]),
        "w1": stack(lambda b: b["w1"]).astype(jnp.bfloat16),
        "b1": stack(lambda b: b["b1"]),
        "w2": stack(lambda b: b["w2"]).astype(jnp.bfloat16),
        "b2": stack(lambda b: b["b2"]),
    }


# -------------------------- ViT forward_features ---------------------------
def _block_config(batch):
    """Images per grid step: a few images amortize per-step overhead
    (v6e/v7x) while still exposing >=2 parallel steps for the v7x cores."""
    ipb = max(1, min(4, batch // 2))
    nb = -(-batch // ipb)
    return ipb, nb


def _vit_features(imgs, packed):
    """imgs: NCHW (B, C, H, W) float32 -> (B, 1+P, D)."""
    B, C, Hh, Ww = imgs.shape
    p = PATCH
    Ph, Pw = Hh // p, Ww // p
    P = Ph * Pw
    T = P + 1
    D = EMBED_DIM
    cpp = C * p * p

    ipb, nb = _block_config(B)
    B_pad = ipb * nb
    T_pad = -(-T // 8) * 8                     # per-image rows, sublane multiple
    M_blk = ipb * T_pad                        # rows per grid step (multiple of 8)

    # unfold to patches, flatten in (C, p, p) order to match Conv2d weights
    patches = (imgs.reshape(B, C, Ph, p, Pw, p)
                   .transpose(0, 2, 4, 1, 3, 5)
                   .reshape(B, P, cpp)).astype(jnp.float32)
    # per image: row 0 = cls (zeros), rows 1..P = patches, rows P+1.. = padding
    patches = jnp.pad(patches, ((0, B_pad - B), (1, T_pad - T), (0, 0)))
    patches = patches.reshape(B_pad * T_pad, cpp)

    # base rows: cls+pos at row 0, pos+patch_bias at patch rows, zeros at pads
    pos = packed["pos_embed"]                                      # (T, D)
    base_img = jnp.concatenate(
        [packed["cls_token"] + pos[:1], pos[1:] + packed["patch_b"]], axis=0)
    base_img = jnp.pad(base_img, ((0, T_pad - T), (0, 0)))         # (T_pad, D)
    base = jnp.tile(base_img, (B_pad, 1)).astype(jnp.float32)      # (B_pad*T_pad, D)

    # block-diagonal per-image attention bias for one grid block, built with
    # numpy at trace time (embedded constant); padded rows are masked as keys.
    r = np.arange(M_blk)
    same_img = (r[:, None] // T_pad) == (r[None, :] // T_pad)
    key_valid = (r[None, :] % T_pad) < T
    attn_bias = jnp.asarray(
        np.where(same_img & key_valid, 0.0, NEG_INF).astype(np.float32))

    # BlockSpecs: blocked operands are pipelined through VMEM (default);
    # constant-index weights stay resident across grid steps.
    def row_spec(cols):
        return pl.BlockSpec((M_blk, cols), lambda i: (i, 0))

    def const_spec(a):
        n = a.ndim
        return pl.BlockSpec(a.shape, lambda i, n=n: (0,) * n)

    weights = (packed["patch_w"],
               packed["ln1_g"], packed["ln1_b"], packed["wqkv"], packed["bqkv"],
               packed["wo"], packed["bo"], packed["ln2_g"], packed["ln2_b"],
               packed["w1"], packed["b1"], packed["w2"], packed["b2"],
               packed["norm_g"], packed["norm_b"])

    out2d = pl.pallas_call(
        _vit_kernel,
        out_shape=jax.ShapeDtypeStruct((B_pad * T_pad, D), jnp.float32),
        grid=(nb,),
        in_specs=[row_spec(cpp), row_spec(D), const_spec(attn_bias)]
                 + [const_spec(w) for w in weights],
        out_specs=row_spec(D),
        compiler_params=pltpu.CompilerParams(
            dimension_semantics=("parallel",),        # megacore / v7x 2-TC
            vmem_limit_bytes=32 * 1024 * 1024),
    )(patches, base, attn_bias, *weights)

    return out2d.reshape(B_pad, T_pad, D)[:B, :T, :]


vit_forward_features = jax.jit(_vit_features)


# --------------------------- forward_encoder --------------------------------
@partial(jax.jit, static_argnames=("b_out",))
def _encoder_forward(imgs, packed, keep_idx, cls_idx, *, b_out):
    x = _vit_features(imgs, packed)                            # (B, T, C)
    C = x.shape[-1]
    cls_tok = jnp.take(x[:, 0, :], cls_idx, axis=0).reshape(b_out, -1, C)
    patch_tok = jnp.take_along_axis(x[:, 1:, :], keep_idx[:, :, None], axis=1)
    patch_tok = patch_tok.reshape(b_out, -1, C)
    return jnp.concatenate([cls_tok, patch_tok], axis=1)


def forward_encoder(imgs, mask, packed):
    B = imgs.shape[0]
    # mask is concrete: compute keep indices host-side (mirrors the original
    # boolean-mask semantics); the heavy gather runs under jit via jnp.take.
    selector = ~np.asarray(mask, dtype=bool).reshape(B, -1)    # keep = not masked
    cls_selector = selector.max(axis=1)                        # (B,)
    b_out = B
    if int((~selector[0]).sum()) == 0:
        b_out = int(B * 0.75)                                  # torch heuristic
    keep_counts = selector.sum(axis=1)
    if not np.all(keep_counts == keep_counts[0]):
        # the original torch reshape also requires uniform keep counts
        raise ValueError("forward_encoder: each batch row must keep the same "
                         "number of patches")
    keep_idx = np.stack([np.flatnonzero(selector[b]) for b in range(B)])
    cls_idx = np.flatnonzero(cls_selector)
    return _encoder_forward(imgs, packed,
                            jnp.asarray(keep_idx, dtype=jnp.int32),
                            jnp.asarray(cls_idx, dtype=jnp.int32),
                            b_out=b_out)


def forward(imgs, packed, mask=None, f2d=False):
    if f2d:
        return vit_forward_features(imgs, packed)
    return forward_encoder(imgs, mask, packed)


# ------------------------------ params init --------------------------------
def init_params(key):
    ks = jax.random.split(key, 8 + DEPTH)
    std = 0.02
    D, MD = EMBED_DIM, MLP_DIM
    patch_dim = IN_CH * PATCH * PATCH
    params = {
        "patch_w": jax.random.normal(ks[0], (patch_dim, D), jnp.float32) * std,
        "patch_b": jnp.zeros((1, D), jnp.float32),
        "cls_token": jax.random.normal(ks[1], (1, 1, D), jnp.float32) * std,
        "pos_embed": jax.random.normal(ks[2], (1, SEQ, D), jnp.float32) * std,
        "norm_g": jnp.ones((1, D), jnp.float32),
        "norm_b": jnp.zeros((1, D), jnp.float32),
        "blocks": [],
    }
    for i in range(DEPTH):
        bk = jax.random.split(ks[8 + i], 4)
        params["blocks"].append({
            "ln1_g": jnp.ones((1, D), jnp.float32),
            "ln1_b": jnp.zeros((1, D), jnp.float32),
            "wqkv": jax.random.normal(bk[0], (D, 3 * D), jnp.float32) * std,
            "bqkv": jnp.zeros((1, 3 * D), jnp.float32),
            "wo": jax.random.normal(bk[1], (D, D), jnp.float32) * std,
            "bo": jnp.zeros((1, D), jnp.float32),
            "ln2_g": jnp.ones((1, D), jnp.float32),
            "ln2_b": jnp.zeros((1, D), jnp.float32),
            "w1": jax.random.normal(bk[2], (D, MD), jnp.float32) * std,
            "b1": jnp.zeros((1, MD), jnp.float32),
            "w2": jax.random.normal(bk[3], (MD, D), jnp.float32) * std,
            "b2": jnp.zeros((1, D), jnp.float32),
        })
    return params


# --------------------------------- main -------------------------------------
if __name__ == "__main__":
    key = jax.random.PRNGKey(0)
    k_img, k_par = jax.random.split(key)

    imgs = jax.random.normal(k_img, (2, IN_CH, IMG, IMG), jnp.float32)
    # mask: True = masked; same number masked per batch row so the reshape in
    # forward_encoder is well-defined (half of the 16 patches masked).
    mask = jnp.tile((jnp.arange(NUM_PATCHES) % 2 == 0)[None, :], (2, 1))

    params = init_params(k_par)
    packed = pack_params(params)        # one-time packing, outside every jit

    latent = forward(imgs, packed, mask=mask, f2d=False)   # (2, 1+8, 32)
    latent_2d = forward(imgs, packed, f2d=True)            # (2, 17, 32)

    jax.block_until_ready(latent)
    jax.block_until_ready(latent_2d)

    assert latent.shape == (2, 1 + NUM_PATCHES // 2, EMBED_DIM), latent.shape
    assert latent_2d.shape == (2, SEQ, EMBED_DIM), latent_2d.shape
    assert bool(jnp.all(jnp.isfinite(latent)))
    assert bool(jnp.all(jnp.isfinite(latent_2d)))
    print("KERNEL_OK")
</pallas_src>

<mosaic_0001>
module attributes {stable_mosaic.version = 11 : i64} {
  func.func @_vit_kernel(%arg0: i32, %arg1: memref<24x64xf32, #tpu.memory_space<vmem>>, %arg2: memref<24x32xf32, #tpu.memory_space<vmem>>, %arg3: memref<24x24xf32, #tpu.memory_space<vmem>>, %arg4: memref<64x32xbf16, #tpu.memory_space<vmem>>, %arg5: memref<2x1x32xf32, #tpu.memory_space<vmem>>, %arg6: memref<2x1x32xf32, #tpu.memory_space<vmem>>, %arg7: memref<2x32x96xbf16, #tpu.memory_space<vmem>>, %arg8: memref<2x1x96xf32, #tpu.memory_space<vmem>>, %arg9: memref<2x32x32xbf16, #tpu.memory_space<vmem>>, %arg10: memref<2x1x32xf32, #tpu.memory_space<vmem>>, %arg11: memref<2x1x32xf32, #tpu.memory_space<vmem>>, %arg12: memref<2x1x32xf32, #tpu.memory_space<vmem>>, %arg13: memref<2x32x128xbf16, #tpu.memory_space<vmem>>, %arg14: memref<2x1x128xf32, #tpu.memory_space<vmem>>, %arg15: memref<2x128x32xbf16, #tpu.memory_space<vmem>>, %arg16: memref<2x1x32xf32, #tpu.memory_space<vmem>>, %arg17: memref<1x32xf32, #tpu.memory_space<vmem>>, %arg18: memref<1x32xf32, #tpu.memory_space<vmem>>, %arg19: memref<24x32xf32, #tpu.memory_space<vmem>>) attributes {dimension_semantics = [#tpu.dimension_semantics<parallel>], iteration_bounds = array<i64: 2>, scalar_prefetch = 0 : i64, scratch_operands = 0 : i64, tpu.core_type = #tpu.core_type<tc>, window_params = [{transform_indices = @transform_0, window_bounds = array<i64: 24, 64>}, {transform_indices = @transform_1, window_bounds = array<i64: 24, 32>}, {pipeline_mode = #tpu.pipeline_mode<synchronous>, transform_indices = @transform_2, window_bounds = array<i64: 24, 24>}, {pipeline_mode = #tpu.pipeline_mode<synchronous>, transform_indices = @transform_3, window_bounds = array<i64: 64, 32>}, {pipeline_mode = #tpu.pipeline_mode<synchronous>, transform_indices = @transform_4, window_bounds = array<i64: 2, 1, 32>}, {pipeline_mode = #tpu.pipeline_mode<synchronous>, transform_indices = @transform_5, window_bounds = array<i64: 2, 1, 32>}, {pipeline_mode = #tpu.pipeline_mode<synchronous>, transform_indices = @transform_6, window_bounds = array<i64: 2, 32, 96>}, {pipeline_mode = #tpu.pipeline_mode<synchronous>, transform_indices = @transform_7, window_bounds = array<i64: 2, 1, 96>}, {pipeline_mode = #tpu.pipeline_mode<synchronous>, transform_indices = @transform_8, window_bounds = array<i64: 2, 32, 32>}, {pipeline_mode = #tpu.pipeline_mode<synchronous>, transform_indices = @transform_9, window_bounds = array<i64: 2, 1, 32>}, {pipeline_mode = #tpu.pipeline_mode<synchronous>, transform_indices = @transform_10, window_bounds = array<i64: 2, 1, 32>}, {pipeline_mode = #tpu.pipeline_mode<synchronous>, transform_indices = @transform_11, window_bounds = array<i64: 2, 1, 32>}, {pipeline_mode = #tpu.pipeline_mode<synchronous>, transform_indices = @transform_12, window_bounds = array<i64: 2, 32, 128>}, {pipeline_mode = #tpu.pipeline_mode<synchronous>, transform_indices = @transform_13, window_bounds = array<i64: 2, 1, 128>}, {pipeline_mode = #tpu.pipeline_mode<synchronous>, transform_indices = @transform_14, window_bounds = array<i64: 2, 128, 32>}, {pipeline_mode = #tpu.pipeline_mode<synchronous>, transform_indices = @transform_15, window_bounds = array<i64: 2, 1, 32>}, {pipeline_mode = #tpu.pipeline_mode<synchronous>, transform_indices = @transform_16, window_bounds = array<i64: 1, 32>}, {pipeline_mode = #tpu.pipeline_mode<synchronous>, transform_indices = @transform_17, window_bounds = array<i64: 1, 32>}, {transform_indices = @transform_18, window_bounds = array<i64: 24, 32>}]} {
    %c0 = arith.constant 0 : index
    %c0_0 = arith.constant 0 : index
    %0 = vector.load %arg1[%c0, %c0_0] : memref<24x64xf32, #tpu.memory_space<vmem>>, vector<24x64xf32>
    %1 = arith.truncf %0 : vector<24x64xf32> to vector<24x64xbf16>
    %c0_1 = arith.constant 0 : index
    %c0_2 = arith.constant 0 : index
    %2 = vector.load %arg4[%c0_1, %c0_2] : memref<64x32xbf16, #tpu.memory_space<vmem>>, vector<64x32xbf16>
    %cst = arith.constant dense<0.000000e+00> : vector<24x32xf32>
    %3 = tpu.matmul %1, %2, %cst {dimension_numbers = #tpu.dot_dimension_numbers<[1], [0], [0], [1], [0, 0, 1, 1], [], []>} : vector<24x64xbf16>, vector<64x32xbf16>, vector<24x32xf32> -> vector<24x32xf32>
    %c0_3 = arith.constant 0 : index
    %c0_4 = arith.constant 0 : index
    %4 = vector.load %arg2[%c0_3, %c0_4] : memref<24x32xf32, #tpu.memory_space<vmem>>, vector<24x32xf32>
    %5 = arith.addf %4, %3 : vector<24x32xf32>
    %c0_5 = arith.constant 0 : index
    %c0_6 = arith.constant 0 : index
    %6 = vector.load %arg3[%c0_5, %c0_6] : memref<24x24xf32, #tpu.memory_space<vmem>>, vector<24x24xf32>
    %c0_7 = arith.constant 0 : index
    %c0_8 = arith.constant 0 : index
    %c0_9 = arith.constant 0 : index
    %7 = vector.load %arg5[%c0_7, %c0_8, %c0_9] : memref<2x1x32xf32, #tpu.memory_space<vmem>>, vector<1x1x32xf32>
    %8 = vector.shape_cast %7 : vector<1x1x32xf32> to vector<1x32xf32>
    %c0_10 = arith.constant 0 : index
    %c0_11 = arith.constant 0 : index
    %c0_12 = arith.constant 0 : index
    %9 = vector.load %arg6[%c0_10, %c0_11, %c0_12] : memref<2x1x32xf32, #tpu.memory_space<vmem>>, vector<1x1x32xf32>
    %10 = vector.shape_cast %9 : vector<1x1x32xf32> to vector<1x32xf32>
    %cst_13 = arith.constant dense<0.000000e+00> : vector<24xf32>
    %11 = vector.multi_reduction <add>, %5, %cst_13 [1] : vector<24x32xf32> to vector<24xf32>
    %12 = vector.shape_cast %11 : vector<24xf32> to vector<24x1xf32>
    %cst_14 = arith.constant 3.200000e+01 : f32
    %13 = vector.broadcast %cst_14 : f32 to vector<24x1xf32>
    %14 = arith.divf %12, %13 : vector<24x1xf32>
    %15 = vector.broadcast %14 : vector<24x1xf32> to vector<24x32xf32>
    %16 = arith.subf %5, %15 : vector<24x32xf32>
    %17 = arith.mulf %16, %16 : vector<24x32xf32>
    %cst_15 = arith.constant dense<0.000000e+00> : vector<24xf32>
    %18 = vector.multi_reduction <add>, %17, %cst_15 [1] : vector<24x32xf32> to vector<24xf32>
    %19 = vector.shape_cast %18 : vector<24xf32> to vector<24x1xf32>
    %cst_16 = arith.constant 3.200000e+01 : f32
    %20 = vector.broadcast %cst_16 : f32 to vector<24x1xf32>
    %21 = arith.divf %19, %20 : vector<24x1xf32>
    %cst_17 = arith.constant 9.99999997E-7 : f32
    %22 = vector.broadcast %cst_17 : f32 to vector<24x1xf32>
    %23 = arith.addf %21, %22 : vector<24x1xf32>
    %24 = math.rsqrt %23 : vector<24x1xf32>
    %25 = vector.broadcast %24 : vector<24x1xf32> to vector<24x32xf32>
    %26 = arith.mulf %16, %25 : vector<24x32xf32>
    %27 = vector.broadcast %8 : vector<1x32xf32> to vector<24x32xf32>
    %28 = arith.mulf %26, %27 : vector<24x32xf32>
    %29 = vector.broadcast %10 : vector<1x32xf32> to vector<24x32xf32>
    %30 = arith.addf %28, %29 : vector<24x32xf32>
    %31 = arith.truncf %30 : vector<24x32xf32> to vector<24x32xbf16>
    %c0_18 = arith.constant 0 : index
    %c0_19 = arith.constant 0 : index
    %c0_20 = arith.constant 0 : index
    %32 = vector.load %arg7[%c0_18, %c0_19, %c0_20] : memref<2x32x96xbf16, #tpu.memory_space<vmem>>, vector<1x32x96xbf16>
    %33 = vector.shape_cast %32 : vector<1x32x96xbf16> to vector<32x96xbf16>
    %cst_21 = arith.constant dense<0.000000e+00> : vector<24x96xf32>
    %34 = tpu.matmul %31, %33, %cst_21 {dimension_numbers = #tpu.dot_dimension_numbers<[1], [0], [0], [1], [0, 0, 1, 1], [], []>} : vector<24x32xbf16>, vector<32x96xbf16>, vector<24x96xf32> -> vector<24x96xf32>
    %c0_22 = arith.constant 0 : index
    %c0_23 = arith.constant 0 : index
    %c0_24 = arith.constant 0 : index
    %35 = vector.load %arg8[%c0_22, %c0_23, %c0_24] : memref<2x1x96xf32, #tpu.memory_space<vmem>>, vector<1x1x96xf32>
    %36 = vector.shape_cast %35 : vector<1x1x96xf32> to vector<1x96xf32>
    %37 = vector.broadcast %36 : vector<1x96xf32> to vector<24x96xf32>
    %38 = arith.addf %34, %37 : vector<24x96xf32>
    %39 = arith.truncf %38 : vector<24x96xf32> to vector<24x96xbf16>
    %40 = vector.extract_strided_slice %39 {offsets = [0, 0], sizes = [24, 8], strides = [1, 1]} : vector<24x96xbf16> to vector<24x8xbf16>
    %41 = vector.extract_strided_slice %39 {offsets = [0, 32], sizes = [24, 8], strides = [1, 1]} : vector<24x96xbf16> to vector<24x8xbf16>
    %42 = vector.extract_strided_slice %39 {offsets = [0, 64], sizes = [24, 8], strides = [1, 1]} : vector<24x96xbf16> to vector<24x8xbf16>
    %cst_25 = arith.constant dense<0.000000e+00> : vector<24x24xf32>
    %43 = tpu.matmul %40, %41, %cst_25 {dimension_numbers = #tpu.dot_dimension_numbers<[1], [1], [0], [0], [0, 0, 1, 0], [], []>} : vector<24x8xbf16>, vector<24x8xbf16>, vector<24x24xf32> -> vector<24x24xf32>
    %44 = arith.addf %43, %6 : vector<24x24xf32>
    %cst_26 = arith.constant dense<0xFF800000> : vector<24xf32>
    %45 = vector.multi_reduction <maximumf>, %44, %cst_26 [1] : vector<24x24xf32> to vector<24xf32>
    %46 = vector.shape_cast %45 : vector<24xf32> to vector<24x1xf32>
    %47 = vector.broadcast %46 : vector<24x1xf32> to vector<24x24xf32>
    %48 = arith.subf %44, %47 : vector<24x24xf32>
    %49 = math.exp %48 : vector<24x24xf32>
    %cst_27 = arith.constant dense<0.000000e+00> : vector<24xf32>
    %50 = vector.multi_reduction <add>, %49, %cst_27 [1] : vector<24x24xf32> to vector<24xf32>
    %51 = vector.shape_cast %50 : vector<24xf32> to vector<24x1xf32>
    %52 = vector.broadcast %51 : vector<24x1xf32> to vector<24x24xf32>
    %53 = arith.divf %49, %52 : vector<24x24xf32>
    %54 = arith.truncf %53 : vector<24x24xf32> to vector<24x24xbf16>
    %cst_28 = arith.constant dense<0.000000e+00> : vector<24x8xf32>
    %55 = tpu.matmul %54, %42, %cst_28 {dimension_numbers = #tpu.dot_dimension_numbers<[1], [0], [0], [1], [0, 0, 1, 1], [], []>} : vector<24x24xbf16>, vector<24x8xbf16>, vector<24x8xf32> -> vector<24x8xf32>
    %56 = vector.extract_strided_slice %39 {offsets = [0, 8], sizes = [24, 8], strides = [1, 1]} : vector<24x96xbf16> to vector<24x8xbf16>
    %57 = vector.extract_strided_slice %39 {offsets = [0, 40], sizes = [24, 8], strides = [1, 1]} : vector<24x96xbf16> to vector<24x8xbf16>
    %58 = vector.extract_strided_slice %39 {offsets = [0, 72], sizes = [24, 8], strides = [1, 1]} : vector<24x96xbf16> to vector<24x8xbf16>
    %cst_29 = arith.constant dense<0.000000e+00> : vector<24x24xf32>
    %59 = tpu.matmul %56, %57, %cst_29 {dimension_numbers = #tpu.dot_dimension_numbers<[1], [1], [0], [0], [0, 0, 1, 0], [], []>} : vector<24x8xbf16>, vector<24x8xbf16>, vector<24x24xf32> -> vector<24x24xf32>
    %60 = arith.addf %59, %6 : vector<24x24xf32>
    %cst_30 = arith.constant dense<0xFF800000> : vector<24xf32>
    %61 = vector.multi_reduction <maximumf>, %60, %cst_30 [1] : vector<24x24xf32> to vector<24xf32>
    %62 = vector.shape_cast %61 : vector<24xf32> to vector<24x1xf32>
    %63 = vector.broadcast %62 : vector<24x1xf32> to vector<24x24xf32>
    %64 = arith.subf %60, %63 : vector<24x24xf32>
    %65 = math.exp %64 : vector<24x24xf32>
    %cst_31 = arith.constant dense<0.000000e+00> : vector<24xf32>
    %66 = vector.multi_reduction <add>, %65, %cst_31 [1] : vector<24x24xf32> to vector<24xf32>
    %67 = vector.shape_cast %66 : vector<24xf32> to vector<24x1xf32>
    %68 = vector.broadcast %67 : vector<24x1xf32> to vector<24x24xf32>
    %69 = arith.divf %65, %68 : vector<24x24xf32>
    %70 = arith.truncf %69 : vector<24x24xf32> to vector<24x24xbf16>
    %cst_32 = arith.constant dense<0.000000e+00> : vector<24x8xf32>
    %71 = tpu.matmul %70, %58, %cst_32 {dimension_numbers = #tpu.dot_dimension_numbers<[1], [0], [0], [1], [0, 0, 1, 1], [], []>} : vector<24x24xbf16>, vector<24x8xbf16>, vector<24x8xf32> -> vector<24x8xf32>
    %72 = vector.extract_strided_slice %39 {offsets = [0, 16], sizes = [24, 8], strides = [1, 1]} : vector<24x96xbf16> to vector<24x8xbf16>
    %73 = vector.extract_strided_slice %39 {offsets = [0, 48], sizes = [24, 8], strides = [1, 1]} : vector<24x96xbf16> to vector<24x8xbf16>
    %74 = vector.extract_strided_slice %39 {offsets = [0, 80], sizes = [24, 8], strides = [1, 1]} : vector<24x96xbf16> to vector<24x8xbf16>
    %cst_33 = arith.constant dense<0.000000e+00> : vector<24x24xf32>
    %75 = tpu.matmul %72, %73, %cst_33 {dimension_numbers = #tpu.dot_dimension_numbers<[1], [1], [0], [0], [0, 0, 1, 0], [], []>} : vector<24x8xbf16>, vector<24x8xbf16>, vector<24x24xf32> -> vector<24x24xf32>
    %76 = arith.addf %75, %6 : vector<24x24xf32>
    %cst_34 = arith.constant dense<0xFF800000> : vector<24xf32>
    %77 = vector.multi_reduction <maximumf>, %76, %cst_34 [1] : vector<24x24xf32> to vector<24xf32>
    %78 = vector.shape_cast %77 : vector<24xf32> to vector<24x1xf32>
    %79 = vector.broadcast %78 : vector<24x1xf32> to vector<24x24xf32>
    %80 = arith.subf %76, %79 : vector<24x24xf32>
    %81 = math.exp %80 : vector<24x24xf32>
    %cst_35 = arith.constant dense<0.000000e+00> : vector<24xf32>
    %82 = vector.multi_reduction <add>, %81, %cst_35 [1] : vector<24x24xf32> to vector<24xf32>
    %83 = vector.shape_cast %82 : vector<24xf32> to vector<24x1xf32>
    %84 = vector.broadcast %83 : vector<24x1xf32> to vector<24x24xf32>
    %85 = arith.divf %81, %84 : vector<24x24xf32>
    %86 = arith.truncf %85 : vector<24x24xf32> to vector<24x24xbf16>
    %cst_36 = arith.constant dense<0.000000e+00> : vector<24x8xf32>
    %87 = tpu.matmul %86, %74, %cst_36 {dimension_numbers = #tpu.dot_dimension_numbers<[1], [0], [0], [1], [0, 0, 1, 1], [], []>} : vector<24x24xbf16>, vector<24x8xbf16>, vector<24x8xf32> -> vector<24x8xf32>
    %88 = vector.extract_strided_slice %39 {offsets = [0, 24], sizes = [24, 8], strides = [1, 1]} : vector<24x96xbf16> to vector<24x8xbf16>
    %89 = vector.extract_strided_slice %39 {offsets = [0, 56], sizes = [24, 8], strides = [1, 1]} : vector<24x96xbf16> to vector<24x8xbf16>
    %90 = vector.extract_strided_slice %39 {offsets = [0, 88], sizes = [24, 8], strides = [1, 1]} : vector<24x96xbf16> to vector<24x8xbf16>
    %cst_37 = arith.constant dense<0.000000e+00> : vector<24x24xf32>
    %91 = tpu.matmul %88, %89, %cst_37 {dimension_numbers = #tpu.dot_dimension_numbers<[1], [1], [0], [0], [0, 0, 1, 0], [], []>} : vector<24x8xbf16>, vector<24x8xbf16>, vector<24x24xf32> -> vector<24x24xf32>
    %92 = arith.addf %91, %6 : vector<24x24xf32>
    %cst_38 = arith.constant dense<0xFF800000> : vector<24xf32>
    %93 = vector.multi_reduction <maximumf>, %92, %cst_38 [1] : vector<24x24xf32> to vector<24xf32>
    %94 = vector.shape_cast %93 : vector<24xf32> to vector<24x1xf32>
    %95 = vector.broadcast %94 : vector<24x1xf32> to vector<24x24xf32>
    %96 = arith.subf %92, %95 : vector<24x24xf32>
    %97 = math.exp %96 : vector<24x24xf32>
    %cst_39 = arith.constant dense<0.000000e+00> : vector<24xf32>
    %98 = vector.multi_reduction <add>, %97, %cst_39 [1] : vector<24x24xf32> to vector<24xf32>
    %99 = vector.shape_cast %98 : vector<24xf32> to vector<24x1xf32>
    %100 = vector.broadcast %99 : vector<24x1xf32> to vector<24x24xf32>
    %101 = arith.divf %97, %100 : vector<24x24xf32>
    %102 = arith.truncf %101 : vector<24x24xf32> to vector<24x24xbf16>
    %cst_40 = arith.constant dense<0.000000e+00> : vector<24x8xf32>
    %103 = tpu.matmul %102, %90, %cst_40 {dimension_numbers = #tpu.dot_dimension_numbers<[1], [0], [0], [1], [0, 0, 1, 1], [], []>} : vector<24x24xbf16>, vector<24x8xbf16>, vector<24x8xf32> -> vector<24x8xf32>
    %104 = tpu.concatenate %55, %71, %87, %103 in 1 : vector<24x8xf32>, vector<24x8xf32>, vector<24x8xf32>, vector<24x8xf32> -> vector<24x32xf32>
    %105 = arith.truncf %104 : vector<24x32xf32> to vector<24x32xbf16>
    %c0_41 = arith.constant 0 : index
    %c0_42 = arith.constant 0 : index
    %c0_43 = arith.constant 0 : index
    %106 = vector.load %arg9[%c0_41, %c0_42, %c0_43] : memref<2x32x32xbf16, #tpu.memory_space<vmem>>, vector<1x32x32xbf16>
    %107 = vector.shape_cast %106 : vector<1x32x32xbf16> to vector<32x32xbf16>
    %cst_44 = arith.constant dense<0.000000e+00> : vector<24x32xf32>
    %108 = tpu.matmul %105, %107, %cst_44 {dimension_numbers = #tpu.dot_dimension_numbers<[1], [0], [0], [1], [0, 0, 1, 1], [], []>} : vector<24x32xbf16>, vector<32x32xbf16>, vector<24x32xf32> -> vector<24x32xf32>
    %109 = arith.addf %5, %108 : vector<24x32xf32>
    %c0_45 = arith.constant 0 : index
    %c0_46 = arith.constant 0 : index
    %c0_47 = arith.constant 0 : index
    %110 = vector.load %arg10[%c0_45, %c0_46, %c0_47] : memref<2x1x32xf32, #tpu.memory_space<vmem>>, vector<1x1x32xf32>
    %111 = vector.shape_cast %110 : vector<1x1x32xf32> to vector<1x32xf32>
    %112 = vector.broadcast %111 : vector<1x32xf32> to vector<24x32xf32>
    %113 = arith.addf %109, %112 : vector<24x32xf32>
    %c0_48 = arith.constant 0 : index
    %c0_49 = arith.constant 0 : index
    %c0_50 = arith.constant 0 : index
    %114 = vector.load %arg11[%c0_48, %c0_49, %c0_50] : memref<2x1x32xf32, #tpu.memory_space<vmem>>, vector<1x1x32xf32>
    %115 = vector.shape_cast %114 : vector<1x1x32xf32> to vector<1x32xf32>
    %c0_51 = arith.constant 0 : index
    %c0_52 = arith.constant 0 : index
    %c0_53 = arith.constant 0 : index
    %116 = vector.load %arg12[%c0_51, %c0_52, %c0_53] : memref<2x1x32xf32, #tpu.memory_space<vmem>>, vector<1x1x32xf32>
    %117 = vector.shape_cast %116 : vector<1x1x32xf32> to vector<1x32xf32>
    %cst_54 = arith.constant dense<0.000000e+00> : vector<24xf32>
    %118 = vector.multi_reduction <add>, %113, %cst_54 [1] : vector<24x32xf32> to vector<24xf32>
    %119 = vector.shape_cast %118 : vector<24xf32> to vector<24x1xf32>
    %cst_55 = arith.constant 3.200000e+01 : f32
    %120 = vector.broadcast %cst_55 : f32 to vector<24x1xf32>
    %121 = arith.divf %119, %120 : vector<24x1xf32>
    %122 = vector.broadcast %121 : vector<24x1xf32> to vector<24x32xf32>
    %123 = arith.subf %113, %122 : vector<24x32xf32>
    %124 = arith.mulf %123, %123 : vector<24x32xf32>
    %cst_56 = arith.constant dense<0.000000e+00> : vector<24xf32>
    %125 = vector.multi_reduction <add>, %124, %cst_56 [1] : vector<24x32xf32> to vector<24xf32>
    %126 = vector.shape_cast %125 : vector<24xf32> to vector<24x1xf32>
    %cst_57 = arith.constant 3.200000e+01 : f32
    %127 = vector.broadcast %cst_57 : f32 to vector<24x1xf32>
    %128 = arith.divf %126, %127 : vector<24x1xf32>
    %cst_58 = arith.constant 9.99999997E-7 : f32
    %129 = vector.broadcast %cst_58 : f32 to vector<24x1xf32>
    %130 = arith.addf %128, %129 : vector<24x1xf32>
    %131 = math.rsqrt %130 : vector<24x1xf32>
    %132 = vector.broadcast %131 : vector<24x1xf32> to vector<24x32xf32>
    %133 = arith.mulf %123, %132 : vector<24x32xf32>
    %134 = vector.broadcast %115 : vector<1x32xf32> to vector<24x32xf32>
    %135 = arith.mulf %133, %134 : vector<24x32xf32>
    %136 = vector.broadcast %117 : vector<1x32xf32> to vector<24x32xf32>
    %137 = arith.addf %135, %136 : vector<24x32xf32>
    %138 = arith.truncf %137 : vector<24x32xf32> to vector<24x32xbf16>
    %c0_59 = arith.constant 0 : index
    %c0_60 = arith.constant 0 : index
    %c0_61 = arith.constant 0 : index
    %139 = vector.load %arg13[%c0_59, %c0_60, %c0_61] : memref<2x32x128xbf16, #tpu.memory_space<vmem>>, vector<1x32x128xbf16>
    %140 = vector.shape_cast %139 : vector<1x32x128xbf16> to vector<32x128xbf16>
    %cst_62 = arith.constant dense<0.000000e+00> : vector<24x128xf32>
    %141 = tpu.matmul %138, %140, %cst_62 {dimension_numbers = #tpu.dot_dimension_numbers<[1], [0], [0], [1], [0, 0, 1, 1], [], []>} : vector<24x32xbf16>, vector<32x128xbf16>, vector<24x128xf32> -> vector<24x128xf32>
    %c0_63 = arith.constant 0 : index
    %c0_64 = arith.constant 0 : index
    %c0_65 = arith.constant 0 : index
    %142 = vector.load %arg14[%c0_63, %c0_64, %c0_65] : memref<2x1x128xf32, #tpu.memory_space<vmem>>, vector<1x1x128xf32>
    %143 = vector.shape_cast %142 : vector<1x1x128xf32> to vector<1x128xf32>
    %144 = vector.broadcast %143 : vector<1x128xf32> to vector<24x128xf32>
    %145 = arith.addf %141, %144 : vector<24x128xf32>
    %146 = arith.mulf %145, %145 : vector<24x128xf32>
    %147 = arith.mulf %145, %146 : vector<24x128xf32>
    %cst_66 = arith.constant 4.471500e-02 : f32
    %148 = vector.broadcast %cst_66 : f32 to vector<24x128xf32>
    %149 = arith.mulf %148, %147 : vector<24x128xf32>
    %150 = arith.addf %145, %149 : vector<24x128xf32>
    %cst_67 = arith.constant 0.797884583 : f32
    %151 = vector.broadcast %cst_67 : f32 to vector<24x128xf32>
    %152 = arith.mulf %151, %150 : vector<24x128xf32>
    %153 = math.tanh %152 : vector<24x128xf32>
    %cst_68 = arith.constant 1.000000e+00 : f32
    %154 = vector.broadcast %cst_68 : f32 to vector<24x128xf32>
    %155 = arith.addf %154, %153 : vector<24x128xf32>
    %cst_69 = arith.constant 5.000000e-01 : f32
    %156 = vector.broadcast %cst_69 : f32 to vector<24x128xf32>
    %157 = arith.mulf %156, %155 : vector<24x128xf32>
    %158 = arith.mulf %145, %157 : vector<24x128xf32>
    %159 = arith.truncf %158 : vector<24x128xf32> to vector<24x128xbf16>
    %c0_70 = arith.constant 0 : index
    %c0_71 = arith.constant 0 : index
    %c0_72 = arith.constant 0 : index
    %160 = vector.load %arg15[%c0_70, %c0_71, %c0_72] : memref<2x128x32xbf16, #tpu.memory_space<vmem>>, vector<1x128x32xbf16>
    %161 = vector.shape_cast %160 : vector<1x128x32xbf16> to vector<128x32xbf16>
    %cst_73 = arith.constant dense<0.000000e+00> : vector<24x32xf32>
    %162 = tpu.matmul %159, %161, %cst_73 {dimension_numbers = #tpu.dot_dimension_numbers<[1], [0], [0], [1], [0, 0, 1, 1], [], []>} : vector<24x128xbf16>, vector<128x32xbf16>, vector<24x32xf32> -> vector<24x32xf32>
    %c0_74 = arith.constant 0 : index
    %c0_75 = arith.constant 0 : index
    %c0_76 = arith.constant 0 : index
    %163 = vector.load %arg16[%c0_74, %c0_75, %c0_76] : memref<2x1x32xf32, #tpu.memory_space<vmem>>, vector<1x1x32xf32>
    %164 = vector.shape_cast %163 : vector<1x1x32xf32> to vector<1x32xf32>
    %165 = vector.broadcast %164 : vector<1x32xf32> to vector<24x32xf32>
    %166 = arith.addf %162, %165 : vector<24x32xf32>
    %167 = arith.addf %113, %166 : vector<24x32xf32>
    %c1 = arith.constant 1 : index
    %c0_77 = arith.constant 0 : index
    %c0_78 = arith.constant 0 : index
    %168 = vector.load %arg5[%c1, %c0_77, %c0_78] : memref<2x1x32xf32, #tpu.memory_space<vmem>>, vector<1x1x32xf32>
    %169 = vector.shape_cast %168 : vector<1x1x32xf32> to vector<1x32xf32>
    %c1_79 = arith.constant 1 : index
    %c0_80 = arith.constant 0 : index
    %c0_81 = arith.constant 0 : index
    %170 = vector.load %arg6[%c1_79, %c0_80, %c0_81] : memref<2x1x32xf32, #tpu.memory_space<vmem>>, vector<1x1x32xf32>
    %171 = vector.shape_cast %170 : vector<1x1x32xf32> to vector<1x32xf32>
    %cst_82 = arith.constant dense<0.000000e+00> : vector<24xf32>
    %172 = vector.multi_reduction <add>, %167, %cst_82 [1] : vector<24x32xf32> to vector<24xf32>
    %173 = vector.shape_cast %172 : vector<24xf32> to vector<24x1xf32>
    %cst_83 = arith.constant 3.200000e+01 : f32
    %174 = vector.broadcast %cst_83 : f32 to vector<24x1xf32>
    %175 = arith.divf %173, %174 : vector<24x1xf32>
    %176 = vector.broadcast %175 : vector<24x1xf32> to vector<24x32xf32>
    %177 = arith.subf %167, %176 : vector<24x32xf32>
    %178 = arith.mulf %177, %177 : vector<24x32xf32>
    %cst_84 = arith.constant dense<0.000000e+00> : vector<24xf32>
    %179 = vector.multi_reduction <add>, %178, %cst_84 [1] : vector<24x32xf32> to vector<24xf32>
    %180 = vector.shape_cast %179 : vector<24xf32> to vector<24x1xf32>
    %cst_85 = arith.constant 3.200000e+01 : f32
    %181 = vector.broadcast %cst_85 : f32 to vector<24x1xf32>
    %182 = arith.divf %180, %181 : vector<24x1xf32>
    %cst_86 = arith.constant 9.99999997E-7 : f32
    %183 = vector.broadcast %cst_86 : f32 to vector<24x1xf32>
    %184 = arith.addf %182, %183 : vector<24x1xf32>
    %185 = math.rsqrt %184 : vector<24x1xf32>
    %186 = vector.broadcast %185 : vector<24x1xf32> to vector<24x32xf32>
    %187 = arith.mulf %177, %186 : vector<24x32xf32>
    %188 = vector.broadcast %169 : vector<1x32xf32> to vector<24x32xf32>
    %189 = arith.mulf %187, %188 : vector<24x32xf32>
    %190 = vector.broadcast %171 : vector<1x32xf32> to vector<24x32xf32>
    %191 = arith.addf %189, %190 : vector<24x32xf32>
    %192 = arith.truncf %191 : vector<24x32xf32> to vector<24x32xbf16>
    %c1_87 = arith.constant 1 : index
    %c0_88 = arith.constant 0 : index
    %c0_89 = arith.constant 0 : index
    %193 = vector.load %arg7[%c1_87, %c0_88, %c0_89] : memref<2x32x96xbf16, #tpu.memory_space<vmem>>, vector<1x32x96xbf16>
    %194 = vector.shape_cast %193 : vector<1x32x96xbf16> to vector<32x96xbf16>
    %cst_90 = arith.constant dense<0.000000e+00> : vector<24x96xf32>
    %195 = tpu.matmul %192, %194, %cst_90 {dimension_numbers = #tpu.dot_dimension_numbers<[1], [0], [0], [1], [0, 0, 1, 1], [], []>} : vector<24x32xbf16>, vector<32x96xbf16>, vector<24x96xf32> -> vector<24x96xf32>
    %c1_91 = arith.constant 1 : index
    %c0_92 = arith.constant 0 : index
    %c0_93 = arith.constant 0 : index
    %196 = vector.load %arg8[%c1_91, %c0_92, %c0_93] : memref<2x1x96xf32, #tpu.memory_space<vmem>>, vector<1x1x96xf32>
    %197 = vector.shape_cast %196 : vector<1x1x96xf32> to vector<1x96xf32>
    %198 = vector.broadcast %197 : vector<1x96xf32> to vector<24x96xf32>
    %199 = arith.addf %195, %198 : vector<24x96xf32>
    %200 = arith.truncf %199 : vector<24x96xf32> to vector<24x96xbf16>
    %201 = vector.extract_strided_slice %200 {offsets = [0, 0], sizes = [24, 8], strides = [1, 1]} : vector<24x96xbf16> to vector<24x8xbf16>
    %202 = vector.extract_strided_slice %200 {offsets = [0, 32], sizes = [24, 8], strides = [1, 1]} : vector<24x96xbf16> to vector<24x8xbf16>
    %203 = vector.extract_strided_slice %200 {offsets = [0, 64], sizes = [24, 8], strides = [1, 1]} : vector<24x96xbf16> to vector<24x8xbf16>
    %cst_94 = arith.constant dense<0.000000e+00> : vector<24x24xf32>
    %204 = tpu.matmul %201, %202, %cst_94 {dimension_numbers = #tpu.dot_dimension_numbers<[1], [1], [0], [0], [0, 0, 1, 0], [], []>} : vector<24x8xbf16>, vector<24x8xbf16>, vector<24x24xf32> -> vector<24x24xf32>
    %205 = arith.addf %204, %6 : vector<24x24xf32>
    %cst_95 = arith.constant dense<0xFF800000> : vector<24xf32>
    %206 = vector.multi_reduction <maximumf>, %205, %cst_95 [1] : vector<24x24xf32> to vector<24xf32>
    %207 = vector.shape_cast %206 : vector<24xf32> to vector<24x1xf32>
    %208 = vector.broadcast %207 : vector<24x1xf32> to vector<24x24xf32>
    %209 = arith.subf %205, %208 : vector<24x24xf32>
    %210 = math.exp %209 : vector<24x24xf32>
    %cst_96 = arith.constant dense<0.000000e+00> : vector<24xf32>
    %211 = vector.multi_reduction <add>, %210, %cst_96 [1] : vector<24x24xf32> to vector<24xf32>
    %212 = vector.shape_cast %211 : vector<24xf32> to vector<24x1xf32>
    %213 = vector.broadcast %212 : vector<24x1xf32> to vector<24x24xf32>
    %214 = arith.divf %210, %213 : vector<24x24xf32>
    %215 = arith.truncf %214 : vector<24x24xf32> to vector<24x24xbf16>
    %cst_97 = arith.constant dense<0.000000e+00> : vector<24x8xf32>
    %216 = tpu.matmul %215, %203, %cst_97 {dimension_numbers = #tpu.dot_dimension_numbers<[1], [0], [0], [1], [0, 0, 1, 1], [], []>} : vector<24x24xbf16>, vector<24x8xbf16>, vector<24x8xf32> -> vector<24x8xf32>
    %217 = vector.extract_strided_slice %200 {offsets = [0, 8], sizes = [24, 8], strides = [1, 1]} : vector<24x96xbf16> to vector<24x8xbf16>
    %218 = vector.extract_strided_slice %200 {offsets = [0, 40], sizes = [24, 8], strides = [1, 1]} : vector<24x96xbf16> to vector<24x8xbf16>
    %219 = vector.extract_strided_slice %200 {offsets = [0, 72], sizes = [24, 8], strides = [1, 1]} : vector<24x96xbf16> to vector<24x8xbf16>
    %cst_98 = arith.constant dense<0.000000e+00> : vector<24x24xf32>
    %220 = tpu.matmul %217, %218, %cst_98 {dimension_numbers = #tpu.dot_dimension_numbers<[1], [1], [0], [0], [0, 0, 1, 0], [], []>} : vector<24x8xbf16>, vector<24x8xbf16>, vector<24x24xf32> -> vector<24x24xf32>
    %221 = arith.addf %220, %6 : vector<24x24xf32>
    %cst_99 = arith.constant dense<0xFF800000> : vector<24xf32>
    %222 = vector.multi_reduction <maximumf>, %221, %cst_99 [1] : vector<24x24xf32> to vector<24xf32>
    %223 = vector.shape_cast %222 : vector<24xf32> to vector<24x1xf32>
    %224 = vector.broadcast %223 : vector<24x1xf32> to vector<24x24xf32>
    %225 = arith.subf %221, %224 : vector<24x24xf32>
    %226 = math.exp %225 : vector<24x24xf32>
    %cst_100 = arith.constant dense<0.000000e+00> : vector<24xf32>
    %227 = vector.multi_reduction <add>, %226, %cst_100 [1] : vector<24x24xf32> to vector<24xf32>
    %228 = vector.shape_cast %227 : vector<24xf32> to vector<24x1xf32>
    %229 = vector.broadcast %228 : vector<24x1xf32> to vector<24x24xf32>
    %230 = arith.divf %226, %229 : vector<24x24xf32>
    %231 = arith.truncf %230 : vector<24x24xf32> to vector<24x24xbf16>
    %cst_101 = arith.constant dense<0.000000e+00> : vector<24x8xf32>
    %232 = tpu.matmul %231, %219, %cst_101 {dimension_numbers = #tpu.dot_dimension_numbers<[1], [0], [0], [1], [0, 0, 1, 1], [], []>} : vector<24x24xbf16>, vector<24x8xbf16>, vector<24x8xf32> -> vector<24x8xf32>
    %233 = vector.extract_strided_slice %200 {offsets = [0, 16], sizes = [24, 8], strides = [1, 1]} : vector<24x96xbf16> to vector<24x8xbf16>
    %234 = vector.extract_strided_slice %200 {offsets = [0, 48], sizes = [24, 8], strides = [1, 1]} : vector<24x96xbf16> to vector<24x8xbf16>
    %235 = vector.extract_strided_slice %200 {offsets = [0, 80], sizes = [24, 8], strides = [1, 1]} : vector<24x96xbf16> to vector<24x8xbf16>
    %cst_102 = arith.constant dense<0.000000e+00> : vector<24x24xf32>
    %236 = tpu.matmul %233, %234, %cst_102 {dimension_numbers = #tpu.dot_dimension_numbers<[1], [1], [0], [0], [0, 0, 1, 0], [], []>} : vector<24x8xbf16>, vector<24x8xbf16>, vector<24x24xf32> -> vector<24x24xf32>
    %237 = arith.addf %236, %6 : vector<24x24xf32>
    %cst_103 = arith.constant dense<0xFF800000> : vector<24xf32>
    %238 = vector.multi_reduction <maximumf>, %237, %cst_103 [1] : vector<24x24xf32> to vector<24xf32>
    %239 = vector.shape_cast %238 : vector<24xf32> to vector<24x1xf32>
    %240 = vector.broadcast %239 : vector<24x1xf32> to vector<24x24xf32>
    %241 = arith.subf %237, %240 : vector<24x24xf32>
    %242 = math.exp %241 : vector<24x24xf32>
    %cst_104 = arith.constant dense<0.000000e+00> : vector<24xf32>
    %243 = vector.multi_reduction <add>, %242, %cst_104 [1] : vector<24x24xf32> to vector<24xf32>
    %244 = vector.shape_cast %243 : vector<24xf32> to vector<24x1xf32>
    %245 = vector.broadcast %244 : vector<24x1xf32> to vector<24x24xf32>
    %246 = arith.divf %242, %245 : vector<24x24xf32>
    %247 = arith.truncf %246 : vector<24x24xf32> to vector<24x24xbf16>
    %cst_105 = arith.constant dense<0.000000e+00> : vector<24x8xf32>
    %248 = tpu.matmul %247, %235, %cst_105 {dimension_numbers = #tpu.dot_dimension_numbers<[1], [0], [0], [1], [0, 0, 1, 1], [], []>} : vector<24x24xbf16>, vector<24x8xbf16>, vector<24x8xf32> -> vector<24x8xf32>
    %249 = vector.extract_strided_slice %200 {offsets = [0, 24], sizes = [24, 8], strides = [1, 1]} : vector<24x96xbf16> to vector<24x8xbf16>
    %250 = vector.extract_strided_slice %200 {offsets = [0, 56], sizes = [24, 8], strides = [1, 1]} : vector<24x96xbf16> to vector<24x8xbf16>
    %251 = vector.extract_strided_slice %200 {offsets = [0, 88], sizes = [24, 8], strides = [1, 1]} : vector<24x96xbf16> to vector<24x8xbf16>
    %cst_106 = arith.constant dense<0.000000e+00> : vector<24x24xf32>
    %252 = tpu.matmul %249, %250, %cst_106 {dimension_numbers = #tpu.dot_dimension_numbers<[1], [1], [0], [0], [0, 0, 1, 0], [], []>} : vector<24x8xbf16>, vector<24x8xbf16>, vector<24x24xf32> -> vector<24x24xf32>
    %253 = arith.addf %252, %6 : vector<24x24xf32>
    %cst_107 = arith.constant dense<0xFF800000> : vector<24xf32>
    %254 = vector.multi_reduction <maximumf>, %253, %cst_107 [1] : vector<24x24xf32> to vector<24xf32>
    %255 = vector.shape_cast %254 : vector<24xf32> to vector<24x1xf32>
    %256 = vector.broadcast %255 : vector<24x1xf32> to vector<24x24xf32>
    %257 = arith.subf %253, %256 : vector<24x24xf32>
    %258 = math.exp %257 : vector<24x24xf32>
    %cst_108 = arith.constant dense<0.000000e+00> : vector<24xf32>
    %259 = vector.multi_reduction <add>, %258, %cst_108 [1] : vector<24x24xf32> to vector<24xf32>
    %260 = vector.shape_cast %259 : vector<24xf32> to vector<24x1xf32>
    %261 = vector.broadcast %260 : vector<24x1xf32> to vector<24x24xf32>
    %262 = arith.divf %258, %261 : vector<24x24xf32>
    %263 = arith.truncf %262 : vector<24x24xf32> to vector<24x24xbf16>
    %cst_109 = arith.constant dense<0.000000e+00> : vector<24x8xf32>
    %264 = tpu.matmul %263, %251, %cst_109 {dimension_numbers = #tpu.dot_dimension_numbers<[1], [0], [0], [1], [0, 0, 1, 1], [], []>} : vector<24x24xbf16>, vector<24x8xbf16>, vector<24x8xf32> -> vector<24x8xf32>
    %265 = tpu.concatenate %216, %232, %248, %264 in 1 : vector<24x8xf32>, vector<24x8xf32>, vector<24x8xf32>, vector<24x8xf32> -> vector<24x32xf32>
    %266 = arith.truncf %265 : vector<24x32xf32> to vector<24x32xbf16>
    %c1_110 = arith.constant 1 : index
    %c0_111 = arith.constant 0 : index
    %c0_112 = arith.constant 0 : index
    %267 = vector.load %arg9[%c1_110, %c0_111, %c0_112] : memref<2x32x32xbf16, #tpu.memory_space<vmem>>, vector<1x32x32xbf16>
    %268 = vector.shape_cast %267 : vector<1x32x32xbf16> to vector<32x32xbf16>
    %cst_113 = arith.constant dense<0.000000e+00> : vector<24x32xf32>
    %269 = tpu.matmul %266, %268, %cst_113 {dimension_numbers = #tpu.dot_dimension_numbers<[1], [0], [0], [1], [0, 0, 1, 1], [], []>} : vector<24x32xbf16>, vector<32x32xbf16>, vector<24x32xf32> -> vector<24x32xf32>
    %270 = arith.addf %167, %269 : vector<24x32xf32>
    %c1_114 = arith.constant 1 : index
    %c0_115 = arith.constant 0 : index
    %c0_116 = arith.constant 0 : index
    %271 = vector.load %arg10[%c1_114, %c0_115, %c0_116] : memref<2x1x32xf32, #tpu.memory_space<vmem>>, vector<1x1x32xf32>
    %272 = vector.shape_cast %271 : vector<1x1x32xf32> to vector<1x32xf32>
    %273 = vector.broadcast %272 : vector<1x32xf32> to vector<24x32xf32>
    %274 = arith.addf %270, %273 : vector<24x32xf32>
    %c1_117 = arith.constant 1 : index
    %c0_118 = arith.constant 0 : index
    %c0_119 = arith.constant 0 : index
    %275 = vector.load %arg11[%c1_117, %c0_118, %c0_119] : memref<2x1x32xf32, #tpu.memory_space<vmem>>, vector<1x1x32xf32>
    %276 = vector.shape_cast %275 : vector<1x1x32xf32> to vector<1x32xf32>
    %c1_120 = arith.constant 1 : index
    %c0_121 = arith.constant 0 : index
    %c0_122 = arith.constant 0 : index
    %277 = vector.load %arg12[%c1_120, %c0_121, %c0_122] : memref<2x1x32xf32, #tpu.memory_space<vmem>>, vector<1x1x32xf32>
    %278 = vector.shape_cast %277 : vector<1x1x32xf32> to vector<1x32xf32>
    %cst_123 = arith.constant dense<0.000000e+00> : vector<24xf32>
    %279 = vector.multi_reduction <add>, %274, %cst_123 [1] : vector<24x32xf32> to vector<24xf32>
    %280 = vector.shape_cast %279 : vector<24xf32> to vector<24x1xf32>
    %cst_124 = arith.constant 3.200000e+01 : f32
    %281 = vector.broadcast %cst_124 : f32 to vector<24x1xf32>
    %282 = arith.divf %280, %281 : vector<24x1xf32>
    %283 = vector.broadcast %282 : vector<24x1xf32> to vector<24x32xf32>
    %284 = arith.subf %274, %283 : vector<24x32xf32>
    %285 = arith.mulf %284, %284 : vector<24x32xf32>
    %cst_125 = arith.constant dense<0.000000e+00> : vector<24xf32>
    %286 = vector.multi_reduction <add>, %285, %cst_125 [1] : vector<24x32xf32> to vector<24xf32>
    %287 = vector.shape_cast %286 : vector<24xf32> to vector<24x1xf32>
    %cst_126 = arith.constant 3.200000e+01 : f32
    %288 = vector.broadcast %cst_126 : f32 to vector<24x1xf32>
    %289 = arith.divf %287, %288 : vector<24x1xf32>
    %cst_127 = arith.constant 9.99999997E-7 : f32
    %290 = vector.broadcast %cst_127 : f32 to vector<24x1xf32>
    %291 = arith.addf %289, %290 : vector<24x1xf32>
    %292 = math.rsqrt %291 : vector<24x1xf32>
    %293 = vector.broadcast %292 : vector<24x1xf32> to vector<24x32xf32>
    %294 = arith.mulf %284, %293 : vector<24x32xf32>
    %295 = vector.broadcast %276 : vector<1x32xf32> to vector<24x32xf32>
    %296 = arith.mulf %294, %295 : vector<24x32xf32>
    %297 = vector.broadcast %278 : vector<1x32xf32> to vector<24x32xf32>
    %298 = arith.addf %296, %297 : vector<24x32xf32>
    %299 = arith.truncf %298 : vector<24x32xf32> to vector<24x32xbf16>
    %c1_128 = arith.constant 1 : index
    %c0_129 = arith.constant 0 : index
    %c0_130 = arith.constant 0 : index
    %300 = vector.load %arg13[%c1_128, %c0_129, %c0_130] : memref<2x32x128xbf16, #tpu.memory_space<vmem>>, vector<1x32x128xbf16>
    %301 = vector.shape_cast %300 : vector<1x32x128xbf16> to vector<32x128xbf16>
    %cst_131 = arith.constant dense<0.000000e+00> : vector<24x128xf32>
    %302 = tpu.matmul %299, %301, %cst_131 {dimension_numbers = #tpu.dot_dimension_numbers<[1], [0], [0], [1], [0, 0, 1, 1], [], []>} : vector<24x32xbf16>, vector<32x128xbf16>, vector<24x128xf32> -> vector<24x128xf32>
    %c1_132 = arith.constant 1 : index
    %c0_133 = arith.constant 0 : index
    %c0_134 = arith.constant 0 : index
    %303 = vector.load %arg14[%c1_132, %c0_133, %c0_134] : memref<2x1x128xf32, #tpu.memory_space<vmem>>, vector<1x1x128xf32>
    %304 = vector.shape_cast %303 : vector<1x1x128xf32> to vector<1x128xf32>
    %305 = vector.broadcast %304 : vector<1x128xf32> to vector<24x128xf32>
    %306 = arith.addf %302, %305 : vector<24x128xf32>
    %307 = arith.mulf %306, %306 : vector<24x128xf32>
    %308 = arith.mulf %306, %307 : vector<24x128xf32>
    %cst_135 = arith.constant 4.471500e-02 : f32
    %309 = vector.broadcast %cst_135 : f32 to vector<24x128xf32>
    %310 = arith.mulf %309, %308 : vector<24x128xf32>
    %311 = arith.addf %306, %310 : vector<24x128xf32>
    %cst_136 = arith.constant 0.797884583 : f32
    %312 = vector.broadcast %cst_136 : f32 to vector<24x128xf32>
    %313 = arith.mulf %312, %311 : vector<24x128xf32>
    %314 = math.tanh %313 : vector<24x128xf32>
    %cst_137 = arith.constant 1.000000e+00 : f32
    %315 = vector.broadcast %cst_137 : f32 to vector<24x128xf32>
    %316 = arith.addf %315, %314 : vector<24x128xf32>
    %cst_138 = arith.constant 5.000000e-01 : f32
    %317 = vector.broadcast %cst_138 : f32 to vector<24x128xf32>
    %318 = arith.mulf %317, %316 : vector<24x128xf32>
    %319 = arith.mulf %306, %318 : vector<24x128xf32>
    %320 = arith.truncf %319 : vector<24x128xf32> to vector<24x128xbf16>
    %c1_139 = arith.constant 1 : index
    %c0_140 = arith.constant 0 : index
    %c0_141 = arith.constant 0 : index
    %321 = vector.load %arg15[%c1_139, %c0_140, %c0_141] : memref<2x128x32xbf16, #tpu.memory_space<vmem>>, vector<1x128x32xbf16>
    %322 = vector.shape_cast %321 : vector<1x128x32xbf16> to vector<128x32xbf16>
    %cst_142 = arith.constant dense<0.000000e+00> : vector<24x32xf32>
    %323 = tpu.matmul %320, %322, %cst_142 {dimension_numbers = #tpu.dot_dimension_numbers<[1], [0], [0], [1], [0, 0, 1, 1], [], []>} : vector<24x128xbf16>, vector<128x32xbf16>, vector<24x32xf32> -> vector<24x32xf32>
    %c1_143 = arith.constant 1 : index
    %c0_144 = arith.constant 0 : index
    %c0_145 = arith.constant 0 : index
    %324 = vector.load %arg16[%c1_143, %c0_144, %c0_145] : memref<2x1x32xf32, #tpu.memory_space<vmem>>, vector<1x1x32xf32>
    %325 = vector.shape_cast %324 : vector<1x1x32xf32> to vector<1x32xf32>
    %326 = vector.broadcast %325 : vector<1x32xf32> to vector<24x32xf32>
    %327 = arith.addf %323, %326 : vector<24x32xf32>
    %328 = arith.addf %274, %327 : vector<24x32xf32>
    %c0_146 = arith.constant 0 : index
    %c0_147 = arith.constant 0 : index
    %329 = vector.load %arg17[%c0_146, %c0_147] : memref<1x32xf32, #tpu.memory_space<vmem>>, vector<1x32xf32>
    %c0_148 = arith.constant 0 : index
    %c0_149 = arith.constant 0 : index
    %330 = vector.load %arg18[%c0_148, %c0_149] : memref<1x32xf32, #tpu.memory_space<vmem>>, vector<1x32xf32>
    %cst_150 = arith.constant dense<0.000000e+00> : vector<24xf32>
    %331 = vector.multi_reduction <add>, %328, %cst_150 [1] : vector<24x32xf32> to vector<24xf32>
    %332 = vector.shape_cast %331 : vector<24xf32> to vector<24x1xf32>
    %cst_151 = arith.constant 3.200000e+01 : f32
    %333 = vector.broadcast %cst_151 : f32 to vector<24x1xf32>
    %334 = arith.divf %332, %333 : vector<24x1xf32>
    %335 = vector.broadcast %334 : vector<24x1xf32> to vector<24x32xf32>
    %336 = arith.subf %328, %335 : vector<24x32xf32>
    %337 = arith.mulf %336, %336 : vector<24x32xf32>
    %cst_152 = arith.constant dense<0.000000e+00> : vector<24xf32>
    %338 = vector.multi_reduction <add>, %337, %cst_152 [1] : vector<24x32xf32> to vector<24xf32>
    %339 = vector.shape_cast %338 : vector<24xf32> to vector<24x1xf32>
    %cst_153 = arith.constant 3.200000e+01 : f32
    %340 = vector.broadcast %cst_153 : f32 to vector<24x1xf32>
    %341 = arith.divf %339, %340 : vector<24x1xf32>
    %cst_154 = arith.constant 9.99999997E-7 : f32
    %342 = vector.broadcast %cst_154 : f32 to vector<24x1xf32>
    %343 = arith.addf %341, %342 : vector<24x1xf32>
    %344 = math.rsqrt %343 : vector<24x1xf32>
    %345 = vector.broadcast %344 : vector<24x1xf32> to vector<24x32xf32>
    %346 = arith.mulf %336, %345 : vector<24x32xf32>
    %347 = vector.broadcast %329 : vector<1x32xf32> to vector<24x32xf32>
    %348 = arith.mulf %346, %347 : vector<24x32xf32>
    %349 = vector.broadcast %330 : vector<1x32xf32> to vector<24x32xf32>
    %350 = arith.addf %348, %349 : vector<24x32xf32>
    %c0_155 = arith.constant 0 : index
    %c0_156 = arith.constant 0 : index
    %351 = vector.load %arg19[%c0_155, %c0_156] : memref<24x32xf32, #tpu.memory_space<vmem>>, vector<24x32xf32>
    tpu.vector_store %arg19[%c0_155, %c0_156], %350 {strides = array<i32>} : memref<24x32xf32, #tpu.memory_space<vmem>>, vector<24x32xf32>,
    return
  }
  func.func @transform_0(%arg0: i32) -> (i32, i32) {
    %c0_i32 = arith.constant 0 : i32
    %c0_i32_0 = arith.constant 0 : i32
    return %arg0, %c0_i32 : i32, i32
  }
  func.func @transform_1(%arg0: i32) -> (i32, i32) {
    %c0_i32 = arith.constant 0 : i32
    %c0_i32_0 = arith.constant 0 : i32
    return %arg0, %c0_i32 : i32, i32
  }
  func.func @transform_2(%arg0: i32) -> (i32, i32) {
    %c0_i32 = arith.constant 0 : i32
    %c0_i32_0 = arith.constant 0 : i32
    %c0_i32_1 = arith.constant 0 : i32
    return %c0_i32, %c0_i32_0 : i32, i32
  }
  func.func @transform_3(%arg0: i32) -> (i32, i32) {
    %c0_i32 = arith.constant 0 : i32
    %c0_i32_0 = arith.constant 0 : i32
    %c0_i32_1 = arith.constant 0 : i32
    return %c0_i32, %c0_i32_0 : i32, i32
  }
  func.func @transform_4(%arg0: i32) -> (i32, i32, i32) {
    %c0_i32 = arith.constant 0 : i32
    %c0_i32_0 = arith.constant 0 : i32
    %c0_i32_1 = arith.constant 0 : i32
    %c0_i32_2 = arith.constant 0 : i32
    return %c0_i32, %c0_i32_0, %c0_i32_1 : i32, i32, i32
  }
  func.func @transform_5(%arg0: i32) -> (i32, i32, i32) {
    %c0_i32 = arith.constant 0 : i32
    %c0_i32_0 = arith.constant 0 : i32
    %c0_i32_1 = arith.constant 0 : i32
    %c0_i32_2 = arith.constant 0 : i32
    return %c0_i32, %c0_i32_0, %c0_i32_1 : i32, i32, i32
  }
  func.func @transform_6(%arg0: i32) -> (i32, i32, i32) {
    %c0_i32 = arith.constant 0 : i32
    %c0_i32_0 = arith.constant 0 : i32
    %c0_i32_1 = arith.constant 0 : i32
    %c0_i32_2 = arith.constant 0 : i32
    return %c0_i32, %c0_i32_0, %c0_i32_1 : i32, i32, i32
  }
  func.func @transform_7(%arg0: i32) -> (i32, i32, i32) {
    %c0_i32 = arith.constant 0 : i32
    %c0_i32_0 = arith.constant 0 : i32
    %c0_i32_1 = arith.constant 0 : i32
    %c0_i32_2 = arith.constant 0 : i32
    return %c0_i32, %c0_i32_0, %c0_i32_1 : i32, i32, i32
  }
  func.func @transform_8(%arg0: i32) -> (i32, i32, i32) {
    %c0_i32 = arith.constant 0 : i32
    %c0_i32_0 = arith.constant 0 : i32
    %c0_i32_1 = arith.constant 0 : i32
    %c0_i32_2 = arith.constant 0 : i32
    return %c0_i32, %c0_i32_0, %c0_i32_1 : i32, i32, i32
  }
  func.func @transform_9(%arg0: i32) -> (i32, i32, i32) {
    %c0_i32 = arith.constant 0 : i32
    %c0_i32_0 = arith.constant 0 : i32
    %c0_i32_1 = arith.constant 0 : i32
    %c0_i32_2 = arith.constant 0 : i32
    return %c0_i32, %c0_i32_0, %c0_i32_1 : i32, i32, i32
  }
  func.func @transform_10(%arg0: i32) -> (i32, i32, i32) {
    %c0_i32 = arith.constant 0 : i32
    %c0_i32_0 = arith.constant 0 : i32
    %c0_i32_1 = arith.constant 0 : i32
    %c0_i32_2 = arith.constant 0 : i32
    return %c0_i32, %c0_i32_0, %c0_i32_1 : i32, i32, i32
  }
  func.func @transform_11(%arg0: i32) -> (i32, i32, i32) {
    %c0_i32 = arith.constant 0 : i32
    %c0_i32_0 = arith.constant 0 : i32
    %c0_i32_1 = arith.constant 0 : i32
    %c0_i32_2 = arith.constant 0 : i32
    return %c0_i32, %c0_i32_0, %c0_i32_1 : i32, i32, i32
  }
  func.func @transform_12(%arg0: i32) -> (i32, i32, i32) {
    %c0_i32 = arith.constant 0 : i32
    %c0_i32_0 = arith.constant 0 : i32
    %c0_i32_1 = arith.constant 0 : i32
    %c0_i32_2 = arith.constant 0 : i32
    return %c0_i32, %c0_i32_0, %c0_i32_1 : i32, i32, i32
  }
  func.func @transform_13(%arg0: i32) -> (i32, i32, i32) {
    %c0_i32 = arith.constant 0 : i32
    %c0_i32_0 = arith.constant 0 : i32
    %c0_i32_1 = arith.constant 0 : i32
    %c0_i32_2 = arith.constant 0 : i32
    return %c0_i32, %c0_i32_0, %c0_i32_1 : i32, i32, i32
  }
  func.func @transform_14(%arg0: i32) -> (i32, i32, i32) {
    %c0_i32 = arith.constant 0 : i32
    %c0_i32_0 = arith.constant 0 : i32
    %c0_i32_1 = arith.constant 0 : i32
    %c0_i32_2 = arith.constant 0 : i32
    return %c0_i32, %c0_i32_0, %c0_i32_1 : i32, i32, i32
  }
  func.func @transform_15(%arg0: i32) -> (i32, i32, i32) {
    %c0_i32 = arith.constant 0 : i32
    %c0_i32_0 = arith.constant 0 : i32
    %c0_i32_1 = arith.constant 0 : i32
    %c0_i32_2 = arith.constant 0 : i32
    return %c0_i32, %c0_i32_0, %c0_i32_1 : i32, i32, i32
  }
  func.func @transform_16(%arg0: i32) -> (i32, i32) {
    %c0_i32 = arith.constant 0 : i32
    %c0_i32_0 = arith.constant 0 : i32
    %c0_i32_1 = arith.constant 0 : i32
    return %c0_i32, %c0_i32_0 : i32, i32
  }
  func.func @transform_17(%arg0: i32) -> (i32, i32) {
    %c0_i32 = arith.constant 0 : i32
    %c0_i32_0 = arith.constant 0 : i32
    %c0_i32_1 = arith.constant 0 : i32
    return %c0_i32, %c0_i32_0 : i32, i32
  }
  func.func @transform_18(%arg0: i32) -> (i32, i32) {
    %c0_i32 = arith.constant 0 : i32
    %c0_i32_0 = arith.constant 0 : i32
    return %arg0, %c0_i32 : i32, i32
  }
}

</mosaic_0001>

<llo_original>
// kernel: _encoder_forward.1
$region0: #{_encoder_forward.1}
  #allocation0 [shape = 'u32[]', space=smem, size = 0x4, offset = 0x4, fixed_abs, tag = 'smem constant byte address 0x4 - core index']
  #allocation1 [shape = 'u32[144,128]{1,0:T(1,128)}', space=vmem, size = 0x12000, scoped, tag = 'internal scratch']
  %s0 = inlined_call_operand.vmem [shape: f32[48,64], index: 0, kind: input, shape index: {}]
  %s1 = inlined_call_operand.vmem [shape: f32[48,32], index: 1, kind: input, shape index: {}]
  %s2 = inlined_call_operand.vmem [shape: f32[24,24], index: 2, kind: input, shape index: {}]
  %s3 = inlined_call_operand.vmem [shape: bf16[64,32], index: 3, kind: input, shape index: {}]
  %s4 = inlined_call_operand.vmem [shape: f32[2,1,32], index: 4, kind: input, shape index: {}]
  %s5 = inlined_call_operand.vmem [shape: f32[2,1,32], index: 5, kind: input, shape index: {}]
  %s6 = inlined_call_operand.vmem [shape: bf16[2,32,96], index: 6, kind: input, shape index: {}]
  %s7 = inlined_call_operand.vmem [shape: f32[2,1,96], index: 7, kind: input, shape index: {}]
  %s8 = inlined_call_operand.vmem [shape: bf16[2,32,32], index: 8, kind: input, shape index: {}]
  %s9 = inlined_call_operand.vmem [shape: f32[2,1,32], index: 9, kind: input, shape index: {}]
  %s10 = inlined_call_operand.vmem [shape: f32[2,1,32], index: 10, kind: input, shape index: {}]
  %s11 = inlined_call_operand.vmem [shape: f32[2,1,32], index: 11, kind: input, shape index: {}]
  %s12 = inlined_call_operand.vmem [shape: bf16[2,32,128], index: 12, kind: input, shape index: {}]
  %s13 = inlined_call_operand.vmem [shape: f32[2,1,128], index: 13, kind: input, shape index: {}]
  %s14 = inlined_call_operand.vmem [shape: bf16[2,128,32], index: 14, kind: input, shape index: {}]
  %s15 = inlined_call_operand.vmem [shape: f32[2,1,32], index: 15, kind: input, shape index: {}]
  %s16 = inlined_call_operand.vmem [shape: f32[1,32], index: 16, kind: input, shape index: {}]
  %s17 = inlined_call_operand.vmem [shape: f32[1,32], index: 17, kind: input, shape index: {}]
  %s18 = inlined_call_operand.vmem [shape: f32[48,32], index: 18, kind: output, shape index: {}]
  %s19 = sld [smem:[#allocation0]]
  $region105: #{_encoder_forward.1} parent=0
    _
  %s21 = ssub.s32 1, %s19
  %s22 = scalar_select 0, %s21, %s19
  loop: start=0, step=1, limit=4
  $region2: #{_encoder_forward.1} parent=0 // loop_pre_header
    _
  $region3: #{_encoder_forward.1} parent=0 // loop_header
    %s24 = sphi 0, %s28
    %p25 = scmp.ge.s32.totalorder %s24, 4
    %s34 = sphi 0, %s36
    %s37 = sphi 0, %s34
    %s38 = sphi 0, %s37
    %s54 = sphi 0, %s38
    %s60 = sphi 0, %s62
    %s63 = sphi 0, %s60
    %s64 = sphi 0, %s63
    %s80 = sphi 0, %s64
    %s84 = sphi 0, %s84
    %s86 = sphi 0, %s84
    %s87 = sphi 0, %s86
    %s101 = sphi 0, %s87
    %s105 = sphi 0, %s105
    %s107 = sphi 0, %s105
    %s108 = sphi 0, %s107
    %s122 = sphi 0, %s108
    %s126 = sphi 0, %s126
    %s128 = sphi 0, %s126
    %s129 = sphi 0, %s128
    %s143 = sphi 0, %s129
    %s147 = sphi 0, %s147
    %s149 = sphi 0, %s147
    %s150 = sphi 0, %s149
    %s164 = sphi 0, %s150
    %s168 = sphi 0, %s168
    %s170 = sphi 0, %s168
    %s171 = sphi 0, %s170
    %s185 = sphi 0, %s171
    %s189 = sphi 0, %s189
    %s191 = sphi 0, %s189
    %s192 = sphi 0, %s191
    %s206 = sphi 0, %s192
    %s210 = sphi 0, %s210
    %s212 = sphi 0, %s210
    %s213 = sphi 0, %s212
    %s227 = sphi 0, %s213
    %s231 = sphi 0, %s231
    %s233 = sphi 0, %s231
    %s234 = sphi 0, %s233
    %s248 = sphi 0, %s234
    %s252 = sphi 0, %s252
    %s254 = sphi 0, %s252
    %s255 = sphi 0, %s254
    %s269 = sphi 0, %s255
    %s273 = sphi 0, %s273
    %s275 = sphi 0, %s273
    %s276 = sphi 0, %s275
    %s290 = sphi 0, %s276
    %s294 = sphi 0, %s294
    %s296 = sphi 0, %s294
    %s297 = sphi 0, %s296
    %s311 = sphi 0, %s297
    %s315 = sphi 0, %s315
    %s317 = sphi 0, %s315
    %s318 = sphi 0, %s317
    %s332 = sphi 0, %s318
    %s336 = sphi 0, %s336
    %s338 = sphi 0, %s336
    %s339 = sphi 0, %s338
    %s353 = sphi 0, %s339
    %s357 = sphi 0, %s357
    %s359 = sphi 0, %s357
    %s360 = sphi 0, %s359
    %s374 = sphi 0, %s360
    %s378 = sphi 0, %s378
    %s380 = sphi 0, %s378
    %s381 = sphi 0, %s380
    %s395 = sphi 0, %s381
    %s399 = sphi 0, %s399
    %s401 = sphi 0, %s399
    %s402 = sphi 0, %s401
    %s416 = sphi 0, %s402
    %s422 = sphi 0, %s424
    %s425 = sphi 0, %s422
    %s426 = sphi 0, %s425
    %s442 = sphi 0, %s426
  $region4: #{_encoder_forward.1} parent=0 // loop_header_branch
    %27 = sbr.rel (%p25) target = $region8
  $region5: #{_encoder_forward.1} parent=0 // loop_body
    %s29 = ssub.s32 %s24, 1
    %s30 = ssub.s32 %s24, 2
    %s31 = sadd.s32 %s24, 1
    %s32 = ssub.s32 %s24, %s31
    %p33 = scmp.eq.s32.totalorder %s32, 0
    %s35 = sadd.s32 %s34, 1
    %s36 = scalar_select %p33, %s34, %s35
    %p39 = pneg %p33
    %p40 = scmp.eq.s32.totalorder %s24, 1
    %p41 = por %p39, %p40
    %p42 = scmp.ne.s32.totalorder %s34, %s37
    %p43 = scmp.eq.s32.totalorder %s24, 0
    %p44 = por %p42, %p43
    %p45 = scmp.ne.s32.totalorder %s34, %s37
    %p46 = scmp.eq.s32.totalorder %s29, 1
    %p47 = por %p45, %p46
    %p48 = scmp.ne.s32.totalorder %s37, %s38
    %p49 = scmp.eq.s32.totalorder %s29, 0
    %p50 = por %p48, %p49
    %p51 = scmp.ne.s32.totalorder %s37, %s38
    %p52 = scmp.eq.s32.totalorder %s30, 1
    %p53 = por %p51, %p52
    %p55 = scmp.ne.s32.totalorder %s38, %s54
    %p56 = scmp.eq.s32.totalorder %s30, 0
    %p57 = por %p55, %p56
    %s58 = ssub.s32 %s24, %s31
    %p59 = scmp.eq.s32.totalorder %s58, 0
    %s61 = sadd.s32 %s60, 1
    %s62 = scalar_select %p59, %s60, %s61
    %p65 = pneg %p59
    %p66 = scmp.eq.s32.totalorder %s24, 1
    %p67 = por %p65, %p66
    %p68 = scmp.ne.s32.totalorder %s60, %s63
    %p69 = scmp.eq.s32.totalorder %s24, 0
    %p70 = por %p68, %p69
    %p71 = scmp.ne.s32.totalorder %s60, %s63
    %p72 = scmp.eq.s32.totalorder %s29, 1
    %p73 = por %p71, %p72
    %p74 = scmp.ne.s32.totalorder %s63, %s64
    %p75 = scmp.eq.s32.totalorder %s29, 0
    %p76 = por %p74, %p75
    %p77 = scmp.ne.s32.totalorder %s63, %s64
    %p78 = scmp.eq.s32.totalorder %s30, 1
    %p79 = por %p77, %p78
    %p81 = scmp.ne.s32.totalorder %s64, %s80
    %p82 = scmp.eq.s32.totalorder %s30, 0
    %p83 = por %p81, %p82
    %s85 = sadd.s32 %s84, 1
    %p88 = scmp.eq.s32.totalorder %s24, 1
    %p89 = scmp.ne.s32.totalorder %s84, %s86
    %p90 = scmp.eq.s32.totalorder %s24, 0
    %p91 = por %p89, %p90
    %p92 = scmp.ne.s32.totalorder %s84, %s86
    %p93 = scmp.eq.s32.totalorder %s29, 1
    %p94 = por %p92, %p93
    %p95 = scmp.ne.s32.totalorder %s86, %s87
    %p96 = scmp.eq.s32.totalorder %s29, 0
    %p97 = por %p95, %p96
    %p98 = scmp.ne.s32.totalorder %s86, %s87
    %p99 = scmp.eq.s32.totalorder %s30, 1
    %p100 = por %p98, %p99
    %p102 = scmp.ne.s32.totalorder %s87, %s101
    %p103 = scmp.eq.s32.totalorder %s30, 0
    %p104 = por %p102, %p103
    %s106 = sadd.s32 %s105, 1
    %p109 = scmp.eq.s32.totalorder %s24, 1
    %p110 = scmp.ne.s32.totalorder %s105, %s107
    %p111 = scmp.eq.s32.totalorder %s24, 0
    %p112 = por %p110, %p111
    %p113 = scmp.ne.s32.totalorder %s105, %s107
    %p114 = scmp.eq.s32.totalorder %s29, 1
    %p115 = por %p113, %p114
    %p116 = scmp.ne.s32.totalorder %s107, %s108
    %p117 = scmp.eq.s32.totalorder %s29, 0
    %p118 = por %p116, %p117
    %p119 = scmp.ne.s32.totalorder %s107, %s108
    %p120 = scmp.eq.s32.totalorder %s30, 1
    %p121 = por %p119, %p120
    %p123 = scmp.ne.s32.totalorder %s108, %s122
    %p124 = scmp.eq.s32.totalorder %s30, 0
    %p125 = por %p123, %p124
    %s127 = sadd.s32 %s126, 1
    %p130 = scmp.eq.s32.totalorder %s24, 1
    %p131 = scmp.ne.s32.totalorder %s126, %s128
    %p132 = scmp.eq.s32.totalorder %s24, 0
    %p133 = por %p131, %p132
    %p134 = scmp.ne.s32.totalorder %s126, %s128
    %p135 = scmp.eq.s32.totalorder %s29, 1
    %p136 = por %p134, %p135
    %p137 = scmp.ne.s32.totalorder %s128, %s129
    %p138 = scmp.eq.s32.totalorder %s29, 0
    %p139 = por %p137, %p138
    %p140 = scmp.ne.s32.totalorder %s128, %s129
    %p141 = scmp.eq.s32.totalorder %s30, 1
    %p142 = por %p140, %p141
    %p144 = scmp.ne.s32.totalorder %s129, %s143
    %p145 = scmp.eq.s32.totalorder %s30, 0
    %p146 = por %p144, %p145
    %s148 = sadd.s32 %s147, 1
    %p151 = scmp.eq.s32.totalorder %s24, 1
    %p152 = scmp.ne.s32.totalorder %s147, %s149
    %p153 = scmp.eq.s32.totalorder %s24, 0
    %p154 = por %p152, %p153
    %p155 = scmp.ne.s32.totalorder %s147, %s149
    %p156 = scmp.eq.s32.totalorder %s29, 1
    %p157 = por %p155, %p156
    %p158 = scmp.ne.s32.totalorder %s149, %s150
    %p159 = scmp.eq.s32.totalorder %s29, 0
    %p160 = por %p158, %p159
    %p161 = scmp.ne.s32.totalorder %s149, %s150
    %p162 = scmp.eq.s32.totalorder %s30, 1
    %p163 = por %p161, %p162
    %p165 = scmp.ne.s32.totalorder %s150, %s164
    %p166 = scmp.eq.s32.totalorder %s30, 0
    %p167 = por %p165, %p166
    %s169 = sadd.s32 %s168, 1
    %p172 = scmp.eq.s32.totalorder %s24, 1
    %p173 = scmp.ne.s32.totalorder %s168, %s170
    %p174 = scmp.eq.s32.totalorder %s24, 0
    %p175 = por %p173, %p174
    %p176 = scmp.ne.s32.totalorder %s168, %s170
    %p177 = scmp.eq.s32.totalorder %s29, 1
    %p178 = por %p176, %p177
    %p179 = scmp.ne.s32.totalorder %s170, %s171
    %p180 = scmp.eq.s32.totalorder %s29, 0
    %p181 = por %p179, %p180
    %p182 = scmp.ne.s32.totalorder %s170, %s171
    %p183 = scmp.eq.s32.totalorder %s30, 1
    %p184 = por %p182, %p183
    %p186 = scmp.ne.s32.totalorder %s171, %s185
    %p187 = scmp.eq.s32.totalorder %s30, 0
    %p188 = por %p186, %p187
    %s190 = sadd.s32 %s189, 1
    %p193 = scmp.eq.s32.totalorder %s24, 1
    %p194 = scmp.ne.s32.totalorder %s189, %s191
    %p195 = scmp.eq.s32.totalorder %s24, 0
    %p196 = por %p194, %p195
    %p197 = scmp.ne.s32.totalorder %s189, %s191
    %p198 = scmp.eq.s32.totalorder %s29, 1
    %p199 = por %p197, %p198
    %p200 = scmp.ne.s32.totalorder %s191, %s192
    %p201 = scmp.eq.s32.totalorder %s29, 0
    %p202 = por %p200, %p201
    %p203 = scmp.ne.s32.totalorder %s191, %s192
    %p204 = scmp.eq.s32.totalorder %s30, 1
    %p205 = por %p203, %p204
    %p207 = scmp.ne.s32.totalorder %s192, %s206
    %p208 = scmp.eq.s32.totalorder %s30, 0
    %p209 = por %p207, %p208
    %s211 = sadd.s32 %s210, 1
    %p214 = scmp.eq.s32.totalorder %s24, 1
    %p215 = scmp.ne.s32.totalorder %s210, %s212
    %p216 = scmp.eq.s32.totalorder %s24, 0
    %p217 = por %p215, %p216
    %p218 = scmp.ne.s32.totalorder %s210, %s212
    %p219 = scmp.eq.s32.totalorder %s29, 1
    %p220 = por %p218, %p219
    %p221 = scmp.ne.s32.totalorder %s212, %s213
    %p222 = scmp.eq.s32.totalorder %s29, 0
    %p223 = por %p221, %p222
    %p224 = scmp.ne.s32.totalorder %s212, %s213
    %p225 = scmp.eq.s32.totalorder %s30, 1
    %p226 = por %p224, %p225
    %p228 = scmp.ne.s32.totalorder %s213, %s227
    %p229 = scmp.eq.s32.totalorder %s30, 0
    %p230 = por %p228, %p229
    %s232 = sadd.s32 %s231, 1
    %p235 = scmp.eq.s32.totalorder %s24, 1
    %p236 = scmp.ne.s32.totalorder %s231, %s233
    %p237 = scmp.eq.s32.totalorder %s24, 0
    %p238 = por %p236, %p237
    %p239 = scmp.ne.s32.totalorder %s231, %s233
    %p240 = scmp.eq.s32.totalorder %s29, 1
    %p241 = por %p239, %p240
    %p242 = scmp.ne.s32.totalorder %s233, %s234
    %p243 = scmp.eq.s32.totalorder %s29, 0
    %p244 = por %p242, %p243
    %p245 = scmp.ne.s32.totalorder %s233, %s234
    %p246 = scmp.eq.s32.totalorder %s30, 1
    %p247 = por %p245, %p246
    %p249 = scmp.ne.s32.totalorder %s234, %s248
    %p250 = scmp.eq.s32.totalorder %s30, 0
    %p251 = por %p249, %p250
    %s253 = sadd.s32 %s252, 1
    %p256 = scmp.eq.s32.totalorder %s24, 1
    %p257 = scmp.ne.s32.totalorder %s252, %s254
    %p258 = scmp.eq.s32.totalorder %s24, 0
    %p259 = por %p257, %p258
    %p260 = scmp.ne.s32.totalorder %s252, %s254
    %p261 = scmp.eq.s32.totalorder %s29, 1
    %p262 = por %p260, %p261
    %p263 = scmp.ne.s32.totalorder %s254, %s255
    %p264 = scmp.eq.s32.totalorder %s29, 0
    %p265 = por %p263, %p264
    %p266 = scmp.ne.s32.totalorder %s254, %s255
    %p267 = scmp.eq.s32.totalorder %s30, 1
    %p268 = por %p266, %p267
    %p270 = scmp.ne.s32.totalorder %s255, %s269
    %p271 = scmp.eq.s32.totalorder %s30, 0
    %p272 = por %p270, %p271
    %s274 = sadd.s32 %s273, 1
    %p277 = scmp.eq.s32.totalorder %s24, 1
    %p278 = scmp.ne.s32.totalorder %s273, %s275
    %p279 = scmp.eq.s32.totalorder %s24, 0
    %p280 = por %p278, %p279
    %p281 = scmp.ne.s32.totalorder %s273, %s275
    %p282 = scmp.eq.s32.totalorder %s29, 1
    %p283 = por %p281, %p282
    %p284 = scmp.ne.s32.totalorder %s275, %s276
    %p285 = scmp.eq.s32.totalorder %s29, 0
    %p286 = por %p284, %p285
    %p287 = scmp.ne.s32.totalorder %s275, %s276
    %p288 = scmp.eq.s32.totalorder %s30, 1
    %p289 = por %p287, %p288
    %p291 = scmp.ne.s32.totalorder %s276, %s290
    %p292 = scmp.eq.s32.totalorder %s30, 0
    %p293 = por %p291, %p292
    %s295 = sadd.s32 %s294, 1
    %p298 = scmp.eq.s32.totalorder %s24, 1
    %p299 = scmp.ne.s32.totalorder %s294, %s296
    %p300 = scmp.eq.s32.totalorder %s24, 0
    %p301 = por %p299, %p300
    %p302 = scmp.ne.s32.totalorder %s294, %s296
    %p303 = scmp.eq.s32.totalorder %s29, 1
    %p304 = por %p302, %p303
    %p305 = scmp.ne.s32.totalorder %s296, %s297
    %p306 = scmp.eq.s32.totalorder %s29, 0
    %p307 = por %p305, %p306
    %p308 = scmp.ne.s32.totalorder %s296, %s297
    %p309 = scmp.eq.s32.totalorder %s30, 1
    %p310 = por %p308, %p309
    %p312 = scmp.ne.s32.totalorder %s297, %s311
    %p313 = scmp.eq.s32.totalorder %s30, 0
    %p314 = por %p312, %p313
    %s316 = sadd.s32 %s315, 1
    %p319 = scmp.eq.s32.totalorder %s24, 1
    %p320 = scmp.ne.s32.totalorder %s315, %s317
    %p321 = scmp.eq.s32.totalorder %s24, 0
    %p322 = por %p320, %p321
    %p323 = scmp.ne.s32.totalorder %s315, %s317
    %p324 = scmp.eq.s32.totalorder %s29, 1
    %p325 = por %p323, %p324
    %p326 = scmp.ne.s32.totalorder %s317, %s318
    %p327 = scmp.eq.s32.totalorder %s29, 0
    %p328 = por %p326, %p327
    %p329 = scmp.ne.s32.totalorder %s317, %s318
    %p330 = scmp.eq.s32.totalorder %s30, 1
    %p331 = por %p329, %p330
    %p333 = scmp.ne.s32.totalorder %s318, %s332
    %p334 = scmp.eq.s32.totalorder %s30, 0
    %p335 = por %p333, %p334
    %s337 = sadd.s32 %s336, 1
    %p340 = scmp.eq.s32.totalorder %s24, 1
    %p341 = scmp.ne.s32.totalorder %s336, %s338
    %p342 = scmp.eq.s32.totalorder %s24, 0
    %p343 = por %p341, %p342
    %p344 = scmp.ne.s32.totalorder %s336, %s338
    %p345 = scmp.eq.s32.totalorder %s29, 1
    %p346 = por %p344, %p345
    %p347 = scmp.ne.s32.totalorder %s338, %s339
    %p348 = scmp.eq.s32.totalorder %s29, 0
    %p349 = por %p347, %p348
    %p350 = scmp.ne.s32.totalorder %s338, %s339
    %p351 = scmp.eq.s32.totalorder %s30, 1
    %p352 = por %p350, %p351
    %p354 = scmp.ne.s32.totalorder %s339, %s353
    %p355 = scmp.eq.s32.totalorder %s30, 0
    %p356 = por %p354, %p355
    %s358 = sadd.s32 %s357, 1
    %p361 = scmp.eq.s32.totalorder %s24, 1
    %p362 = scmp.ne.s32.totalorder %s357, %s359
    %p363 = scmp.eq.s32.totalorder %s24, 0
    %p364 = por %p362, %p363
    %p365 = scmp.ne.s32.totalorder %s357, %s359
    %p366 = scmp.eq.s32.totalorder %s29, 1
    %p367 = por %p365, %p366
    %p368 = scmp.ne.s32.totalorder %s359, %s360
    %p369 = scmp.eq.s32.totalorder %s29, 0
    %p370 = por %p368, %p369
    %p371 = scmp.ne.s32.totalorder %s359, %s360
    %p372 = scmp.eq.s32.totalorder %s30, 1
    %p373 = por %p371, %p372
    %p375 = scmp.ne.s32.totalorder %s360, %s374
    %p376 = scmp.eq.s32.totalorder %s30, 0
    %p377 = por %p375, %p376
    %s379 = sadd.s32 %s378, 1
    %p382 = scmp.eq.s32.totalorder %s24, 1
    %p383 = scmp.ne.s32.totalorder %s378, %s380
    %p384 = scmp.eq.s32.totalorder %s24, 0
    %p385 = por %p383, %p384
    %p386 = scmp.ne.s32.totalorder %s378, %s380
    %p387 = scmp.eq.s32.totalorder %s29, 1
    %p388 = por %p386, %p387
    %p389 = scmp.ne.s32.totalorder %s380, %s381
    %p390 = scmp.eq.s32.totalorder %s29, 0
    %p391 = por %p389, %p390
    %p392 = scmp.ne.s32.totalorder %s380, %s381
    %p393 = scmp.eq.s32.totalorder %s30, 1
    %p394 = por %p392, %p393
    %p396 = scmp.ne.s32.totalorder %s381, %s395
    %p397 = scmp.eq.s32.totalorder %s30, 0
    %p398 = por %p396, %p397
    %s400 = sadd.s32 %s399, 1
    %p403 = scmp.eq.s32.totalorder %s24, 1
    %p404 = scmp.ne.s32.totalorder %s399, %s401
    %p405 = scmp.eq.s32.totalorder %s24, 0
    %p406 = por %p404, %p405
    %p407 = scmp.ne.s32.totalorder %s399, %s401
    %p408 = scmp.eq.s32.totalorder %s29, 1
    %p409 = por %p407, %p408
    %p410 = scmp.ne.s32.totalorder %s401, %s402
    %p411 = scmp.eq.s32.totalorder %s29, 0
    %p412 = por %p410, %p411
    %p413 = scmp.ne.s32.totalorder %s401, %s402
    %p414 = scmp.eq.s32.totalorder %s30, 1
    %p415 = por %p413, %p414
    %p417 = scmp.ne.s32.totalorder %s402, %s416
    %p418 = scmp.eq.s32.totalorder %s30, 0
    %p419 = por %p417, %p418
    %s420 = ssub.s32 %s24, %s31
    %p421 = scmp.eq.s32.totalorder %s420, 0
    %s423 = sadd.s32 %s422, 1
    %s424 = scalar_select %p421, %s422, %s423
    %p427 = pneg %p421
    %p428 = scmp.eq.s32.totalorder %s24, 1
    %p429 = por %p427, %p428
    %p430 = scmp.ne.s32.totalorder %s422, %s425
    %p431 = scmp.eq.s32.totalorder %s24, 0
    %p432 = por %p430, %p431
    %p433 = scmp.ne.s32.totalorder %s422, %s425
    %p434 = scmp.eq.s32.totalorder %s29, 1
    %p435 = por %p433, %p434
    %p436 = scmp.ne.s32.totalorder %s425, %s426
    %p437 = scmp.eq.s32.totalorder %s29, 0
    %p438 = por %p436, %p437
    %p439 = scmp.ne.s32.totalorder %s425, %s426
    %p440 = scmp.eq.s32.totalorder %s30, 1
    %p441 = por %p439, %p440
    %p443 = scmp.ne.s32.totalorder %s426, %s442
    %p444 = scmp.eq.s32.totalorder %s30, 0
    %p445 = por %p443, %p444
    %p446 = scmp.le.s32.totalorder 1, %s24
    %p447 = scmp.lt.s32.totalorder %s24, 3
    %p448 = pnand %p446, %p447
    %p449 = pneg %p448
    // Predicated region
    $region9: #{_encoder_forward.1} parent=5 // pred_check
      _
    $region10: #{_encoder_forward.1} parent=5 // pred_check_branch
      %451 = sbr.rel (%p448) target = $region12
    $region11: #{_encoder_forward.1} parent=5 // pred_region
      %s452 = ssub.s32 %s24, 1
      // Predicated region
      $region13: #{_encoder_forward.1} parent=11 // pred_check
        %p453 = pneg %p97
      $region14: #{_encoder_forward.1} parent=11 // pred_check_branch
        %455 = sbr.rel (%p453) target = $region16
      $region15: #{_encoder_forward.1} parent=11 // pred_region
        _
      $region16: #{_encoder_forward.1} parent=11 // pred_fallthru
        _
      // Predicated region
      $region17: #{_encoder_forward.1} parent=11 // pred_check
        %p456 = pneg %p118
      $region18: #{_encoder_forward.1} parent=11 // pred_check_branch
        %458 = sbr.rel (%p456) target = $region20
      $region19: #{_encoder_forward.1} parent=11 // pred_region
        _
      $region20: #{_encoder_forward.1} parent=11 // pred_fallthru
        _
      // Predicated region
      $region21: #{_encoder_forward.1} parent=11 // pred_check
        %p459 = pneg %p139
      $region22: #{_encoder_forward.1} parent=11 // pred_check_branch
        %461 = sbr.rel (%p459) target = $region24
      $region23: #{_encoder_forward.1} parent=11 // pred_region
        _
      $region24: #{_encoder_forward.1} parent=11 // pred_fallthru
        _
      // Predicated region
      $region25: #{_encoder_forward.1} parent=11 // pred_check
        %p462 = pneg %p160
      $region26: #{_encoder_forward.1} parent=11 // pred_check_branch
        %464 = sbr.rel (%p462) target = $region28
      $region27: #{_encoder_forward.1} parent=11 // pred_region
        _
      $region28: #{_encoder_forward.1} parent=11 // pred_fallthru
        _
      // Predicated region
      $region29: #{_encoder_forward.1} parent=11 // pred_check
        %p465 = pneg %p181
      $region30: #{_encoder_forward.1} parent=11 // pred_check_branch
        %467 = sbr.rel (%p465) target = $region32
      $region31: #{_encoder_forward.1} parent=11 // pred_region
        _
      $region32: #{_encoder_forward.1} parent=11 // pred_fallthru
        _
      // Predicated region
      $region33: #{_encoder_forward.1} parent=11 // pred_check
        %p468 = pneg %p202
      $region34: #{_encoder_forward.1} parent=11 // pred_check_branch
        %470 = sbr.rel (%p468) target = $region36
      $region35: #{_encoder_forward.1} parent=11 // pred_region
        _
      $region36: #{_encoder_forward.1} parent=11 // pred_fallthru
        _
      // Predicated region
      $region37: #{_encoder_forward.1} parent=11 // pred_check
        %p471 = pneg %p223
      $region38: #{_encoder_forward.1} parent=11 // pred_check_branch
        %473 = sbr.rel (%p471) target = $region40
      $region39: #{_encoder_forward.1} parent=11 // pred_region
        _
      $region40: #{_encoder_forward.1} parent=11 // pred_fallthru
        _
      // Predicated region
      $region41: #{_encoder_forward.1} parent=11 // pred_check
        %p474 = pneg %p244
      $region42: #{_encoder_forward.1} parent=11 // pred_check_branch
        %476 = sbr.rel (%p474) target = $region44
      $region43: #{_encoder_forward.1} parent=11 // pred_region
        _
      $region44: #{_encoder_forward.1} parent=11 // pred_fallthru
        _
      // Predicated region
      $region45: #{_encoder_forward.1} parent=11 // pred_check
        %p477 = pneg %p265
      $region46: #{_encoder_forward.1} parent=11 // pred_check_branch
        %479 = sbr.rel (%p477) target = $region48
      $region47: #{_encoder_forward.1} parent=11 // pred_region
        _
      $region48: #{_encoder_forward.1} parent=11 // pred_fallthru
        _
      // Predicated region
      $region49: #{_encoder_forward.1} parent=11 // pred_check
        %p480 = pneg %p286
      $region50: #{_encoder_forward.1} parent=11 // pred_check_branch
        %482 = sbr.rel (%p480) target = $region52
      $region51: #{_encoder_forward.1} parent=11 // pred_region
        _
      $region52: #{_encoder_forward.1} parent=11 // pred_fallthru
        _
      // Predicated region
      $region53: #{_encoder_forward.1} parent=11 // pred_check
        %p483 = pneg %p307
      $region54: #{_encoder_forward.1} parent=11 // pred_check_branch
        %485 = sbr.rel (%p483) target = $region56
      $region55: #{_encoder_forward.1} parent=11 // pred_region
        _
      $region56: #{_encoder_forward.1} parent=11 // pred_fallthru
        _
      // Predicated region
      $region57: #{_encoder_forward.1} parent=11 // pred_check
        %p486 = pneg %p328
      $region58: #{_encoder_forward.1} parent=11 // pred_check_branch
        %488 = sbr.rel (%p486) target = $region60
      $region59: #{_encoder_forward.1} parent=11 // pred_region
        _
      $region60: #{_encoder_forward.1} parent=11 // pred_fallthru
        _
      // Predicated region
      $region61: #{_encoder_forward.1} parent=11 // pred_check
        %p489 = pneg %p349
      $region62: #{_encoder_forward.1} parent=11 // pred_check_branch
        %491 = sbr.rel (%p489) target = $region64
      $region63: #{_encoder_forward.1} parent=11 // pred_region
        _
      $region64: #{_encoder_forward.1} parent=11 // pred_fallthru
        _
      // Predicated region
      $region65: #{_encoder_forward.1} parent=11 // pred_check
        %p492 = pneg %p370
      $region66: #{_encoder_forward.1} parent=11 // pred_check_branch
        %494 = sbr.rel (%p492) target = $region68
      $region67: #{_encoder_forward.1} parent=11 // pred_region
        _
      $region68: #{_encoder_forward.1} parent=11 // pred_fallthru
        _
      // Predicated region
      $region69: #{_encoder_forward.1} parent=11 // pred_check
        %p495 = pneg %p391
      $region70: #{_encoder_forward.1} parent=11 // pred_check_branch
        %497 = sbr.rel (%p495) target = $region72
      $region71: #{_encoder_forward.1} parent=11 // pred_region
        _
      $region72: #{_encoder_forward.1} parent=11 // pred_fallthru
        _
      // Predicated region
      $region73: #{_encoder_forward.1} parent=11 // pred_check
        %p498 = pneg %p412
      $region74: #{_encoder_forward.1} parent=11 // pred_check_branch
        %500 = sbr.rel (%p498) target = $region76
      $region75: #{_encoder_forward.1} parent=11 // pred_region
        _
      $region76: #{_encoder_forward.1} parent=11 // pred_fallthru
        _
    $region12: #{_encoder_forward.1} parent=5 // pred_fallthru
      _
    %p501 = scmp.lt.s32.totalorder %s24, 2
    // Predicated region
    $region77: #{_encoder_forward.1} parent=5 // pred_check
      %p502 = pneg %p501
    $region78: #{_encoder_forward.1} parent=5 // pred_check_branch
      %504 = sbr.rel (%p502) target = $region80
    $region79: #{_encoder_forward.1} parent=5 // pred_region
      // Predicated region
      $region81: #{_encoder_forward.1} parent=79 // pred_check
        %p505 = pneg %p44
      $region82: #{_encoder_forward.1} parent=79 // pred_check_branch
        %507 = sbr.rel (%p505) target = $region84
      $region83: #{_encoder_forward.1} parent=79 // pred_region
        %s508 = smul.u32 3, %s24
        %p509 = scmp.lt.s32.totalorder %s508, 5
        %s510 = scalar_select %p509, %s508, 5
        %s511 = smul.addr %s510, 8
        %s512 = scalar_lea.vmem %s0, %s511
        %s513 = smul.u32 3, %s24
      $region84: #{_encoder_forward.1} parent=79 // pred_fallthru
        _
      // Predicated region
      $region85: #{_encoder_forward.1} parent=79 // pred_check
        %p514 = pneg %p70
      $region86: #{_encoder_forward.1} parent=79 // pred_check_branch
        %516 = sbr.rel (%p514) target = $region88
      $region87: #{_encoder_forward.1} parent=79 // pred_region
        %s517 = smul.u32 3, %s24
        %p518 = scmp.lt.s32.totalorder %s517, 5
        %s519 = scalar_select %p518, %s517, 5
        %s520 = smul.addr %s519, 8
        %s521 = scalar_lea.vmem %s1, %s520
        %s522 = smul.u32 3, %s24
      $region88: #{_encoder_forward.1} parent=79 // pred_fallthru
        _
    $region80: #{_encoder_forward.1} parent=5 // pred_fallthru
      _
    %p523 = scmp.le.s32.totalorder 1, %s24
    %p524 = scmp.lt.s32.totalorder %s24, 3
    %p525 = pnand %p523, %p524
    %p526 = pneg %p525
    // Predicated region
    $region89: #{_encoder_forward.1} parent=5 // pred_check
      _
    $region90: #{_encoder_forward.1} parent=5 // pred_check_branch
      %528 = sbr.rel (%p525) target = $region92
    $region91: #{_encoder_forward.1} parent=5 // pred_region
      %s529 = ssub.s32 %s24, 1
      %s530 = smul.u32 3, %s29
      %p531 = scmp.lt.s32.totalorder %s530, 5
      %s532 = scalar_select %p531, %s530, 5
      %s533 = smul.addr %s532, 8
      %s534 = scalar_lea.vmem %s0, %s533
      %p535 = pneg %p50
      %p536 = pneg %p47
      %s537 = smul.u32 3, %s29
      %p538 = scmp.lt.s32.totalorder %s537, 5
      %s539 = scalar_select %p538, %s537, 5
      %s540 = smul.addr %s539, 8
      %s541 = scalar_lea.vmem %s1, %s540
      %p542 = pneg %p76
      %p543 = pneg %p73
      %p544 = pneg %p97
      %p545 = pneg %p94
      %p546 = pneg %p118
      %p547 = pneg %p115
      %p548 = pneg %p139
      %p549 = pneg %p136
      %p550 = pneg %p160
      %p551 = pneg %p157
      %p552 = pneg %p181
      %p553 = pneg %p178
      %p554 = pneg %p202
      %p555 = pneg %p199
      %p556 = pneg %p223
      %p557 = pneg %p220
      %p558 = pneg %p244
      %p559 = pneg %p241
      %p560 = pneg %p265
      %p561 = pneg %p262
      %p562 = pneg %p286
      %p563 = pneg %p283
      %p564 = pneg %p307
      %p565 = pneg %p304
      %p566 = pneg %p328
      %p567 = pneg %p325
      %p568 = pneg %p349
      %p569 = pneg %p346
      %p570 = pneg %p370
      %p571 = pneg %p367
      %p572 = pneg %p391
      %p573 = pneg %p388
      %p574 = pneg %p412
      %p575 = pneg %p409
      %p576 = pneg %p438
      %p577 = pneg %p435
      %s578 = smul.u32 3, %s29
      %p579 = scmp.lt.s32.totalorder %s578, 5
      %s580 = scalar_select %p579, %s578, 5
      %s581 = smul.addr %s580, 8
      %s582 = scalar_lea.vmem %s18, %s581
      %s583 = smul.u32 3, %s29
      %p584 = scmp.lt.s32.totalorder %s583, 5
      %s585 = scalar_select %p584, %s583, 5
      %s586 = smul.addr %s585, 8
      %s587 = scalar_lea.vmem %s0, %s586
      %s588 = smul.u32 3, %s29
      %s589 = smul.u32 3, %s29
      %p590 = scmp.lt.s32.totalorder %s589, 5
      %s591 = scalar_select %p590, %s589, 5
      %s592 = smul.addr %s591, 8
      %s593 = scalar_lea.vmem %s1, %s592
      %s594 = smul.u32 3, %s29
      %s595 = smul.u32 3, %s29
      %p596 = scmp.lt.s32.totalorder %s595, 5
      %s597 = scalar_select %p596, %s595, 5
      %s598 = smul.addr %s597, 8
      %s599 = scalar_lea.vmem %s18, %s598
      %s600 = smul.u32 3, %s29
      %v602 = vld [vmem:[%s587] sm:$0xff]
      %v603 = vld [vmem:[%s587 + $0x8] sm:$0xff]
      %v604 = vld [vmem:[%s587 + $0x10] sm:$0xff]
      %v605 = vpack.c.bf16 %v603, %v602
      %v606 = vpack.c.bf16 %v604, %v604
      %v607 = vld [vmem:[%s3] sm:$0xf]
      %v608 = vld [vmem:[%s3 + $0x4] sm:$0xf]
      %v609 = vld [vmem:[%s3 + $0x8] sm:$0xf]
      %v610 = vld [vmem:[%s3 + $0xc] sm:$0xf]
      %v611 = vld [vmem:[%s3 + $0x10] sm:$0xf]
      %v612 = vld [vmem:[%s3 + $0x14] sm:$0xf]
      %v613 = vld [vmem:[%s3 + $0x18] sm:$0xf]
      %v614 = vld [vmem:[%s3 + $0x1c] sm:$0xf]
      %v623 = vunpack.c.l.b16 %v607
      %v624 = vunpack.c.l.b16 %v608
      %v625 = vunpack.c.l.b16 %v609
      %v626 = vunpack.c.l.b16 %v610
      %v627 = vunpack.c.l.b16 %v611
      %v628 = vunpack.c.l.b16 %v612
      %v629 = vunpack.c.l.b16 %v613
      %v630 = vunpack.c.l.b16 %v614
      %v631 = vpack.c.b16 %v624, %v623
      %v632 = vpack.c.b16 %v626, %v625
      %v633 = vpack.c.b16 %v628, %v627
      %v634 = vpack.c.b16 %v630, %v629
      %vm639 = vcmask 523264
      %v641 = vsel %vm639, %v605, 0
      %v644 = vsel %vm639, %v606, 0
      %646 = vmatprep.subr.bf16.mxu0 0
      %647 = vmatpush1.bf16.msra.mxu0 %v631
      %648 = vmatprep.subr.bf16.mxu0 0
      %649 = vmatpush1.bf16.msra.mxu0 %v632
      %650 = vmatprep.subr.bf16.mxu0 0
      %651 = vmatpush1.bf16.msra.mxu0 %v633
      %652 = vmatprep.subr.bf16.mxu0 0
      %653 = vmatpush1.bf16.msra.mxu0 %v634
      %654 = vmatprep.subr.bf16.mxu0 0
      %655 = vmatpush1.bf16.msra.mxu0 0
      %656 = vmatprep.subr.bf16.mxu0 0
      %657 = vmatpush1.bf16.msra.mxu0 0
      %658 = vmatprep.subr.bf16.mxu0 0
      %659 = vmatpush1.bf16.msra.mxu0 0
      %660 = vmatprep.subr.bf16.mxu0 0
      %661 = vmatpush1.bf16.msra.mxu0 0
      %662 = vmatprep.subr.bf16.mxu0 0
      %663 = vmatpush1.bf16.msra.mxu0 0
      %664 = vmatprep.subr.bf16.mxu0 0
      %665 = vmatpush1.bf16.msra.mxu0 0
      %666 = vmatprep.subr.bf16.mxu0 0
      %667 = vmatpush1.bf16.msra.mxu0 0
      %668 = vmatprep.subr.bf16.mxu0 0
      %669 = vmatpush1.bf16.msra.mxu0 0
      %670 = vmatprep.subr.bf16.mxu0 0
      %671 = vmatpush1.bf16.msra.mxu0 0
      %672 = vmatprep.subr.bf16.mxu0 0
      %673 = vmatpush1.bf16.msra.mxu0 0
      %674 = vmatprep.subr.bf16.mxu0 0
      %675 = vmatpush1.bf16.msra.mxu0 0
      %676 = vmatprep.subr.bf16.mxu0 0
      %677 = vmatpush1.bf16.msra.mxu0 0
      %678 = vmatprep.mubr.bf16.mxu0 0
      %679 = vmatmul.mubr.bf16.gmra.mrb[0].mxu0 %v641
      %v680 = vpop.f32.mrb[0].mxu0
      %v681 = vadd.f32 0.0, %v680
      %v682 = vpop.f32.mrb[0].mxu0
      %v683 = vpop.f32.mrb[0].mxu0
      %v684 = vadd.f32 0.0, %v683
      %v685 = vpop.f32.mrb[0].mxu0
      %686 = vmatprep.mubr.bf16.mxu0 0
      %687 = vmatmul.mubr.bf16.gmra.mrb[0].mxu0 %v644
      %v688 = vpop.f32.mrb[0].mxu0
      %v689 = vadd.f32 0.0, %v688
      %v690 = vpop.f32.mrb[0].mxu0
      %v691 = vpop.f32.mrb[0].mxu0
      %v692 = vpop.f32.mrb[0].mxu0
      %693 = vdwg.mxu0
      %v694 = vld [vmem:[%s593] sm:$0xff]
      %v695 = vld [vmem:[%s593 + $0x8] sm:$0xff]
      %v696 = vld [vmem:[%s593 + $0x10] sm:$0xff]
      %v697 = vadd.f32 %v694, %v681
      %v698 = vadd.f32 %v695, %v684
      %v699 = vadd.f32 %v696, %v689
      %v700 = vld [vmem:[%s2] sm:$0xff]
      %v701 = vld [vmem:[%s2 + $0x8] sm:$0xff]
      %v702 = vld [vmem:[%s2 + $0x10] sm:$0xff]
      %v703 = vld [vmem:[%s4] sm:$0x1]
      %v704 = vld [vmem:[%s5] sm:$0x1]
      %vm705 = vcmask 261120
      %v706 = vsel %vm705, %v697, 0.0
      %707 = vadd.xlane.f32.xlu0 %v706
      %v708 = vpop.xlane.xlu0 %707
      %v709 = vsel %vm705, %v698, 0.0
      %710 = vadd.xlane.f32.xlu0 %v709
      %v711 = vpop.xlane.xlu0 %710
      %v712 = vsel %vm705, %v699, 0.0
      %713 = vadd.xlane.f32.xlu0 %v712
      %v714 = vpop.xlane.xlu0 %713
      %v715 = vrcp.pop 32.0
      %v716 = vmul.f32 %v708, %v715
      %v717 = vmul.f32 %v711, %v715
      %v718 = vmul.f32 %v714, %v715
      %v719 = vsub.f32 %v697, %v716
      %v720 = vsub.f32 %v698, %v717
      %v721 = vsub.f32 %v699, %v718
      %v722 = vmul.f32 %v719, %v719
      %v723 = vmul.f32 %v720, %v720
      %v724 = vmul.f32 %v721, %v721
      %v725 = vsel %vm705, %v722, 0.0
      %726 = vadd.xlane.f32.xlu0 %v725
      %v727 = vpop.xlane.xlu0 %726
      %v728 = vsel %vm705, %v723, 0.0
      %729 = vadd.xlane.f32.xlu0 %v728
      %v730 = vpop.xlane.xlu0 %729
      %v731 = vsel %vm705, %v724, 0.0
      %732 = vadd.xlane.f32.xlu0 %v731
      %v733 = vpop.xlane.xlu0 %732
      %v734 = vmul.f32 %v727, %v715
      %v735 = vmul.f32 %v730, %v715
      %v736 = vmul.f32 %v733, %v715
      %v737 = vadd.f32 %v734, 1e-06
      %v738 = vadd.f32 %v735, 1e-06
      %v739 = vadd.f32 %v736, 1e-06
      %v740 = vrsqrt.pop %v737
      %v741 = vrsqrt.pop %v738
      %v742 = vrsqrt.pop %v739
      %v743 = vmul.f32 %v719, %v740
      %v744 = vmul.f32 %v720, %v741
      %v745 = vmul.f32 %v721, %v742
      %v747 = vlaneseq
      %v748 = vshrl.u32 %v747, 7
      %v749 = vsub.s32 0, %v748
      %v750 = vrot.slane %v703, %v749
      %v752 = vmul.f32 %v743, %v750
      %v753 = vmul.f32 %v744, %v750
      %v754 = vmul.f32 %v745, %v750
      %v756 = vlaneseq
      %v757 = vshrl.u32 %v756, 7
      %v758 = vsub.s32 0, %v757
      %v759 = vrot.slane %v704, %v758
      %v761 = vadd.f32 %v752, %v759
      %v762 = vadd.f32 %v753, %v759
      %v763 = vadd.f32 %v754, %v759
      %v764 = vpack.c.bf16 %v762, %v761
      %v765 = vpack.c.bf16 %v763, %v763
      %v766 = vld [vmem:[%s6] sm:$0xf]
      %v767 = vld [vmem:[%s6 + $0x4] sm:$0xf]
      %v768 = vld [vmem:[%s6 + $0x8] sm:$0xf]
      %v769 = vld [vmem:[%s6 + $0xc] sm:$0xf]
      %v770 = vld [vmem:[%s7] sm:$0x1]
      %v772 = vlaneseq
      %v773 = vshrl.u32 %v772, 7
      %v774 = vsub.s32 0, %v773
      %v775 = vrot.slane %v770, %v774
      %v781 = vunpack.c.l.b16 %v766
      %v782 = vunpack.c.l.b16 %v767
      %v783 = vunpack.c.l.b16 %v768
      %v784 = vunpack.c.l.b16 %v769
      %v785 = vpack.c.b16 %v782, %v781
      %v786 = vpack.c.b16 %v784, %v783
      %v790 = vsel %vm705, %v764, 0
      %v793 = vsel %vm705, %v765, 0
      %795 = vmatprep.subr.bf16.mxu0 0
      %796 = vmatpush1.bf16.msra.mxu0 %v785
      %797 = vmatprep.subr.bf16.mxu0 0
      %798 = vmatpush1.bf16.msra.mxu0 %v786
      %799 = vmatprep.subr.bf16.mxu0 0
      %800 = vmatpush1.bf16.msra.mxu0 0
      %801 = vmatprep.subr.bf16.mxu0 0
      %802 = vmatpush1.bf16.msra.mxu0 0
      %803 = vmatprep.subr.bf16.mxu0 0
      %804 = vmatpush1.bf16.msra.mxu0 0
      %805 = vmatprep.subr.bf16.mxu0 0
      %806 = vmatpush1.bf16.msra.mxu0 0
      %807 = vmatprep.subr.bf16.mxu0 0
      %808 = vmatpush1.bf16.msra.mxu0 0
      %809 = vmatprep.subr.bf16.mxu0 0
      %810 = vmatpush1.bf16.msra.mxu0 0
      %811 = vmatprep.subr.bf16.mxu0 0
      %812 = vmatpush1.bf16.msra.mxu0 0
      %813 = vmatprep.subr.bf16.mxu0 0
      %814 = vmatpush1.bf16.msra.mxu0 0
      %815 = vmatprep.subr.bf16.mxu0 0
      %816 = vmatpush1.bf16.msra.mxu0 0
      %817 = vmatprep.subr.bf16.mxu0 0
      %818 = vmatpush1.bf16.msra.mxu0 0
      %819 = vmatprep.subr.bf16.mxu0 0
      %820 = vmatpush1.bf16.msra.mxu0 0
      %821 = vmatprep.subr.bf16.mxu0 0
      %822 = vmatpush1.bf16.msra.mxu0 0
      %823 = vmatprep.subr.bf16.mxu0 0
      %824 = vmatpush1.bf16.msra.mxu0 0
      %825 = vmatprep.subr.bf16.mxu0 0
      %826 = vmatpush1.bf16.msra.mxu0 0
      %827 = vmatprep.mubr.bf16.mxu0 0
      %828 = vmatmul.mubr.bf16.gmra.mrb[0].mxu0 %v790
      %v829 = vpop.f32.mrb[0].mxu0
      %v830 = vadd.f32 %v775, %v829
      %v831 = vpop.f32.mrb[0].mxu0
      %v832 = vpop.f32.mrb[0].mxu0
      %v833 = vadd.f32 %v775, %v832
      %v834 = vpop.f32.mrb[0].mxu0
      %835 = vmatprep.mubr.bf16.mxu0 0
      %836 = vmatmul.mubr.bf16.gmra.mrb[0].mxu0 %v793
      %v837 = vpop.f32.mrb[0].mxu0
      %v838 = vadd.f32 %v775, %v837
      %v839 = vpop.f32.mrb[0].mxu0
      %v840 = vpop.f32.mrb[0].mxu0
      %v841 = vpop.f32.mrb[0].mxu0
      %842 = vdwg.mxu0
      %v843 = vpack.c.bf16 %v833, %v830
      %v844 = vpack.c.bf16 %v838, %v838
      %847 = vrot.lane.b32.xlu0 %v843, 96
      %v848 = vpop.permute.xlu0 %847
      %849 = vrot.lane.b32.xlu0 %v844, 96
      %v850 = vpop.permute.xlu0 %849
      %vm851 = vcmask 64512
      %v853 = vsel %vm851, %v843, 0
      %v856 = vsel %vm851, %v844, 0
      %v859 = vsel %vm851, %v848, 0
      %v862 = vsel %vm851, %v850, 0
      %864 = vmatprep.subr.bf16.mxu0 0
      %865 = vmatpush1.bf16.xpose.msra.mxu0 %v859
      %866 = vmatprep.subr.bf16.mxu0 0
      %867 = vmatpush1.bf16.xpose.msra.mxu0 %v862
      %868 = vmatprep.subr.bf16.mxu0 0
      %869 = vmatpush1.bf16.xpose.msra.mxu0 0
      %870 = vmatprep.subr.bf16.mxu0 0
      %871 = vmatpush1.bf16.xpose.msra.mxu0 0
      %872 = vmatprep.subr.bf16.mxu0 0
      %873 = vmatpush1.bf16.xpose.msra.mxu0 0
      %874 = vmatprep.subr.bf16.mxu0 0
      %875 = vmatpush1.bf16.xpose.msra.mxu0 0
      %876 = vmatprep.subr.bf16.mxu0 0
      %877 = vmatpush1.bf16.xpose.msra.mxu0 0
      %878 = vmatprep.subr.bf16.mxu0 0
      %879 = vmatpush1.bf16.xpose.msra.mxu0 0
      %880 = vmatprep.subr.bf16.mxu0 0
      %881 = vmatpush1.bf16.xpose.msra.mxu0 0
      %882 = vmatprep.subr.bf16.mxu0 0
      %883 = vmatpush1.bf16.xpose.msra.mxu0 0
      %884 = vmatprep.subr.bf16.mxu0 0
      %885 = vmatpush1.bf16.xpose.msra.mxu0 0
      %886 = vmatprep.subr.bf16.mxu0 0
      %887 = vmatpush1.bf16.xpose.msra.mxu0 0
      %888 = vmatprep.subr.bf16.mxu0 0
      %889 = vmatpush1.bf16.xpose.msra.mxu0 0
      %890 = vmatprep.subr.bf16.mxu0 0
      %891 = vmatpush1.bf16.xpose.msra.mxu0 0
      %892 = vmatprep.subr.bf16.mxu0 0
      %893 = vmatpush1.bf16.xpose.msra.mxu0 0
      %894 = vmatprep.subr.bf16.mxu0 0
      %895 = vmatpush1.bf16.xpose.msra.mxu0 0
      %896 = vmatprep.mubr.bf16.mxu0 0
      %897 = vmatmul.mubr.bf16.gmra.mrb[0].mxu0 %v853
      %v898 = vpop.f32.mrb[0].mxu0
      %v899 = vadd.f32 %v700, %v898
      %v900 = vpop.f32.mrb[0].mxu0
      %v901 = vpop.f32.mrb[0].mxu0
      %v902 = vadd.f32 %v701, %v901
      %v903 = vpop.f32.mrb[0].mxu0
      %904 = vmatprep.mubr.bf16.mxu0 0
      %905 = vmatmul.mubr.bf16.gmra.mrb[0].mxu0 %v856
      %v906 = vpop.f32.mrb[0].mxu0
      %v907 = vadd.f32 %v702, %v906
      %v908 = vpop.f32.mrb[0].mxu0
      %v909 = vpop.f32.mrb[0].mxu0
      %v910 = vpop.f32.mrb[0].mxu0
      %911 = vdwg.mxu0
      %vm912 = vcmask 195584
      %v913 = vsel %vm912, %v899, -inf
      %914 = vmax.xlane.f32.xlu0 %v913
      %v915 = vpop.xlane.xlu0 %914
      %v916 = vsel %vm912, %v902, -inf
      %917 = vmax.xlane.f32.xlu0 %v916
      %v918 = vpop.xlane.xlu0 %917
      %v919 = vsel %vm912, %v907, -inf
      %920 = vmax.xlane.f32.xlu0 %v919
      %v921 = vpop.xlane.xlu0 %920
      %v922 = vsub.f32 %v899, %v915
      %v923 = vsub.f32 %v902, %v918
      %v924 = vsub.f32 %v907, %v921
      %v925 = vmul.f32 %v922, 1.442695
      %v926 = vpow.pop %v925
      %v927 = vmul.f32 %v923, 1.442695
      %v928 = vpow.pop %v927
      %v929 = vmul.f32 %v924, 1.442695
      %v930 = vpow.pop %v929
      %v931 = vsel %vm912, %v926, 0.0
      %932 = vadd.xlane.f32.xlu0 %v931
      %v933 = vpop.xlane.xlu0 %932
      %v934 = vsel %vm912, %v928, 0.0
      %935 = vadd.xlane.f32.xlu0 %v934
      %v936 = vpop.xlane.xlu0 %935
      %v937 = vsel %vm912, %v930, 0.0
      %938 = vadd.xlane.f32.xlu0 %v937
      %v939 = vpop.xlane.xlu0 %938
      %v940 = vrcp.pop %v933
      %v941 = vmul.f32 %v926, %v940
      %v942 = vrcp.pop %v936
      %v943 = vmul.f32 %v928, %v942
      %v944 = vrcp.pop %v939
      %v945 = vmul.f32 %v930, %v944
      %v946 = vpack.c.bf16 %v943, %v941
      %v947 = vpack.c.bf16 %v945, %v945
      %948 = vrot.lane.b32.xlu0 %v843, 64
      %v949 = vpop.permute.xlu0 %948
      %950 = vrot.lane.b32.xlu0 %v844, 64
      %v951 = vpop.permute.xlu0 %950
      %v954 = vsel %vm912, %v946, 0
      %v957 = vsel %vm912, %v947, 0
      %vm959 = vcmask 1043456
      %v961 = vsel %vm959, %v951, 0
      %963 = vmatprep.subr.bf16.mxu0 0
      %964 = vmatpush1.bf16.msra.mxu0 %v949
      %965 = vmatprep.subr.bf16.mxu0 0
      %966 = vmatpush1.bf16.msra.mxu0 %v961
      %967 = vmatprep.subr.bf16.mxu0 0
      %968 = vmatpush1.bf16.msra.mxu0 0
      %969 = vmatprep.subr.bf16.mxu0 0
      %970 = vmatpush1.bf16.msra.mxu0 0
      %971 = vmatprep.subr.bf16.mxu0 0
      %972 = vmatpush1.bf16.msra.mxu0 0
      %973 = vmatprep.subr.bf16.mxu0 0
      %974 = vmatpush1.bf16.msra.mxu0 0
      %975 = vmatprep.subr.bf16.mxu0 0
      %976 = vmatpush1.bf16.msra.mxu0 0
      %977 = vmatprep.subr.bf16.mxu0 0
      %978 = vmatpush1.bf16.msra.mxu0 0
      %979 = vmatprep.subr.bf16.mxu0 0
      %980 = vmatpush1.bf16.msra.mxu0 0
      %981 = vmatprep.subr.bf16.mxu0 0
      %982 = vmatpush1.bf16.msra.mxu0 0
      %983 = vmatprep.subr.bf16.mxu0 0
      %984 = vmatpush1.bf16.msra.mxu0 0
      %985 = vmatprep.subr.bf16.mxu0 0
      %986 = vmatpush1.bf16.msra.mxu0 0
      %987 = vmatprep.subr.bf16.mxu0 0
      %988 = vmatpush1.bf16.msra.mxu0 0
      %989 = vmatprep.subr.bf16.mxu0 0
      %990 = vmatpush1.bf16.msra.mxu0 0
      %991 = vmatprep.subr.bf16.mxu0 0
      %992 = vmatpush1.bf16.msra.mxu0 0
      %993 = vmatprep.subr.bf16.mxu0 0
      %994 = vmatpush1.bf16.msra.mxu0 0
      %995 = vmatprep.mubr.bf16.mxu0 0
      %996 = vmatmul.mubr.bf16.gmra.mrb[0].mxu0 %v954
      %v997 = vpop.f32.mrb[0].mxu0
      %v998 = vadd.f32 0.0, %v997
      %v999 = vpop.f32.mrb[0].mxu0
      %v1000 = vpop.f32.mrb[0].mxu0
      %v1001 = vadd.f32 0.0, %v1000
      %v1002 = vpop.f32.mrb[0].mxu0
      %1003 = vmatprep.mubr.bf16.mxu0 0
      %1004 = vmatmul.mubr.bf16.gmra.mrb[0].mxu0 %v957
      %v1005 = vpop.f32.mrb[0].mxu0
      %v1006 = vadd.f32 0.0, %v1005
      %v1007 = vpop.f32.mrb[0].mxu0
      %v1008 = vpop.f32.mrb[0].mxu0
      %v1009 = vpop.f32.mrb[0].mxu0
      %1010 = vdwg.mxu0
      %1011 = vrot.lane.b32.xlu0 %v843, 120
      %v1012 = vpop.permute.xlu0 %1011
      %1013 = vrot.lane.b32.xlu0 %v844, 120
      %v1014 = vpop.permute.xlu0 %1013
      %1015 = vrot.lane.b32.xlu0 %v843, 88
      %v1016 = vpop.permute.xlu0 %1015
      %1017 = vrot.lane.b32.xlu0 %v844, 88
      %v1018 = vpop.permute.xlu0 %1017
      %v1020 = vsel %vm851, %v1012, 0
      %v1023 = vsel %vm851, %v1014, 0
      %v1026 = vsel %vm851, %v1016, 0
      %v1029 = vsel %vm851, %v1018, 0
      %1031 = vmatprep.subr.bf16.mxu0 0
      %1032 = vmatpush1.bf16.xpose.msra.mxu0 %v1026
      %1033 = vmatprep.subr.bf16.mxu0 0
      %1034 = vmatpush1.bf16.xpose.msra.mxu0 %v1029
      %1035 = vmatprep.subr.bf16.mxu0 0
      %1036 = vmatpush1.bf16.xpose.msra.mxu0 0
      %1037 = vmatprep.subr.bf16.mxu0 0
      %1038 = vmatpush1.bf16.xpose.msra.mxu0 0
      %1039 = vmatprep.subr.bf16.mxu0 0
      %1040 = vmatpush1.bf16.xpose.msra.mxu0 0
      %1041 = vmatprep.subr.bf16.mxu0 0
      %1042 = vmatpush1.bf16.xpose.msra.mxu0 0
      %1043 = vmatprep.subr.bf16.mxu0 0
      %1044 = vmatpush1.bf16.xpose.msra.mxu0 0
      %1045 = vmatprep.subr.bf16.mxu0 0
      %1046 = vmatpush1.bf16.xpose.msra.mxu0 0
      %1047 = vmatprep.subr.bf16.mxu0 0
      %1048 = vmatpush1.bf16.xpose.msra.mxu0 0
      %1049 = vmatprep.subr.bf16.mxu0 0
      %1050 = vmatpush1.bf16.xpose.msra.mxu0 0
      %1051 = vmatprep.subr.bf16.mxu0 0
      %1052 = vmatpush1.bf16.xpose.msra.mxu0 0
      %1053 = vmatprep.subr.bf16.mxu0 0
      %1054 = vmatpush1.bf16.xpose.msra.mxu0 0
      %1055 = vmatprep.subr.bf16.mxu0 0
      %1056 = vmatpush1.bf16.xpose.msra.mxu0 0
      %1057 = vmatprep.subr.bf16.mxu0 0
      %1058 = vmatpush1.bf16.xpose.msra.mxu0 0
      %1059 = vmatprep.subr.bf16.mxu0 0
      %1060 = vmatpush1.bf16.xpose.msra.mxu0 0
      %1061 = vmatprep.subr.bf16.mxu0 0
      %1062 = vmatpush1.bf16.xpose.msra.mxu0 0
      %1063 = vmatprep.mubr.bf16.mxu0 0
      %1064 = vmatmul.mubr.bf16.gmra.mrb[0].mxu0 %v1020
      %v1065 = vpop.f32.mrb[0].mxu0
      %v1066 = vadd.f32 %v700, %v1065
      %v1067 = vpop.f32.mrb[0].mxu0
      %v1068 = vpop.f32.mrb[0].mxu0
      %v1069 = vadd.f32 %v701, %v1068
      %v1070 = vpop.f32.mrb[0].mxu0
      %1071 = vmatprep.mubr.bf16.mxu0 0
      %1072 = vmatmul.mubr.bf16.gmra.mrb[0].mxu0 %v1023
      %v1073 = vpop.f32.mrb[0].mxu0
      %v1074 = vadd.f32 %v702, %v1073
      %v1075 = vpop.f32.mrb[0].mxu0
      %v1076 = vpop.f32.mrb[0].mxu0
      %v1077 = vpop.f32.mrb[0].mxu0
      %1078 = vdwg.mxu0
      %v1079 = vsel %vm912, %v1066, -inf
      %1080 = vmax.xlane.f32.xlu0 %v1079
      %v1081 = vpop.xlane.xlu0 %1080
      %v1082 = vsel %vm912, %v1069, -inf
      %1083 = vmax.xlane.f32.xlu0 %v1082
      %v1084 = vpop.xlane.xlu0 %1083
      %v1085 = vsel %vm912, %v1074, -inf
      %1086 = vmax.xlane.f32.xlu0 %v1085
      %v1087 = vpop.xlane.xlu0 %1086
      %v1088 = vsub.f32 %v1066, %v1081
      %v1089 = vsub.f32 %v1069, %v1084
      %v1090 = vsub.f32 %v1074, %v1087
      %v1091 = vmul.f32 %v1088, 1.442695
      %v1092 = vpow.pop %v1091
      %v1093 = vmul.f32 %v1089, 1.442695
      %v1094 = vpow.pop %v1093
      %v1095 = vmul.f32 %v1090, 1.442695
      %v1096 = vpow.pop %v1095
      %v1097 = vsel %vm912, %v1092, 0.0
      %1098 = vadd.xlane.f32.xlu0 %v1097
      %v1099 = vpop.xlane.xlu0 %1098
      %v1100 = vsel %vm912, %v1094, 0.0
      %1101 = vadd.xlane.f32.xlu0 %v1100
      %v1102 = vpop.xlane.xlu0 %1101
      %v1103 = vsel %vm912, %v1096, 0.0
      %1104 = vadd.xlane.f32.xlu0 %v1103
      %v1105 = vpop.xlane.xlu0 %1104
      %v1106 = vrcp.pop %v1099
      %v1107 = vmul.f32 %v1092, %v1106
      %v1108 = vrcp.pop %v1102
      %v1109 = vmul.f32 %v1094, %v1108
      %v1110 = vrcp.pop %v1105
      %v1111 = vmul.f32 %v1096, %v1110
      %v1112 = vpack.c.bf16 %v1109, %v1107
      %v1113 = vpack.c.bf16 %v1111, %v1111
      %1114 = vrot.lane.b32.xlu0 %v843, 56
      %v1115 = vpop.permute.xlu0 %1114
      %1116 = vrot.lane.b32.xlu0 %v844, 56
      %v1117 = vpop.permute.xlu0 %1116
      %v1120 = vsel %vm912, %v1112, 0
      %v1123 = vsel %vm912, %v1113, 0
      %v1126 = vsel %vm959, %v1117, 0
      %1128 = vmatprep.subr.bf16.mxu0 0
      %1129 = vmatpush1.bf16.msra.mxu0 %v1115
      %1130 = vmatprep.subr.bf16.mxu0 0
      %1131 = vmatpush1.bf16.msra.mxu0 %v1126
      %1132 = vmatprep.subr.bf16.mxu0 0
      %1133 = vmatpush1.bf16.msra.mxu0 0
      %1134 = vmatprep.subr.bf16.mxu0 0
      %1135 = vmatpush1.bf16.msra.mxu0 0
      %1136 = vmatprep.subr.bf16.mxu0 0
      %1137 = vmatpush1.bf16.msra.mxu0 0
      %1138 = vmatprep.subr.bf16.mxu0 0
      %1139 = vmatpush1.bf16.msra.mxu0 0
      %1140 = vmatprep.subr.bf16.mxu0 0
      %1141 = vmatpush1.bf16.msra.mxu0 0
      %1142 = vmatprep.subr.bf16.mxu0 0
      %1143 = vmatpush1.bf16.msra.mxu0 0
      %1144 = vmatprep.subr.bf16.mxu0 0
      %1145 = vmatpush1.bf16.msra.mxu0 0
      %1146 = vmatprep.subr.bf16.mxu0 0
      %1147 = vmatpush1.bf16.msra.mxu0 0
      %1148 = vmatprep.subr.bf16.mxu0 0
      %1149 = vmatpush1.bf16.msra.mxu0 0
      %1150 = vmatprep.subr.bf16.mxu0 0
      %1151 = vmatpush1.bf16.msra.mxu0 0
      %1152 = vmatprep.subr.bf16.mxu0 0
      %1153 = vmatpush1.bf16.msra.mxu0 0
      %1154 = vmatprep.subr.bf16.mxu0 0
      %1155 = vmatpush1.bf16.msra.mxu0 0
      %1156 = vmatprep.subr.bf16.mxu0 0
      %1157 = vmatpush1.bf16.msra.mxu0 0
      %1158 = vmatprep.subr.bf16.mxu0 0
      %1159 = vmatpush1.bf16.msra.mxu0 0
      %1160 = vmatprep.mubr.bf16.mxu0 0
      %1161 = vmatmul.mubr.bf16.gmra.mrb[0].mxu0 %v1120
      %v1162 = vpop.f32.mrb[0].mxu0
      %v1163 = vadd.f32 0.0, %v1162
      %v1164 = vpop.f32.mrb[0].mxu0
      %v1165 = vpop.f32.mrb[0].mxu0
      %v1166 = vadd.f32 0.0, %v1165
      %v1167 = vpop.f32.mrb[0].mxu0
      %1168 = vmatprep.mubr.bf16.mxu0 0
      %1169 = vmatmul.mubr.bf16.gmra.mrb[0].mxu0 %v1123
      %v1170 = vpop.f32.mrb[0].mxu0
      %v1171 = vadd.f32 0.0, %v1170
      %v1172 = vpop.f32.mrb[0].mxu0
      %v1173 = vpop.f32.mrb[0].mxu0
      %v1174 = vpop.f32.mrb[0].mxu0
      %1175 = vdwg.mxu0
      %1176 = vrot.lane.b32.xlu0 %v843, 112
      %v1177 = vpop.permute.xlu0 %1176
      %1178 = vrot.lane.b32.xlu0 %v844, 112
      %v1179 = vpop.permute.xlu0 %1178
      %1180 = vrot.lane.b32.xlu0 %v843, 80
      %v1181 = vpop.permute.xlu0 %1180
      %1182 = vrot.lane.b32.xlu0 %v844, 80
      %v1183 = vpop.permute.xlu0 %1182
      %v1185 = vsel %vm851, %v1177, 0
      %v1188 = vsel %vm851, %v1179, 0
      %v1191 = vsel %vm851, %v1181, 0
      %v1194 = vsel %vm851, %v1183, 0
      %1196 = vmatprep.subr.bf16.mxu0 0
      %1197 = vmatpush1.bf16.xpose.msra.mxu0 %v1191
      %1198 = vmatprep.subr.bf16.mxu0 0
      %1199 = vmatpush1.bf16.xpose.msra.mxu0 %v1194
      %1200 = vmatprep.subr.bf16.mxu0 0
      %1201 = vmatpush1.bf16.xpose.msra.mxu0 0
      %1202 = vmatprep.subr.bf16.mxu0 0
      %1203 = vmatpush1.bf16.xpose.msra.mxu0 0
      %1204 = vmatprep.subr.bf16.mxu0 0
      %1205 = vmatpush1.bf16.xpose.msra.mxu0 0
      %1206 = vmatprep.subr.bf16.mxu0 0
      %1207 = vmatpush1.bf16.xpose.msra.mxu0 0
      %1208 = vmatprep.subr.bf16.mxu0 0
      %1209 = vmatpush1.bf16.xpose.msra.mxu0 0
      %1210 = vmatprep.subr.bf16.mxu0 0
      %1211 = vmatpush1.bf16.xpose.msra.mxu0 0
      %1212 = vmatprep.subr.bf16.mxu0 0
      %1213 = vmatpush1.bf16.xpose.msra.mxu0 0
      %1214 = vmatprep.subr.bf16.mxu0 0
      %1215 = vmatpush1.bf16.xpose.msra.mxu0 0
      %1216 = vmatprep.subr.bf16.mxu0 0
      %1217 = vmatpush1.bf16.xpose.msra.mxu0 0
      %1218 = vmatprep.subr.bf16.mxu0 0
      %1219 = vmatpush1.bf16.xpose.msra.mxu0 0
      %1220 = vmatprep.subr.bf16.mxu0 0
      %1221 = vmatpush1.bf16.xpose.msra.mxu0 0
      %1222 = vmatprep.subr.bf16.mxu0 0
      %1223 = vmatpush1.bf16.xpose.msra.mxu0 0
      %1224 = vmatprep.subr.bf16.mxu0 0
      %1225 = vmatpush1.bf16.xpose.msra.mxu0 0
      %1226 = vmatprep.subr.bf16.mxu0 0
      %1227 = vmatpush1.bf16.xpose.msra.mxu0 0
      %1228 = vmatprep.mubr.bf16.mxu0 0
      %1229 = vmatmul.mubr.bf16.gmra.mrb[0].mxu0 %v1185
      %v1230 = vpop.f32.mrb[0].mxu0
      %v1231 = vadd.f32 %v700, %v1230
      %v1232 = vpop.f32.mrb[0].mxu0
      %v1233 = vpop.f32.mrb[0].mxu0
      %v1234 = vadd.f32 %v701, %v1233
      %v1235 = vpop.f32.mrb[0].mxu0
      %1236 = vmatprep.mubr.bf16.mxu0 0
      %1237 = vmatmul.mubr.bf16.gmra.mrb[0].mxu0 %v1188
      %v1238 = vpop.f32.mrb[0].mxu0
      %v1239 = vadd.f32 %v702, %v1238
      %v1240 = vpop.f32.mrb[0].mxu0
      %v1241 = vpop.f32.mrb[0].mxu0
      %v1242 = vpop.f32.mrb[0].mxu0
      %1243 = vdwg.mxu0
      %v1244 = vsel %vm912, %v1231, -inf
      %1245 = vmax.xlane.f32.xlu0 %v1244
      %v1246 = vpop.xlane.xlu0 %1245
      %v1247 = vsel %vm912, %v1234, -inf
      %1248 = vmax.xlane.f32.xlu0 %v1247
      %v1249 = vpop.xlane.xlu0 %1248
      %v1250 = vsel %vm912, %v1239, -inf
      %1251 = vmax.xlane.f32.xlu0 %v1250
      %v1252 = vpop.xlane.xlu0 %1251
      %v1253 = vsub.f32 %v1231, %v1246
      %v1254 = vsub.f32 %v1234, %v1249
      %v1255 = vsub.f32 %v1239, %v1252
      %v1256 = vmul.f32 %v1253, 1.442695
      %v1257 = vpow.pop %v1256
      %v1258 = vmul.f32 %v1254, 1.442695
      %v1259 = vpow.pop %v1258
      %v1260 = vmul.f32 %v1255, 1.442695
      %v1261 = vpow.pop %v1260
      %v1262 = vsel %vm912, %v1257, 0.0
      %1263 = vadd.xlane.f32.xlu0 %v1262
      %v1264 = vpop.xlane.xlu0 %1263
      %v1265 = vsel %vm912, %v1259, 0.0
      %1266 = vadd.xlane.f32.xlu0 %v1265
      %v1267 = vpop.xlane.xlu0 %1266
      %v1268 = vsel %vm912, %v1261, 0.0
      %1269 = vadd.xlane.f32.xlu0 %v1268
      %v1270 = vpop.xlane.xlu0 %1269
      %v1271 = vrcp.pop %v1264
      %v1272 = vmul.f32 %v1257, %v1271
      %v1273 = vrcp.pop %v1267
      %v1274 = vmul.f32 %v1259, %v1273
      %v1275 = vrcp.pop %v1270
      %v1276 = vmul.f32 %v1261, %v1275
      %v1277 = vpack.c.bf16 %v1274, %v1272
      %v1278 = vpack.c.bf16 %v1276, %v1276
      %1279 = vrot.lane.b32.xlu0 %v843, 48
      %v1280 = vpop.permute.xlu0 %1279
      %1281 = vrot.lane.b32.xlu0 %v844, 48
      %v1282 = vpop.permute.xlu0 %1281
      %v1285 = vsel %vm912, %v1277, 0
      %v1288 = vsel %vm912, %v1278, 0
      %v1291 = vsel %vm959, %v1282, 0
      %1293 = vmatprep.subr.bf16.mxu0 0
      %1294 = vmatpush1.bf16.msra.mxu0 %v1280
      %1295 = vmatprep.subr.bf16.mxu0 0
      %1296 = vmatpush1.bf16.msra.mxu0 %v1291
      %1297 = vmatprep.subr.bf16.mxu0 0
      %1298 = vmatpush1.bf16.msra.mxu0 0
      %1299 = vmatprep.subr.bf16.mxu0 0
      %1300 = vmatpush1.bf16.msra.mxu0 0
      %1301 = vmatprep.subr.bf16.mxu0 0
      %1302 = vmatpush1.bf16.msra.mxu0 0
      %1303 = vmatprep.subr.bf16.mxu0 0
      %1304 = vmatpush1.bf16.msra.mxu0 0
      %1305 = vmatprep.subr.bf16.mxu0 0
      %1306 = vmatpush1.bf16.msra.mxu0 0
      %1307 = vmatprep.subr.bf16.mxu0 0
      %1308 = vmatpush1.bf16.msra.mxu0 0
      %1309 = vmatprep.subr.bf16.mxu0 0
      %1310 = vmatpush1.bf16.msra.mxu0 0
      %1311 = vmatprep.subr.bf16.mxu0 0
      %1312 = vmatpush1.bf16.msra.mxu0 0
      %1313 = vmatprep.subr.bf16.mxu0 0
      %1314 = vmatpush1.bf16.msra.mxu0 0
      %1315 = vmatprep.subr.bf16.mxu0 0
      %1316 = vmatpush1.bf16.msra.mxu0 0
      %1317 = vmatprep.subr.bf16.mxu0 0
      %1318 = vmatpush1.bf16.msra.mxu0 0
      %1319 = vmatprep.subr.bf16.mxu0 0
      %1320 = vmatpush1.bf16.msra.mxu0 0
      %1321 = vmatprep.subr.bf16.mxu0 0
      %1322 = vmatpush1.bf16.msra.mxu0 0
      %1323 = vmatprep.subr.bf16.mxu0 0
      %1324 = vmatpush1.bf16.msra.mxu0 0
      %1325 = vmatprep.mubr.bf16.mxu0 0
      %1326 = vmatmul.mubr.bf16.gmra.mrb[0].mxu0 %v1285
      %v1327 = vpop.f32.mrb[0].mxu0
      %v1328 = vadd.f32 0.0, %v1327
      %v1329 = vpop.f32.mrb[0].mxu0
      %v1330 = vpop.f32.mrb[0].mxu0
      %v1331 = vadd.f32 0.0, %v1330
      %v1332 = vpop.f32.mrb[0].mxu0
      %1333 = vmatprep.mubr.bf16.mxu0 0
      %1334 = vmatmul.mubr.bf16.gmra.mrb[0].mxu0 %v1288
      %v1335 = vpop.f32.mrb[0].mxu0
      %v1336 = vadd.f32 0.0, %v1335
      %v1337 = vpop.f32.mrb[0].mxu0
      %v1338 = vpop.f32.mrb[0].mxu0
      %v1339 = vpop.f32.mrb[0].mxu0
      %1340 = vdwg.mxu0
      %1341 = vrot.lane.b32.xlu0 %v843, 104
      %v1342 = vpop.permute.xlu0 %1341
      %1343 = vrot.lane.b32.xlu0 %v844, 104
      %v1344 = vpop.permute.xlu0 %1343
      %1345 = vrot.lane.b32.xlu0 %v843, 72
      %v1346 = vpop.permute.xlu0 %1345
      %1347 = vrot.lane.b32.xlu0 %v844, 72
      %v1348 = vpop.permute.xlu0 %1347
      %v1350 = vsel %vm851, %v1342, 0
      %v1353 = vsel %vm851, %v1344, 0
      %v1356 = vsel %vm851, %v1346, 0
      %v1359 = vsel %vm851, %v1348, 0
      %1361 = vmatprep.subr.bf16.mxu0 0
      %1362 = vmatpush1.bf16.xpose.msra.mxu0 %v1356
      %1363 = vmatprep.subr.bf16.mxu0 0
      %1364 = vmatpush1.bf16.xpose.msra.mxu0 %v1359
      %1365 = vmatprep.subr.bf16.mxu0 0
      %1366 = vmatpush1.bf16.xpose.msra.mxu0 0
      %1367 = vmatprep.subr.bf16.mxu0 0
      %1368 = vmatpush1.bf16.xpose.msra.mxu0 0
      %1369 = vmatprep.subr.bf16.mxu0 0
      %1370 = vmatpush1.bf16.xpose.msra.mxu0 0
      %1371 = vmatprep.subr.bf16.mxu0 0
      %1372 = vmatpush1.bf16.xpose.msra.mxu0 0
      %1373 = vmatprep.subr.bf16.mxu0 0
      %1374 = vmatpush1.bf16.xpose.msra.mxu0 0
      %1375 = vmatprep.subr.bf16.mxu0 0
      %1376 = vmatpush1.bf16.xpose.msra.mxu0 0
      %1377 = vmatprep.subr.bf16.mxu0 0
      %1378 = vmatpush1.bf16.xpose.msra.mxu0 0
      %1379 = vmatprep.subr.bf16.mxu0 0
      %1380 = vmatpush1.bf16.xpose.msra.mxu0 0
      %1381 = vmatprep.subr.bf16.mxu0 0
      %1382 = vmatpush1.bf16.xpose.msra.mxu0 0
      %1383 = vmatprep.subr.bf16.mxu0 0
      %1384 = vmatpush1.bf16.xpose.msra.mxu0 0
      %1385 = vmatprep.subr.bf16.mxu0 0
      %1386 = vmatpush1.bf16.xpose.msra.mxu0 0
      %1387 = vmatprep.subr.bf16.mxu0 0
      %1388 = vmatpush1.bf16.xpose.msra.mxu0 0
      %1389 = vmatprep.subr.bf16.mxu0 0
      %1390 = vmatpush1.bf16.xpose.msra.mxu0 0
      %1391 = vmatprep.subr.bf16.mxu0 0
      %1392 = vmatpush1.bf16.xpose.msra.mxu0 0
      %1393 = vmatprep.mubr.bf16.mxu0 0
      %1394 = vmatmul.mubr.bf16.gmra.mrb[0].mxu0 %v1350
      %v1395 = vpop.f32.mrb[0].mxu0
      %v1396 = vadd.f32 %v700, %v1395
      %v1397 = vpop.f32.mrb[0].mxu0
      %v1398 = vpop.f32.mrb[0].mxu0
      %v1399 = vadd.f32 %v701, %v1398
      %v1400 = vpop.f32.mrb[0].mxu0
      %1401 = vmatprep.mubr.bf16.mxu0 0
      %1402 = vmatmul.mubr.bf16.gmra.mrb[0].mxu0 %v1353
      %v1403 = vpop.f32.mrb[0].mxu0
      %v1404 = vadd.f32 %v702, %v1403
      %v1405 = vpop.f32.mrb[0].mxu0
      %v1406 = vpop.f32.mrb[0].mxu0
      %v1407 = vpop.f32.mrb[0].mxu0
      %1408 = vdwg.mxu0
      %v1409 = vsel %vm912, %v1396, -inf
      %1410 = vmax.xlane.f32.xlu0 %v1409
      %v1411 = vpop.xlane.xlu0 %1410
      %v1412 = vsel %vm912, %v1399, -inf
      %1413 = vmax.xlane.f32.xlu0 %v1412
      %v1414 = vpop.xlane.xlu0 %1413
      %v1415 = vsel %vm912, %v1404, -inf
      %1416 = vmax.xlane.f32.xlu0 %v1415
      %v1417 = vpop.xlane.xlu0 %1416
      %v1418 = vsub.f32 %v1396, %v1411
      %v1419 = vsub.f32 %v1399, %v1414
      %v1420 = vsub.f32 %v1404, %v1417
      %v1421 = vmul.f32 %v1418, 1.442695
      %v1422 = vpow.pop %v1421
      %v1423 = vmul.f32 %v1419, 1.442695
      %v1424 = vpow.pop %v1423
      %v1425 = vmul.f32 %v1420, 1.442695
      %v1426 = vpow.pop %v1425
      %v1427 = vsel %vm912, %v1422, 0.0
      %1428 = vadd.xlane.f32.xlu0 %v1427
      %v1429 = vpop.xlane.xlu0 %1428
      %v1430 = vsel %vm912, %v1424, 0.0
      %1431 = vadd.xlane.f32.xlu0 %v1430
      %v1432 = vpop.xlane.xlu0 %1431
      %v1433 = vsel %vm912, %v1426, 0.0
      %1434 = vadd.xlane.f32.xlu0 %v1433
      %v1435 = vpop.xlane.xlu0 %1434
      %v1436 = vrcp.pop %v1429
      %v1437 = vmul.f32 %v1422, %v1436
      %v1438 = vrcp.pop %v1432
      %v1439 = vmul.f32 %v1424, %v1438
      %v1440 = vrcp.pop %v1435
      %v1441 = vmul.f32 %v1426, %v1440
      %v1442 = vpack.c.bf16 %v1439, %v1437
      %v1443 = vpack.c.bf16 %v1441, %v1441
      %1444 = vrot.lane.b32.xlu0 %v843, 40
      %v1445 = vpop.permute.xlu0 %1444
      %1446 = vrot.lane.b32.xlu0 %v844, 40
      %v1447 = vpop.permute.xlu0 %1446
      %v1450 = vsel %vm912, %v1442, 0
      %v1453 = vsel %vm912, %v1443, 0
      %v1456 = vsel %vm959, %v1447, 0
      %1458 = vmatprep.subr.bf16.mxu0 0
      %1459 = vmatpush1.bf16.msra.mxu0 %v1445
      %1460 = vmatprep.subr.bf16.mxu0 0
      %1461 = vmatpush1.bf16.msra.mxu0 %v1456
      %1462 = vmatprep.subr.bf16.mxu0 0
      %1463 = vmatpush1.bf16.msra.mxu0 0
      %1464 = vmatprep.subr.bf16.mxu0 0
      %1465 = vmatpush1.bf16.msra.mxu0 0
      %1466 = vmatprep.subr.bf16.mxu0 0
      %1467 = vmatpush1.bf16.msra.mxu0 0
      %1468 = vmatprep.subr.bf16.mxu0 0
      %1469 = vmatpush1.bf16.msra.mxu0 0
      %1470 = vmatprep.subr.bf16.mxu0 0
      %1471 = vmatpush1.bf16.msra.mxu0 0
      %1472 = vmatprep.subr.bf16.mxu0 0
      %1473 = vmatpush1.bf16.msra.mxu0 0
      %1474 = vmatprep.subr.bf16.mxu0 0
      %1475 = vmatpush1.bf16.msra.mxu0 0
      %1476 = vmatprep.subr.bf16.mxu0 0
      %1477 = vmatpush1.bf16.msra.mxu0 0
      %1478 = vmatprep.subr.bf16.mxu0 0
      %1479 = vmatpush1.bf16.msra.mxu0 0
      %1480 = vmatprep.subr.bf16.mxu0 0
      %1481 = vmatpush1.bf16.msra.mxu0 0
      %1482 = vmatprep.subr.bf16.mxu0 0
      %1483 = vmatpush1.bf16.msra.mxu0 0
      %1484 = vmatprep.subr.bf16.mxu0 0
      %1485 = vmatpush1.bf16.msra.mxu0 0
      %1486 = vmatprep.subr.bf16.mxu0 0
      %1487 = vmatpush1.bf16.msra.mxu0 0
      %1488 = vmatprep.subr.bf16.mxu0 0
      %1489 = vmatpush1.bf16.msra.mxu0 0
      %1490 = vmatprep.mubr.bf16.mxu0 0
      %1491 = vmatmul.mubr.bf16.gmra.mrb[0].mxu0 %v1450
      %v1492 = vpop.f32.mrb[0].mxu0
      %v1493 = vadd.f32 0.0, %v1492
      %v1494 = vpop.f32.mrb[0].mxu0
      %v1495 = vpop.f32.mrb[0].mxu0
      %v1496 = vadd.f32 0.0, %v1495
      %v1497 = vpop.f32.mrb[0].mxu0
      %1498 = vmatprep.mubr.bf16.mxu0 0
      %1499 = vmatmul.mubr.bf16.gmra.mrb[0].mxu0 %v1453
      %v1500 = vpop.f32.mrb[0].mxu0
      %v1501 = vadd.f32 0.0, %v1500
      %v1502 = vpop.f32.mrb[0].mxu0
      %v1503 = vpop.f32.mrb[0].mxu0
      %v1504 = vpop.f32.mrb[0].mxu0
      %1505 = vdwg.mxu0
      %1509 = vrot.lane.b32.xlu0 %v1163, 8
      %v1510 = vpop.permute.xlu0 %1509
      %1511 = vrot.lane.b32.xlu0 %v1166, 8
      %v1512 = vpop.permute.xlu0 %1511
      %1513 = vrot.lane.b32.xlu0 %v1171, 8
      %v1514 = vpop.permute.xlu0 %1513
      %1521 = vrot.lane.b32.xlu0 %v1328, 16
      %v1522 = vpop.permute.xlu0 %1521
      %1523 = vrot.lane.b32.xlu0 %v1331, 16
      %v1524 = vpop.permute.xlu0 %1523
      %1525 = vrot.lane.b32.xlu0 %v1336, 16
      %v1526 = vpop.permute.xlu0 %1525
      %1533 = vrot.lane.b32.xlu0 %v1493, 24
      %v1534 = vpop.permute.xlu0 %1533
      %1535 = vrot.lane.b32.xlu0 %v1496, 24
      %v1536 = vpop.permute.xlu0 %1535
      %1537 = vrot.lane.b32.xlu0 %v1501, 24
      %v1538 = vpop.permute.xlu0 %1537
      %v1542 = vsel %vm851, %v998, %v1510
      %v1543 = vsel %vm851, %v1001, %v1512
      %v1544 = vsel %vm851, %v1006, %v1514
      %vm1545 = vcmask 130048
      %v1546 = vsel %vm1545, %v1542, %v1522
      %v1547 = vsel %vm1545, %v1543, %v1524
      %v1548 = vsel %vm1545, %v1544, %v1526
      %v1549 = vsel %vm912, %v1546, %v1534
      %v1550 = vsel %vm912, %v1547, %v1536
      %v1551 = vsel %vm912, %v1548, %v1538
      %v1552 = vpack.c.bf16 %v1550, %v1549
      %v1553 = vpack.c.bf16 %v1551, %v1551
      %v1554 = vld [vmem:[%s8] sm:$0xf]
      %v1555 = vld [vmem:[%s8 + $0x4] sm:$0xf]
      %v1556 = vld [vmem:[%s8 + $0x8] sm:$0xf]
      %v1557 = vld [vmem:[%s8 + $0xc] sm:$0xf]
      %v1562 = vunpack.c.l.b16 %v1554
      %v1563 = vunpack.c.l.b16 %v1555
      %v1564 = vunpack.c.l.b16 %v1556
      %v1565 = vunpack.c.l.b16 %v1557
      %v1566 = vpack.c.b16 %v1563, %v1562
      %v1567 = vpack.c.b16 %v1565, %v1564
      %v1571 = vsel %vm705, %v1552, 0
      %v1574 = vsel %vm705, %v1553, 0
      %1576 = vmatprep.subr.bf16.mxu0 0
      %1577 = vmatpush1.bf16.msra.mxu0 %v1566
      %1578 = vmatprep.subr.bf16.mxu0 0
      %1579 = vmatpush1.bf16.msra.mxu0 %v1567
      %1580 = vmatprep.subr.bf16.mxu0 0
      %1581 = vmatpush1.bf16.msra.mxu0 0
      %1582 = vmatprep.subr.bf16.mxu0 0
      %1583 = vmatpush1.bf16.msra.mxu0 0
      %1584 = vmatprep.subr.bf16.mxu0 0
      %1585 = vmatpush1.bf16.msra.mxu0 0
      %1586 = vmatprep.subr.bf16.mxu0 0
      %1587 = vmatpush1.bf16.msra.mxu0 0
      %1588 = vmatprep.subr.bf16.mxu0 0
      %1589 = vmatpush1.bf16.msra.mxu0 0
      %1590 = vmatprep.subr.bf16.mxu0 0
      %1591 = vmatpush1.bf16.msra.mxu0 0
      %1592 = vmatprep.subr.bf16.mxu0 0
      %1593 = vmatpush1.bf16.msra.mxu0 0
      %1594 = vmatprep.subr.bf16.mxu0 0
      %1595 = vmatpush1.bf16.msra.mxu0 0
      %1596 = vmatprep.subr.bf16.mxu0 0
      %1597 = vmatpush1.bf16.msra.mxu0 0
      %1598 = vmatprep.subr.bf16.mxu0 0
      %1599 = vmatpush1.bf16.msra.mxu0 0
      %1600 = vmatprep.subr.bf16.mxu0 0
      %1601 = vmatpush1.bf16.msra.mxu0 0
      %1602 = vmatprep.subr.bf16.mxu0 0
      %1603 = vmatpush1.bf16.msra.mxu0 0
      %1604 = vmatprep.subr.bf16.mxu0 0
      %1605 = vmatpush1.bf16.msra.mxu0 0
      %1606 = vmatprep.subr.bf16.mxu0 0
      %1607 = vmatpush1.bf16.msra.mxu0 0
      %1608 = vmatprep.mubr.bf16.mxu0 0
      %1609 = vmatmul.mubr.bf16.gmra.mrb[0].mxu0 %v1571
      %v1610 = vpop.f32.mrb[0].mxu0
      %v1611 = vadd.f32 0.0, %v1610
      %v1612 = vpop.f32.mrb[0].mxu0
      %v1613 = vpop.f32.mrb[0].mxu0
      %v1614 = vadd.f32 0.0, %v1613
      %v1615 = vpop.f32.mrb[0].mxu0
      %1616 = vmatprep.mubr.bf16.mxu0 0
      %1617 = vmatmul.mubr.bf16.gmra.mrb[0].mxu0 %v1574
      %v1618 = vpop.f32.mrb[0].mxu0
      %v1619 = vadd.f32 0.0, %v1618
      %v1620 = vpop.f32.mrb[0].mxu0
      %v1621 = vpop.f32.mrb[0].mxu0
      %v1622 = vpop.f32.mrb[0].mxu0
      %1623 = vdwg.mxu0
      %v1624 = vadd.f32 %v697, %v1611
      %v1625 = vadd.f32 %v698, %v1614
      %v1626 = vadd.f32 %v699, %v1619
      %v1627 = vld [vmem:[%s9] sm:$0x1]
      %v1629 = vlaneseq
      %v1630 = vshrl.u32 %v1629, 7
      %v1631 = vsub.s32 0, %v1630
      %v1632 = vrot.slane %v1627, %v1631
      %v1634 = vadd.f32 %v1624, %v1632
      %v1635 = vadd.f32 %v1625, %v1632
      %v1636 = vadd.f32 %v1626, %v1632
      %v1637 = vld [vmem:[%s10] sm:$0x1]
      %v1638 = vld [vmem:[%s11] sm:$0x1]
      %v1639 = vsel %vm705, %v1634, 0.0
      %1640 = vadd.xlane.f32.xlu0 %v1639
      %v1641 = vpop.xlane.xlu0 %1640
      %v1642 = vsel %vm705, %v1635, 0.0
      %1643 = vadd.xlane.f32.xlu0 %v1642
      %v1644 = vpop.xlane.xlu0 %1643
      %v1645 = vsel %vm705, %v1636, 0.0
      %1646 = vadd.xlane.f32.xlu0 %v1645
      %v1647 = vpop.xlane.xlu0 %1646
      %v1648 = vmul.f32 %v1641, %v715
      %v1649 = vmul.f32 %v1644, %v715
      %v1650 = vmul.f32 %v1647, %v715
      %v1651 = vsub.f32 %v1634, %v1648
      %v1652 = vsub.f32 %v1635, %v1649
      %v1653 = vsub.f32 %v1636, %v1650
      %v1654 = vmul.f32 %v1651, %v1651
      %v1655 = vmul.f32 %v1652, %v1652
      %v1656 = vmul.f32 %v1653, %v1653
      %v1657 = vsel %vm705, %v1654, 0.0
      %1658 = vadd.xlane.f32.xlu0 %v1657
      %v1659 = vpop.xlane.xlu0 %1658
      %v1660 = vsel %vm705, %v1655, 0.0
      %1661 = vadd.xlane.f32.xlu0 %v1660
      %v1662 = vpop.xlane.xlu0 %1661
      %v1663 = vsel %vm705, %v1656, 0.0
      %1664 = vadd.xlane.f32.xlu0 %v1663
      %v1665 = vpop.xlane.xlu0 %1664
      %v1666 = vmul.f32 %v1659, %v715
      %v1667 = vmul.f32 %v1662, %v715
      %v1668 = vmul.f32 %v1665, %v715
      %v1669 = vadd.f32 %v1666, 1e-06
      %v1670 = vadd.f32 %v1667, 1e-06
      %v1671 = vadd.f32 %v1668, 1e-06
      %v1672 = vrsqrt.pop %v1669
      %v1673 = vrsqrt.pop %v1670
      %v1674 = vrsqrt.pop %v1671
      %v1675 = vmul.f32 %v1651, %v1672
      %v1676 = vmul.f32 %v1652, %v1673
      %v1677 = vmul.f32 %v1653, %v1674
      %v1679 = vlaneseq
      %v1680 = vshrl.u32 %v1679, 7
      %v1681 = vsub.s32 0, %v1680
      %v1682 = vrot.slane %v1637, %v1681
      %v1684 = vmul.f32 %v1675, %v1682
      %v1685 = vmul.f32 %v1676, %v1682
      %v1686 = vmul.f32 %v1677, %v1682
      %v1688 = vlaneseq
      %v1689 = vshrl.u32 %v1688, 7
      %v1690 = vsub.s32 0, %v1689
      %v1691 = vrot.slane %v1638, %v1690
      %v1693 = vadd.f32 %v1684, %v1691
      %v1694 = vadd.f32 %v1685, %v1691
      %v1695 = vadd.f32 %v1686, %v1691
      %v1696 = vpack.c.bf16 %v1694, %v1693
      %v1697 = vpack.c.bf16 %v1695, %v1695
      %v1698 = vld [vmem:[%s12] sm:$0xf]
      %v1699 = vld [vmem:[%s12 + $0x4] sm:$0xf]
      %v1700 = vld [vmem:[%s12 + $0x8] sm:$0xf]
      %v1701 = vld [vmem:[%s12 + $0xc] sm:$0xf]
      %v1702 = vld [vmem:[%s13] sm:$0x1]
      %v1704 = vlaneseq
      %v1705 = vshrl.u32 %v1704, 7
      %v1706 = vsub.s32 0, %v1705
      %v1707 = vrot.slane %v1702, %v1706
      %v1713 = vunpack.c.l.b16 %v1698
      %v1714 = vunpack.c.l.b16 %v1699
      %v1715 = vunpack.c.l.b16 %v1700
      %v1716 = vunpack.c.l.b16 %v1701
      %v1717 = vpack.c.b16 %v1714, %v1713
      %v1718 = vpack.c.b16 %v1716, %v1715
      %v1722 = vsel %vm705, %v1696, 0
      %v1725 = vsel %vm705, %v1697, 0
      %1727 = vmatprep.subr.bf16.mxu0 0
      %1728 = vmatpush1.bf16.msra.mxu0 %v1717
      %1729 = vmatprep.subr.bf16.mxu0 0
      %1730 = vmatpush1.bf16.msra.mxu0 %v1718
      %1731 = vmatprep.subr.bf16.mxu0 0
      %1732 = vmatpush1.bf16.msra.mxu0 0
      %1733 = vmatprep.subr.bf16.mxu0 0
      %1734 = vmatpush1.bf16.msra.mxu0 0
      %1735 = vmatprep.subr.bf16.mxu0 0
      %1736 = vmatpush1.bf16.msra.mxu0 0
      %1737 = vmatprep.subr.bf16.mxu0 0
      %1738 = vmatpush1.bf16.msra.mxu0 0
      %1739 = vmatprep.subr.bf16.mxu0 0
      %1740 = vmatpush1.bf16.msra.mxu0 0
      %1741 = vmatprep.subr.bf16.mxu0 0
      %1742 = vmatpush1.bf16.msra.mxu0 0
      %1743 = vmatprep.subr.bf16.mxu0 0
      %1744 = vmatpush1.bf16.msra.mxu0 0
      %1745 = vmatprep.subr.bf16.mxu0 0
      %1746 = vmatpush1.bf16.msra.mxu0 0
      %1747 = vmatprep.subr.bf16.mxu0 0
      %1748 = vmatpush1.bf16.msra.mxu0 0
      %1749 = vmatprep.subr.bf16.mxu0 0
      %1750 = vmatpush1.bf16.msra.mxu0 0
      %1751 = vmatprep.subr.bf16.mxu0 0
      %1752 = vmatpush1.bf16.msra.mxu0 0
      %1753 = vmatprep.subr.bf16.mxu0 0
      %1754 = vmatpush1.bf16.msra.mxu0 0
      %1755 = vmatprep.subr.bf16.mxu0 0
      %1756 = vmatpush1.bf16.msra.mxu0 0
      %1757 = vmatprep.subr.bf16.mxu0 0
      %1758 = vmatpush1.bf16.msra.mxu0 0
      %1759 = vmatprep.mubr.bf16.mxu0 0
      %1760 = vmatmul.mubr.bf16.gmra.mrb[0].mxu0 %v1722
      %v1761 = vpop.f32.mrb[0].mxu0
      %v1762 = vadd.f32 %v1707, %v1761
      %v1763 = vpop.f32.mrb[0].mxu0
      %v1764 = vpop.f32.mrb[0].mxu0
      %v1765 = vadd.f32 %v1707, %v1764
      %v1766 = vpop.f32.mrb[0].mxu0
      %1767 = vmatprep.mubr.bf16.mxu0 0
      %1768 = vmatmul.mubr.bf16.gmra.mrb[0].mxu0 %v1725
      %v1769 = vpop.f32.mrb[0].mxu0
      %v1770 = vadd.f32 %v1707, %v1769
      %v1771 = vpop.f32.mrb[0].mxu0
      %v1772 = vpop.f32.mrb[0].mxu0
      %v1773 = vpop.f32.mrb[0].mxu0
      %1774 = vdwg.mxu0
      %v1775 = vmul.f32 %v1762, %v1762
      %v1776 = vmul.f32 %v1765, %v1765
      %v1777 = vmul.f32 %v1770, %v1770
      %v1778 = vmul.f32 %v1762, %v1775
      %v1779 = vmul.f32 %v1765, %v1776
      %v1780 = vmul.f32 %v1770, %v1777
      %v1781 = vmul.f32 %v1778, 0.044715
      %v1782 = vmul.f32 %v1779, 0.044715
      %v1783 = vmul.f32 %v1780, 0.044715
      %v1784 = vadd.f32 %v1762, %v1781
      %v1785 = vadd.f32 %v1765, %v1782
      %v1786 = vadd.f32 %v1770, %v1783
      %v1787 = vmul.f32 %v1784, 0.7978846
      %v1788 = vmul.f32 %v1785, 0.7978846
      %v1789 = vmul.f32 %v1786, 0.7978846
      %v1790 = vtanh.pop %v1787
      %v1791 = vtanh.pop %v1788
      %v1792 = vtanh.pop %v1789
      %v1793 = vadd.f32 %v1790, 1.0
      %v1794 = vadd.f32 %v1791, 1.0
      %v1795 = vadd.f32 %v1792, 1.0
      %v1796 = vmul.f32 %v1793, 0.5
      %v1797 = vmul.f32 %v1794, 0.5
      %v1798 = vmul.f32 %v1795, 0.5
      %v1799 = vmul.f32 %v1762, %v1796
      %v1800 = vmul.f32 %v1765, %v1797
      %v1801 = vmul.f32 %v1770, %v1798
      %v1802 = vpack.c.bf16 %v1800, %v1799
      %v1803 = vpack.c.bf16 %v1801, %v1801
      %v1804 = vld [vmem:[%s14] sm:$0xf]
      %v1805 = vld [vmem:[%s14 + $0x4] sm:$0xf]
      %v1806 = vld [vmem:[%s14 + $0x8] sm:$0xf]
      %v1807 = vld [vmem:[%s14 + $0xc] sm:$0xf]
      %v1808 = vld [vmem:[%s14 + $0x10] sm:$0xf]
      %v1809 = vld [vmem:[%s14 + $0x14] sm:$0xf]
      %v1810 = vld [vmem:[%s14 + $0x18] sm:$0xf]
      %v1811 = vld [vmem:[%s14 + $0x1c] sm:$0xf]
      %v1812 = vld [vmem:[%s14 + $0x20] sm:$0xf]
      %v1813 = vld [vmem:[%s14 + $0x24] sm:$0xf]
      %v1814 = vld [vmem:[%s14 + $0x28] sm:$0xf]
      %v1815 = vld [vmem:[%s14 + $0x2c] sm:$0xf]
      %v1816 = vld [vmem:[%s14 + $0x30] sm:$0xf]
      %v1817 = vld [vmem:[%s14 + $0x34] sm:$0xf]
      %v1818 = vld [vmem:[%s14 + $0x38] sm:$0xf]
      %v1819 = vld [vmem:[%s14 + $0x3c] sm:$0xf]
      %v1820 = vld [vmem:[%s15] sm:$0x1]
      %v1822 = vlaneseq
      %v1823 = vshrl.u32 %v1822, 7
      %v1824 = vsub.s32 0, %v1823
      %v1825 = vrot.slane %v1820, %v1824
      %v1843 = vunpack.c.l.b16 %v1804
      %v1844 = vunpack.c.l.b16 %v1805
      %v1845 = vunpack.c.l.b16 %v1806
      %v1846 = vunpack.c.l.b16 %v1807
      %v1847 = vunpack.c.l.b16 %v1808
      %v1848 = vunpack.c.l.b16 %v1809
      %v1849 = vunpack.c.l.b16 %v1810
      %v1850 = vunpack.c.l.b16 %v1811
      %v1851 = vunpack.c.l.b16 %v1812
      %v1852 = vunpack.c.l.b16 %v1813
      %v1853 = vunpack.c.l.b16 %v1814
      %v1854 = vunpack.c.l.b16 %v1815
      %v1855 = vunpack.c.l.b16 %v1816
      %v1856 = vunpack.c.l.b16 %v1817
      %v1857 = vunpack.c.l.b16 %v1818
      %v1858 = vunpack.c.l.b16 %v1819
      %v1859 = vpack.c.b16 %v1844, %v1843
      %v1860 = vpack.c.b16 %v1846, %v1845
      %v1861 = vpack.c.b16 %v1848, %v1847
      %v1862 = vpack.c.b16 %v1850, %v1849
      %v1863 = vpack.c.b16 %v1852, %v1851
      %v1864 = vpack.c.b16 %v1854, %v1853
      %v1865 = vpack.c.b16 %v1856, %v1855
      %v1866 = vpack.c.b16 %v1858, %v1857
      %1875 = vmatprep.subr.bf16.mxu0 0
      %1876 = vmatpush1.bf16.msra.mxu0 %v1859
      %1877 = vmatprep.subr.bf16.mxu0 0
      %1878 = vmatpush1.bf16.msra.mxu0 %v1860
      %1879 = vmatprep.subr.bf16.mxu0 0
      %1880 = vmatpush1.bf16.msra.mxu0 %v1861
      %1881 = vmatprep.subr.bf16.mxu0 0
      %1882 = vmatpush1.bf16.msra.mxu0 %v1862
      %1883 = vmatprep.subr.bf16.mxu0 0
      %1884 = vmatpush1.bf16.msra.mxu0 %v1863
      %1885 = vmatprep.subr.bf16.mxu0 0
      %1886 = vmatpush1.bf16.msra.mxu0 %v1864
      %1887 = vmatprep.subr.bf16.mxu0 0
      %1888 = vmatpush1.bf16.msra.mxu0 %v1865
      %1889 = vmatprep.subr.bf16.mxu0 0
      %1890 = vmatpush1.bf16.msra.mxu0 %v1866
      %1891 = vmatprep.subr.bf16.mxu0 0
      %1892 = vmatpush1.bf16.msra.mxu0 0
      %1893 = vmatprep.subr.bf16.mxu0 0
      %1894 = vmatpush1.bf16.msra.mxu0 0
      %1895 = vmatprep.subr.bf16.mxu0 0
      %1896 = vmatpush1.bf16.msra.mxu0 0
      %1897 = vmatprep.subr.bf16.mxu0 0
      %1898 = vmatpush1.bf16.msra.mxu0 0
      %1899 = vmatprep.subr.bf16.mxu0 0
      %1900 = vmatpush1.bf16.msra.mxu0 0
      %1901 = vmatprep.subr.bf16.mxu0 0
      %1902 = vmatpush1.bf16.msra.mxu0 0
      %1903 = vmatprep.subr.bf16.mxu0 0
      %1904 = vmatpush1.bf16.msra.mxu0 0
      %1905 = vmatprep.subr.bf16.mxu0 0
      %1906 = vmatpush1.bf16.msra.mxu0 0
      %1907 = vmatprep.mubr.bf16.mxu0 0
      %1908 = vmatmul.mubr.bf16.gmra.mrb[0].mxu0 %v1802
      %v1909 = vpop.f32.mrb[0].mxu0
      %v1910 = vadd.f32 %v1825, %v1909
      %v1911 = vpop.f32.mrb[0].mxu0
      %v1912 = vpop.f32.mrb[0].mxu0
      %v1913 = vadd.f32 %v1825, %v1912
      %v1914 = vpop.f32.mrb[0].mxu0
      %1915 = vmatprep.mubr.bf16.mxu0 0
      %1916 = vmatmul.mubr.bf16.gmra.mrb[0].mxu0 %v1803
      %v1917 = vpop.f32.mrb[0].mxu0
      %v1918 = vadd.f32 %v1825, %v1917
      %v1919 = vpop.f32.mrb[0].mxu0
      %v1920 = vpop.f32.mrb[0].mxu0
      %v1921 = vpop.f32.mrb[0].mxu0
      %1922 = vdwg.mxu0
      %v1923 = vadd.f32 %v1634, %v1910
      %v1924 = vadd.f32 %v1635, %v1913
      %v1925 = vadd.f32 %v1636, %v1918
      %s1926 = scalar_lea.vmem %s4, 1
      %v1927 = vld [vmem:[%s1926] sm:$0x1]
      %s1928 = scalar_lea.vmem %s5, 1
      %v1929 = vld [vmem:[%s1928] sm:$0x1]
      %v1930 = vsel %vm705, %v1923, 0.0
      %1931 = vadd.xlane.f32.xlu0 %v1930
      %v1932 = vpop.xlane.xlu0 %1931
      %v1933 = vsel %vm705, %v1924, 0.0
      %1934 = vadd.xlane.f32.xlu0 %v1933
      %v1935 = vpop.xlane.xlu0 %1934
      %v1936 = vsel %vm705, %v1925, 0.0
      %1937 = vadd.xlane.f32.xlu0 %v1936
      %v1938 = vpop.xlane.xlu0 %1937
      %v1939 = vmul.f32 %v1932, %v715
      %v1940 = vmul.f32 %v1935, %v715
      %v1941 = vmul.f32 %v1938, %v715
      %v1942 = vsub.f32 %v1923, %v1939
      %v1943 = vsub.f32 %v1924, %v1940
      %v1944 = vsub.f32 %v1925, %v1941
      %v1945 = vmul.f32 %v1942, %v1942
      %v1946 = vmul.f32 %v1943, %v1943
      %v1947 = vmul.f32 %v1944, %v1944
      %v1948 = vsel %vm705, %v1945, 0.0
      %1949 = vadd.xlane.f32.xlu0 %v1948
      %v1950 = vpop.xlane.xlu0 %1949
      %v1951 = vsel %vm705, %v1946, 0.0
      %1952 = vadd.xlane.f32.xlu0 %v1951
      %v1953 = vpop.xlane.xlu0 %1952
      %v1954 = vsel %vm705, %v1947, 0.0
      %1955 = vadd.xlane.f32.xlu0 %v1954
      %v1956 = vpop.xlane.xlu0 %1955
      %v1957 = vmul.f32 %v1950, %v715
      %v1958 = vmul.f32 %v1953, %v715
      %v1959 = vmul.f32 %v1956, %v715
      %v1960 = vadd.f32 %v1957, 1e-06
      %v1961 = vadd.f32 %v1958, 1e-06
      %v1962 = vadd.f32 %v1959, 1e-06
      %v1963 = vrsqrt.pop %v1960
      %v1964 = vrsqrt.pop %v1961
      %v1965 = vrsqrt.pop %v1962
      %v1966 = vmul.f32 %v1942, %v1963
      %v1967 = vmul.f32 %v1943, %v1964
      %v1968 = vmul.f32 %v1944, %v1965
      %v1970 = vlaneseq
      %v1971 = vshrl.u32 %v1970, 7
      %v1972 = vsub.s32 0, %v1971
      %v1973 = vrot.slane %v1927, %v1972
      %v1975 = vmul.f32 %v1966, %v1973
      %v1976 = vmul.f32 %v1967, %v1973
      %v1977 = vmul.f32 %v1968, %v1973
      %v1979 = vlaneseq
      %v1980 = vshrl.u32 %v1979, 7
      %v1981 = vsub.s32 0, %v1980
      %v1982 = vrot.slane %v1929, %v1981
      %v1984 = vadd.f32 %v1975, %v1982
      %v1985 = vadd.f32 %v1976, %v1982
      %v1986 = vadd.f32 %v1977, %v1982
      %v1987 = vpack.c.bf16 %v1985, %v1984
      %v1988 = vpack.c.bf16 %v1986, %v1986
      %s1989 = scalar_lea.vmem %s6, 16
      %v1990 = vld [vmem:[%s1989] sm:$0xf]
      %v1991 = vld [vmem:[%s1989 + $0x4] sm:$0xf]
      %v1992 = vld [vmem:[%s1989 + $0x8] sm:$0xf]
      %v1993 = vld [vmem:[%s1989 + $0xc] sm:$0xf]
      %s1994 = scalar_lea.vmem %s7, 1
      %v1995 = vld [vmem:[%s1994] sm:$0x1]
      %v1997 = vlaneseq
      %v1998 = vshrl.u32 %v1997, 7
      %v1999 = vsub.s32 0, %v1998
      %v2000 = vrot.slane %v1995, %v1999
      %v2006 = vunpack.c.l.b16 %v1990
      %v2007 = vunpack.c.l.b16 %v1991
      %v2008 = vunpack.c.l.b16 %v1992
      %v2009 = vunpack.c.l.b16 %v1993
      %v2010 = vpack.c.b16 %v2007, %v2006
      %v2011 = vpack.c.b16 %v2009, %v2008
      %v2015 = vsel %vm705, %v1987, 0
      %v2018 = vsel %vm705, %v1988, 0
      %2020 = vmatprep.subr.bf16.mxu0 0
      %2021 = vmatpush1.bf16.msra.mxu0 %v2010
      %2022 = vmatprep.subr.bf16.mxu0 0
      %2023 = vmatpush1.bf16.msra.mxu0 %v2011
      %2024 = vmatprep.subr.bf16.mxu0 0
      %2025 = vmatpush1.bf16.msra.mxu0 0
      %2026 = vmatprep.subr.bf16.mxu0 0
      %2027 = vmatpush1.bf16.msra.mxu0 0
      %2028 = vmatprep.subr.bf16.mxu0 0
      %2029 = vmatpush1.bf16.msra.mxu0 0
      %2030 = vmatprep.subr.bf16.mxu0 0
      %2031 = vmatpush1.bf16.msra.mxu0 0
      %2032 = vmatprep.subr.bf16.mxu0 0
      %2033 = vmatpush1.bf16.msra.mxu0 0
      %2034 = vmatprep.subr.bf16.mxu0 0
      %2035 = vmatpush1.bf16.msra.mxu0 0
      %2036 = vmatprep.subr.bf16.mxu0 0
      %2037 = vmatpush1.bf16.msra.mxu0 0
      %2038 = vmatprep.subr.bf16.mxu0 0
      %2039 = vmatpush1.bf16.msra.mxu0 0
      %2040 = vmatprep.subr.bf16.mxu0 0
      %2041 = vmatpush1.bf16.msra.mxu0 0
      %2042 = vmatprep.subr.bf16.mxu0 0
      %2043 = vmatpush1.bf16.msra.mxu0 0
      %2044 = vmatprep.subr.bf16.mxu0 0
      %2045 = vmatpush1.bf16.msra.mxu0 0
      %2046 = vmatprep.subr.bf16.mxu0 0
      %2047 = vmatpush1.bf16.msra.mxu0 0
      %2048 = vmatprep.subr.bf16.mxu0 0
      %2049 = vmatpush1.bf16.msra.mxu0 0
      %2050 = vmatprep.subr.bf16.mxu0 0
      %2051 = vmatpush1.bf16.msra.mxu0 0
      %2052 = vmatprep.mubr.bf16.mxu0 0
      %2053 = vmatmul.mubr.bf16.gmra.mrb[0].mxu0 %v2015
      %v2054 = vpop.f32.mrb[0].mxu0
      %v2055 = vadd.f32 %v2000, %v2054
      %v2056 = vpop.f32.mrb[0].mxu0
      %v2057 = vpop.f32.mrb[0].mxu0
      %v2058 = vadd.f32 %v2000, %v2057
      %v2059 = vpop.f32.mrb[0].mxu0
      %2060 = vmatprep.mubr.bf16.mxu0 0
      %2061 = vmatmul.mubr.bf16.gmra.mrb[0].mxu0 %v2018
      %v2062 = vpop.f32.mrb[0].mxu0
      %v2063 = vadd.f32 %v2000, %v2062
      %v2064 = vpop.f32.mrb[0].mxu0
      %v2065 = vpop.f32.mrb[0].mxu0
      %v2066 = vpop.f32.mrb[0].mxu0
      %2067 = vdwg.mxu0
      %v2068 = vpack.c.bf16 %v2058, %v2055
      %v2069 = vpack.c.bf16 %v2063, %v2063
      %2072 = vrot.lane.b32.xlu0 %v2068, 96
      %v2073 = vpop.permute.xlu0 %2072
      %2074 = vrot.lane.b32.xlu0 %v2069, 96
      %v2075 = vpop.permute.xlu0 %2074
      %v2077 = vsel %vm851, %v2068, 0
      %v2080 = vsel %vm851, %v2069, 0
      %v2083 = vsel %vm851, %v2073, 0
      %v2086 = vsel %vm851, %v2075, 0
      %2088 = vmatprep.subr.bf16.mxu0 0
      %2089 = vmatpush1.bf16.xpose.msra.mxu0 %v2083
      %2090 = vmatprep.subr.bf16.mxu0 0
      %2091 = vmatpush1.bf16.xpose.msra.mxu0 %v2086
      %2092 = vmatprep.subr.bf16.mxu0 0
      %2093 = vmatpush1.bf16.xpose.msra.mxu0 0
      %2094 = vmatprep.subr.bf16.mxu0 0
      %2095 = vmatpush1.bf16.xpose.msra.mxu0 0
      %2096 = vmatprep.subr.bf16.mxu0 0
      %2097 = vmatpush1.bf16.xpose.msra.mxu0 0
      %2098 = vmatprep.subr.bf16.mxu0 0
      %2099 = vmatpush1.bf16.xpose.msra.mxu0 0
      %2100 = vmatprep.subr.bf16.mxu0 0
      %2101 = vmatpush1.bf16.xpose.msra.mxu0 0
      %2102 = vmatprep.subr.bf16.mxu0 0
      %2103 = vmatpush1.bf16.xpose.msra.mxu0 0
      %2104 = vmatprep.subr.bf16.mxu0 0
      %2105 = vmatpush1.bf16.xpose.msra.mxu0 0
      %2106 = vmatprep.subr.bf16.mxu0 0
      %2107 = vmatpush1.bf16.xpose.msra.mxu0 0
      %2108 = vmatprep.subr.bf16.mxu0 0
      %2109 = vmatpush1.bf16.xpose.msra.mxu0 0
      %2110 = vmatprep.subr.bf16.mxu0 0
      %2111 = vmatpush1.bf16.xpose.msra.mxu0 0
      %2112 = vmatprep.subr.bf16.mxu0 0
      %2113 = vmatpush1.bf16.xpose.msra.mxu0 0
      %2114 = vmatprep.subr.bf16.mxu0 0
      %2115 = vmatpush1.bf16.xpose.msra.mxu0 0
      %2116 = vmatprep.subr.bf16.mxu0 0
      %2117 = vmatpush1.bf16.xpose.msra.mxu0 0
      %2118 = vmatprep.subr.bf16.mxu0 0
      %2119 = vmatpush1.bf16.xpose.msra.mxu0 0
      %2120 = vmatprep.mubr.bf16.mxu0 0
      %2121 = vmatmul.mubr.bf16.gmra.mrb[0].mxu0 %v2077
      %v2122 = vpop.f32.mrb[0].mxu0
      %v2123 = vadd.f32 %v700, %v2122
      %v2124 = vpop.f32.mrb[0].mxu0
      %v2125 = vpop.f32.mrb[0].mxu0
      %v2126 = vadd.f32 %v701, %v2125
      %v2127 = vpop.f32.mrb[0].mxu0
      %2128 = vmatprep.mubr.bf16.mxu0 0
      %2129 = vmatmul.mubr.bf16.gmra.mrb[0].mxu0 %v2080
      %v2130 = vpop.f32.mrb[0].mxu0
      %v2131 = vadd.f32 %v702, %v2130
      %v2132 = vpop.f32.mrb[0].mxu0
      %v2133 = vpop.f32.mrb[0].mxu0
      %v2134 = vpop.f32.mrb[0].mxu0
      %2135 = vdwg.mxu0
      %v2136 = vsel %vm912, %v2123, -inf
      %2137 = vmax.xlane.f32.xlu0 %v2136
      %v2138 = vpop.xlane.xlu0 %2137
      %v2139 = vsel %vm912, %v2126, -inf
      %2140 = vmax.xlane.f32.xlu0 %v2139
      %v2141 = vpop.xlane.xlu0 %2140
      %v2142 = vsel %vm912, %v2131, -inf
      %2143 = vmax.xlane.f32.xlu0 %v2142
      %v2144 = vpop.xlane.xlu0 %2143
      %v2145 = vsub.f32 %v2123, %v2138
      %v2146 = vsub.f32 %v2126, %v2141
      %v2147 = vsub.f32 %v2131, %v2144
      %v2148 = vmul.f32 %v2145, 1.442695
      %v2149 = vpow.pop %v2148
      %v2150 = vmul.f32 %v2146, 1.442695
      %v2151 = vpow.pop %v2150
      %v2152 = vmul.f32 %v2147, 1.442695
      %v2153 = vpow.pop %v2152
      %v2154 = vsel %vm912, %v2149, 0.0
      %2155 = vadd.xlane.f32.xlu0 %v2154
      %v2156 = vpop.xlane.xlu0 %2155
      %v2157 = vsel %vm912, %v2151, 0.0
      %2158 = vadd.xlane.f32.xlu0 %v2157
      %v2159 = vpop.xlane.xlu0 %2158
      %v2160 = vsel %vm912, %v2153, 0.0
      %2161 = vadd.xlane.f32.xlu0 %v2160
      %v2162 = vpop.xlane.xlu0 %2161
      %v2163 = vrcp.pop %v2156
      %v2164 = vmul.f32 %v2149, %v2163
      %v2165 = vrcp.pop %v2159
      %v2166 = vmul.f32 %v2151, %v2165
      %v2167 = vrcp.pop %v2162
      %v2168 = vmul.f32 %v2153, %v2167
      %v2169 = vpack.c.bf16 %v2166, %v2164
      %v2170 = vpack.c.bf16 %v2168, %v2168
      %2171 = vrot.lane.b32.xlu0 %v2068, 64
      %v2172 = vpop.permute.xlu0 %2171
      %2173 = vrot.lane.b32.xlu0 %v2069, 64
      %v2174 = vpop.permute.xlu0 %2173
      %v2177 = vsel %vm912, %v2169, 0
      %v2180 = vsel %vm912, %v2170, 0
      %v2183 = vsel %vm959, %v2174, 0
      %2185 = vmatprep.subr.bf16.mxu0 0
      %2186 = vmatpush1.bf16.msra.mxu0 %v2172
      %2187 = vmatprep.subr.bf16.mxu0 0
      %2188 = vmatpush1.bf16.msra.mxu0 %v2183
      %2189 = vmatprep.subr.bf16.mxu0 0
      %2190 = vmatpush1.bf16.msra.mxu0 0
      %2191 = vmatprep.subr.bf16.mxu0 0
      %2192 = vmatpush1.bf16.msra.mxu0 0
      %2193 = vmatprep.subr.bf16.mxu0 0
      %2194 = vmatpush1.bf16.msra.mxu0 0
      %2195 = vmatprep.subr.bf16.mxu0 0
      %2196 = vmatpush1.bf16.msra.mxu0 0
      %2197 = vmatprep.subr.bf16.mxu0 0
      %2198 = vmatpush1.bf16.msra.mxu0 0
      %2199 = vmatprep.subr.bf16.mxu0 0
      %2200 = vmatpush1.bf16.msra.mxu0 0
      %2201 = vmatprep.subr.bf16.mxu0 0
      %2202 = vmatpush1.bf16.msra.mxu0 0
      %2203 = vmatprep.subr.bf16.mxu0 0
      %2204 = vmatpush1.bf16.msra.mxu0 0
      %2205 = vmatprep.subr.bf16.mxu0 0
      %2206 = vmatpush1.bf16.msra.mxu0 0
      %2207 = vmatprep.subr.bf16.mxu0 0
      %2208 = vmatpush1.bf16.msra.mxu0 0
      %2209 = vmatprep.subr.bf16.mxu0 0
      %2210 = vmatpush1.bf16.msra.mxu0 0
      %2211 = vmatprep.subr.bf16.mxu0 0
      %2212 = vmatpush1.bf16.msra.mxu0 0
      %2213 = vmatprep.subr.bf16.mxu0 0
      %2214 = vmatpush1.bf16.msra.mxu0 0
      %2215 = vmatprep.subr.bf16.mxu0 0
      %2216 = vmatpush1.bf16.msra.mxu0 0
      %2217 = vmatprep.mubr.bf16.mxu0 0
      %2218 = vmatmul.mubr.bf16.gmra.mrb[0].mxu0 %v2177
      %v2219 = vpop.f32.mrb[0].mxu0
      %v2220 = vadd.f32 0.0, %v2219
      %v2221 = vpop.f32.mrb[0].mxu0
      %v2222 = vpop.f32.mrb[0].mxu0
      %v2223 = vadd.f32 0.0, %v2222
      %v2224 = vpop.f32.mrb[0].mxu0
      %2225 = vmatprep.mubr.bf16.mxu0 0
      %2226 = vmatmul.mubr.bf16.gmra.mrb[0].mxu0 %v2180
      %v2227 = vpop.f32.mrb[0].mxu0
      %v2228 = vadd.f32 0.0, %v2227
      %v2229 = vpop.f32.mrb[0].mxu0
      %v2230 = vpop.f32.mrb[0].mxu0
      %v2231 = vpop.f32.mrb[0].mxu0
      %2232 = vdwg.mxu0
      %2233 = vrot.lane.b32.xlu0 %v2068, 120
      %v2234 = vpop.permute.xlu0 %2233
      %2235 = vrot.lane.b32.xlu0 %v2069, 120
      %v2236 = vpop.permute.xlu0 %2235
      %2237 = vrot.lane.b32.xlu0 %v2068, 88
      %v2238 = vpop.permute.xlu0 %2237
      %2239 = vrot.lane.b32.xlu0 %v2069, 88
      %v2240 = vpop.permute.xlu0 %2239
      %v2242 = vsel %vm851, %v2234, 0
      %v2245 = vsel %vm851, %v2236, 0
      %v2248 = vsel %vm851, %v2238, 0
      %v2251 = vsel %vm851, %v2240, 0
      %2253 = vmatprep.subr.bf16.mxu0 0
      %2254 = vmatpush1.bf16.xpose.msra.mxu0 %v2248
      %2255 = vmatprep.subr.bf16.mxu0 0
      %2256 = vmatpush1.bf16.xpose.msra.mxu0 %v2251
      %2257 = vmatprep.subr.bf16.mxu0 0
      %2258 = vmatpush1.bf16.xpose.msra.mxu0 0
      %2259 = vmatprep.subr.bf16.mxu0 0
      %2260 = vmatpush1.bf16.xpose.msra.mxu0 0
      %2261 = vmatprep.subr.bf16.mxu0 0
      %2262 = vmatpush1.bf16.xpose.msra.mxu0 0
      %2263 = vmatprep.subr.bf16.mxu0 0
      %2264 = vmatpush1.bf16.xpose.msra.mxu0 0
      %2265 = vmatprep.subr.bf16.mxu0 0
      %2266 = vmatpush1.bf16.xpose.msra.mxu0 0
      %2267 = vmatprep.subr.bf16.mxu0 0
      %2268 = vmatpush1.bf16.xpose.msra.mxu0 0
      %2269 = vmatprep.subr.bf16.mxu0 0
      %2270 = vmatpush1.bf16.xpose.msra.mxu0 0
      %2271 = vmatprep.subr.bf16.mxu0 0
      %2272 = vmatpush1.bf16.xpose.msra.mxu0 0
      %2273 = vmatprep.subr.bf16.mxu0 0
      %2274 = vmatpush1.bf16.xpose.msra.mxu0 0
      %2275 = vmatprep.subr.bf16.mxu0 0
      %2276 = vmatpush1.bf16.xpose.msra.mxu0 0
      %2277 = vmatprep.subr.bf16.mxu0 0
      %2278 = vmatpush1.bf16.xpose.msra.mxu0 0
      %2279 = vmatprep.subr.bf16.mxu0 0
      %2280 = vmatpush1.bf16.xpose.msra.mxu0 0
      %2281 = vmatprep.subr.bf16.mxu0 0
      %2282 = vmatpush1.bf16.xpose.msra.mxu0 0
      %2283 = vmatprep.subr.bf16.mxu0 0
      %2284 = vmatpush1.bf16.xpose.msra.mxu0 0
      %2285 = vmatprep.mubr.bf16.mxu0 0
      %2286 = vmatmul.mubr.bf16.gmra.mrb[0].mxu0 %v2242
      %v2287 = vpop.f32.mrb[0].mxu0
      %v2288 = vadd.f32 %v700, %v2287
      %v2289 = vpop.f32.mrb[0].mxu0
      %v2290 = vpop.f32.mrb[0].mxu0
      %v2291 = vadd.f32 %v701, %v2290
      %v2292 = vpop.f32.mrb[0].mxu0
      %2293 = vmatprep.mubr.bf16.mxu0 0
      %2294 = vmatmul.mubr.bf16.gmra.mrb[0].mxu0 %v2245
      %v2295 = vpop.f32.mrb[0].mxu0
      %v2296 = vadd.f32 %v702, %v2295
      %v2297 = vpop.f32.mrb[0].mxu0
      %v2298 = vpop.f32.mrb[0].mxu0
      %v2299 = vpop.f32.mrb[0].mxu0
      %2300 = vdwg.mxu0
      %v2301 = vsel %vm912, %v2288, -inf
      %2302 = vmax.xlane.f32.xlu0 %v2301
      %v2303 = vpop.xlane.xlu0 %2302
      %v2304 = vsel %vm912, %v2291, -inf
      %2305 = vmax.xlane.f32.xlu0 %v2304
      %v2306 = vpop.xlane.xlu0 %2305
      %v2307 = vsel %vm912, %v2296, -inf
      %2308 = vmax.xlane.f32.xlu0 %v2307
      %v2309 = vpop.xlane.xlu0 %2308
      %v2310 = vsub.f32 %v2288, %v2303
      %v2311 = vsub.f32 %v2291, %v2306
      %v2312 = vsub.f32 %v2296, %v2309
      %v2313 = vmul.f32 %v2310, 1.442695
      %v2314 = vpow.pop %v2313
      %v2315 = vmul.f32 %v2311, 1.442695
      %v2316 = vpow.pop %v2315
      %v2317 = vmul.f32 %v2312, 1.442695
      %v2318 = vpow.pop %v2317
      %v2319 = vsel %vm912, %v2314, 0.0
      %2320 = vadd.xlane.f32.xlu0 %v2319
      %v2321 = vpop.xlane.xlu0 %2320
      %v2322 = vsel %vm912, %v2316, 0.0
      %2323 = vadd.xlane.f32.xlu0 %v2322
      %v2324 = vpop.xlane.xlu0 %2323
      %v2325 = vsel %vm912, %v2318, 0.0
      %2326 = vadd.xlane.f32.xlu0 %v2325
      %v2327 = vpop.xlane.xlu0 %2326
      %v2328 = vrcp.pop %v2321
      %v2329 = vmul.f32 %v2314, %v2328
      %v2330 = vrcp.pop %v2324
      %v2331 = vmul.f32 %v2316, %v2330
      %v2332 = vrcp.pop %v2327
      %v2333 = vmul.f32 %v2318, %v2332
      %v2334 = vpack.c.bf16 %v2331, %v2329
      %v2335 = vpack.c.bf16 %v2333, %v2333
      %2336 = vrot.lane.b32.xlu0 %v2068, 56
      %v2337 = vpop.permute.xlu0 %2336
      %2338 = vrot.lane.b32.xlu0 %v2069, 56
      %v2339 = vpop.permute.xlu0 %2338
      %v2342 = vsel %vm912, %v2334, 0
      %v2345 = vsel %vm912, %v2335, 0
      %v2348 = vsel %vm959, %v2339, 0
      %2350 = vmatprep.subr.bf16.mxu0 0
      %2351 = vmatpush1.bf16.msra.mxu0 %v2337
      %2352 = vmatprep.subr.bf16.mxu0 0
      %2353 = vmatpush1.bf16.msra.mxu0 %v2348
      %2354 = vmatprep.subr.bf16.mxu0 0
      %2355 = vmatpush1.bf16.msra.mxu0 0
      %2356 = vmatprep.subr.bf16.mxu0 0
      %2357 = vmatpush1.bf16.msra.mxu0 0
      %2358 = vmatprep.subr.bf16.mxu0 0
      %2359 = vmatpush1.bf16.msra.mxu0 0
      %2360 = vmatprep.subr.bf16.mxu0 0
      %2361 = vmatpush1.bf16.msra.mxu0 0
      %2362 = vmatprep.subr.bf16.mxu0 0
      %2363 = vmatpush1.bf16.msra.mxu0 0
      %2364 = vmatprep.subr.bf16.mxu0 0
      %2365 = vmatpush1.bf16.msra.mxu0 0
      %2366 = vmatprep.subr.bf16.mxu0 0
      %2367 = vmatpush1.bf16.msra.mxu0 0
      %2368 = vmatprep.subr.bf16.mxu0 0
      %2369 = vmatpush1.bf16.msra.mxu0 0
      %2370 = vmatprep.subr.bf16.mxu0 0
      %2371 = vmatpush1.bf16.msra.mxu0 0
      %2372 = vmatprep.subr.bf16.mxu0 0
      %2373 = vmatpush1.bf16.msra.mxu0 0
      %2374 = vmatprep.subr.bf16.mxu0 0
      %2375 = vmatpush1.bf16.msra.mxu0 0
      %2376 = vmatprep.subr.bf16.mxu0 0
      %2377 = vmatpush1.bf16.msra.mxu0 0
      %2378 = vmatprep.subr.bf16.mxu0 0
      %2379 = vmatpush1.bf16.msra.mxu0 0
      %2380 = vmatprep.subr.bf16.mxu0 0
      %2381 = vmatpush1.bf16.msra.mxu0 0
      %2382 = vmatprep.mubr.bf16.mxu0 0
      %2383 = vmatmul.mubr.bf16.gmra.mrb[0].mxu0 %v2342
      %v2384 = vpop.f32.mrb[0].mxu0
      %v2385 = vadd.f32 0.0, %v2384
      %v2386 = vpop.f32.mrb[0].mxu0
      %v2387 = vpop.f32.mrb[0].mxu0
      %v2388 = vadd.f32 0.0, %v2387
      %v2389 = vpop.f32.mrb[0].mxu0
      %2390 = vmatprep.mubr.bf16.mxu0 0
      %2391 = vmatmul.mubr.bf16.gmra.mrb[0].mxu0 %v2345
      %v2392 = vpop.f32.mrb[0].mxu0
      %v2393 = vadd.f32 0.0, %v2392
      %v2394 = vpop.f32.mrb[0].mxu0
      %v2395 = vpop.f32.mrb[0].mxu0
      %v2396 = vpop.f32.mrb[0].mxu0
      %2397 = vdwg.mxu0
      %2398 = vrot.lane.b32.xlu0 %v2068, 112
      %v2399 = vpop.permute.xlu0 %2398
      %2400 = vrot.lane.b32.xlu0 %v2069, 112
      %v2401 = vpop.permute.xlu0 %2400
      %2402 = vrot.lane.b32.xlu0 %v2068, 80
      %v2403 = vpop.permute.xlu0 %2402
      %2404 = vrot.lane.b32.xlu0 %v2069, 80
      %v2405 = vpop.permute.xlu0 %2404
      %v2407 = vsel %vm851, %v2399, 0
      %v2410 = vsel %vm851, %v2401, 0
      %v2413 = vsel %vm851, %v2403, 0
      %v2416 = vsel %vm851, %v2405, 0
      %2418 = vmatprep.subr.bf16.mxu0 0
      %2419 = vmatpush1.bf16.xpose.msra.mxu0 %v2413
      %2420 = vmatprep.subr.bf16.mxu0 0
      %2421 = vmatpush1.bf16.xpose.msra.mxu0 %v2416
      %2422 = vmatprep.subr.bf16.mxu0 0
      %2423 = vmatpush1.bf16.xpose.msra.mxu0 0
      %2424 = vmatprep.subr.bf16.mxu0 0
      %2425 = vmatpush1.bf16.xpose.msra.mxu0 0
      %2426 = vmatprep.subr.bf16.mxu0 0
      %2427 = vmatpush1.bf16.xpose.msra.mxu0 0
      %2428 = vmatprep.subr.bf16.mxu0 0
      %2429 = vmatpush1.bf16.xpose.msra.mxu0 0
      %2430 = vmatprep.subr.bf16.mxu0 0
      %2431 = vmatpush1.bf16.xpose.msra.mxu0 0
      %2432 = vmatprep.subr.bf16.mxu0 0
      %2433 = vmatpush1.bf16.xpose.msra.mxu0 0
      %2434 = vmatprep.subr.bf16.mxu0 0
      %2435 = vmatpush1.bf16.xpose.msra.mxu0 0
      %2436 = vmatprep.subr.bf16.mxu0 0
      %2437 = vmatpush1.bf16.xpose.msra.mxu0 0
      %2438 = vmatprep.subr.bf16.mxu0 0
      %2439 = vmatpush1.bf16.xpose.msra.mxu0 0
      %2440 = vmatprep.subr.bf16.mxu0 0
      %2441 = vmatpush1.bf16.xpose.msra.mxu0 0
      %2442 = vmatprep.subr.bf16.mxu0 0
      %2443 = vmatpush1.bf16.xpose.msra.mxu0 0
      %2444 = vmatprep.subr.bf16.mxu0 0
      %2445 = vmatpush1.bf16.xpose.msra.mxu0 0
      %2446 = vmatprep.subr.bf16.mxu0 0
      %2447 = vmatpush1.bf16.xpose.msra.mxu0 0
      %2448 = vmatprep.subr.bf16.mxu0 0
      %2449 = vmatpush1.bf16.xpose.msra.mxu0 0
      %2450 = vmatprep.mubr.bf16.mxu0 0
      %2451 = vmatmul.mubr.bf16.gmra.mrb[0].mxu0 %v2407
      %v2452 = vpop.f32.mrb[0].mxu0
      %v2453 = vadd.f32 %v700, %v2452
      %v2454 = vpop.f32.mrb[0].mxu0
      %v2455 = vpop.f32.mrb[0].mxu0
      %v2456 = vadd.f32 %v701, %v2455
      %v2457 = vpop.f32.mrb[0].mxu0
      %2458 = vmatprep.mubr.bf16.mxu0 0
      %2459 = vmatmul.mubr.bf16.gmra.mrb[0].mxu0 %v2410
      %v2460 = vpop.f32.mrb[0].mxu0
      %v2461 = vadd.f32 %v702, %v2460
      %v2462 = vpop.f32.mrb[0].mxu0
      %v2463 = vpop.f32.mrb[0].mxu0
      %v2464 = vpop.f32.mrb[0].mxu0
      %2465 = vdwg.mxu0
      %v2466 = vsel %vm912, %v2453, -inf
      %2467 = vmax.xlane.f32.xlu0 %v2466
      %v2468 = vpop.xlane.xlu0 %2467
      %v2469 = vsel %vm912, %v2456, -inf
      %2470 = vmax.xlane.f32.xlu0 %v2469
      %v2471 = vpop.xlane.xlu0 %2470
      %v2472 = vsel %vm912, %v2461, -inf
      %2473 = vmax.xlane.f32.xlu0 %v2472
      %v2474 = vpop.xlane.xlu0 %2473
      %v2475 = vsub.f32 %v2453, %v2468
      %v2476 = vsub.f32 %v2456, %v2471
      %v2477 = vsub.f32 %v2461, %v2474
      %v2478 = vmul.f32 %v2475, 1.442695
      %v2479 = vpow.pop %v2478
      %v2480 = vmul.f32 %v2476, 1.442695
      %v2481 = vpow.pop %v2480
      %v2482 = vmul.f32 %v2477, 1.442695
      %v2483 = vpow.pop %v2482
      %v2484 = vsel %vm912, %v2479, 0.0
      %2485 = vadd.xlane.f32.xlu0 %v2484
      %v2486 = vpop.xlane.xlu0 %2485
      %v2487 = vsel %vm912, %v2481, 0.0
      %2488 = vadd.xlane.f32.xlu0 %v2487
      %v2489 = vpop.xlane.xlu0 %2488
      %v2490 = vsel %vm912, %v2483, 0.0
      %2491 = vadd.xlane.f32.xlu0 %v2490
      %v2492 = vpop.xlane.xlu0 %2491
      %v2493 = vrcp.pop %v2486
      %v2494 = vmul.f32 %v2479, %v2493
      %v2495 = vrcp.pop %v2489
      %v2496 = vmul.f32 %v2481, %v2495
      %v2497 = vrcp.pop %v2492
      %v2498 = vmul.f32 %v2483, %v2497
      %v2499 = vpack.c.bf16 %v2496, %v2494
      %v2500 = vpack.c.bf16 %v2498, %v2498
      %2501 = vrot.lane.b32.xlu0 %v2068, 48
      %v2502 = vpop.permute.xlu0 %2501
      %2503 = vrot.lane.b32.xlu0 %v2069, 48
      %v2504 = vpop.permute.xlu0 %2503
      %v2507 = vsel %vm912, %v2499, 0
      %v2510 = vsel %vm912, %v2500, 0
      %v2513 = vsel %vm959, %v2504, 0
      %2515 = vmatprep.subr.bf16.mxu0 0
      %2516 = vmatpush1.bf16.msra.mxu0 %v2502
      %2517 = vmatprep.subr.bf16.mxu0 0
      %2518 = vmatpush1.bf16.msra.mxu0 %v2513
      %2519 = vmatprep.subr.bf16.mxu0 0
      %2520 = vmatpush1.bf16.msra.mxu0 0
      %2521 = vmatprep.subr.bf16.mxu0 0
      %2522 = vmatpush1.bf16.msra.mxu0 0
      %2523 = vmatprep.subr.bf16.mxu0 0
      %2524 = vmatpush1.bf16.msra.mxu0 0
      %2525 = vmatprep.subr.bf16.mxu0 0
      %2526 = vmatpush1.bf16.msra.mxu0 0
      %2527 = vmatprep.subr.bf16.mxu0 0
      %2528 = vmatpush1.bf16.msra.mxu0 0
      %2529 = vmatprep.subr.bf16.mxu0 0
      %2530 = vmatpush1.bf16.msra.mxu0 0
      %2531 = vmatprep.subr.bf16.mxu0 0
      %2532 = vmatpush1.bf16.msra.mxu0 0
      %2533 = vmatprep.subr.bf16.mxu0 0
      %2534 = vmatpush1.bf16.msra.mxu0 0
      %2535 = vmatprep.subr.bf16.mxu0 0
      %2536 = vmatpush1.bf16.msra.mxu0 0
      %2537 = vmatprep.subr.bf16.mxu0 0
      %2538 = vmatpush1.bf16.msra.mxu0 0
      %2539 = vmatprep.subr.bf16.mxu0 0
      %2540 = vmatpush1.bf16.msra.mxu0 0
      %2541 = vmatprep.subr.bf16.mxu0 0
      %2542 = vmatpush1.bf16.msra.mxu0 0
      %2543 = vmatprep.subr.bf16.mxu0 0
      %2544 = vmatpush1.bf16.msra.mxu0 0
      %2545 = vmatprep.subr.bf16.mxu0 0
      %2546 = vmatpush1.bf16.msra.mxu0 0
      %2547 = vmatprep.mubr.bf16.mxu0 0
      %2548 = vmatmul.mubr.bf16.gmra.mrb[0].mxu0 %v2507
      %v2549 = vpop.f32.mrb[0].mxu0
      %v2550 = vadd.f32 0.0, %v2549
      %v2551 = vpop.f32.mrb[0].mxu0
      %v2552 = vpop.f32.mrb[0].mxu0
      %v2553 = vadd.f32 0.0, %v2552
      %v2554 = vpop.f32.mrb[0].mxu0
      %2555 = vmatprep.mubr.bf16.mxu0 0
      %2556 = vmatmul.mubr.bf16.gmra.mrb[0].mxu0 %v2510
      %v2557 = vpop.f32.mrb[0].mxu0
      %v2558 = vadd.f32 0.0, %v2557
      %v2559 = vpop.f32.mrb[0].mxu0
      %v2560 = vpop.f32.mrb[0].mxu0
      %v2561 = vpop.f32.mrb[0].mxu0
      %2562 = vdwg.mxu0
      %2563 = vrot.lane.b32.xlu0 %v2068, 104
      %v2564 = vpop.permute.xlu0 %2563
      %2565 = vrot.lane.b32.xlu0 %v2069, 104
      %v2566 = vpop.permute.xlu0 %2565
      %2567 = vrot.lane.b32.xlu0 %v2068, 72
      %v2568 = vpop.permute.xlu0 %2567
      %2569 = vrot.lane.b32.xlu0 %v2069, 72
      %v2570 = vpop.permute.xlu0 %2569
      %v2572 = vsel %vm851, %v2564, 0
      %v2575 = vsel %vm851, %v2566, 0
      %v2578 = vsel %vm851, %v2568, 0
      %v2581 = vsel %vm851, %v2570, 0
      %2583 = vmatprep.subr.bf16.mxu0 0
      %2584 = vmatpush1.bf16.xpose.msra.mxu0 %v2578
      %2585 = vmatprep.subr.bf16.mxu0 0
      %2586 = vmatpush1.bf16.xpose.msra.mxu0 %v2581
      %2587 = vmatprep.subr.bf16.mxu0 0
      %2588 = vmatpush1.bf16.xpose.msra.mxu0 0
      %2589 = vmatprep.subr.bf16.mxu0 0
      %2590 = vmatpush1.bf16.xpose.msra.mxu0 0
      %2591 = vmatprep.subr.bf16.mxu0 0
      %2592 = vmatpush1.bf16.xpose.msra.mxu0 0
      %2593 = vmatprep.subr.bf16.mxu0 0
      %2594 = vmatpush1.bf16.xpose.msra.mxu0 0
      %2595 = vmatprep.subr.bf16.mxu0 0
      %2596 = vmatpush1.bf16.xpose.msra.mxu0 0
      %2597 = vmatprep.subr.bf16.mxu0 0
      %2598 = vmatpush1.bf16.xpose.msra.mxu0 0
      %2599 = vmatprep.subr.bf16.mxu0 0
      %2600 = vmatpush1.bf16.xpose.msra.mxu0 0
      %2601 = vmatprep.subr.bf16.mxu0 0
      %2602 = vmatpush1.bf16.xpose.msra.mxu0 0
      %2603 = vmatprep.subr.bf16.mxu0 0
      %2604 = vmatpush1.bf16.xpose.msra.mxu0 0
      %2605 = vmatprep.subr.bf16.mxu0 0
      %2606 = vmatpush1.bf16.xpose.msra.mxu0 0
      %2607 = vmatprep.subr.bf16.mxu0 0
      %2608 = vmatpush1.bf16.xpose.msra.mxu0 0
      %2609 = vmatprep.subr.bf16.mxu0 0
      %2610 = vmatpush1.bf16.xpose.msra.mxu0 0
      %2611 = vmatprep.subr.bf16.mxu0 0
      %2612 = vmatpush1.bf16.xpose.msra.mxu0 0
      %2613 = vmatprep.subr.bf16.mxu0 0
      %2614 = vmatpush1.bf16.xpose.msra.mxu0 0
      %2615 = vmatprep.mubr.bf16.mxu0 0
      %2616 = vmatmul.mubr.bf16.gmra.mrb[0].mxu0 %v2572
      %v2617 = vpop.f32.mrb[0].mxu0
      %v2618 = vadd.f32 %v700, %v2617
      %v2619 = vpop.f32.mrb[0].mxu0
      %v2620 = vpop.f32.mrb[0].mxu0
      %v2621 = vadd.f32 %v701, %v2620
      %v2622 = vpop.f32.mrb[0].mxu0
      %2623 = vmatprep.mubr.bf16.mxu0 0
      %2624 = vmatmul.mubr.bf16.gmra.mrb[0].mxu0 %v2575
      %v2625 = vpop.f32.mrb[0].mxu0
      %v2626 = vadd.f32 %v702, %v2625
      %v2627 = vpop.f32.mrb[0].mxu0
      %v2628 = vpop.f32.mrb[0].mxu0
      %v2629 = vpop.f32.mrb[0].mxu0
      %2630 = vdwg.mxu0
      %v2631 = vsel %vm912, %v2618, -inf
      %2632 = vmax.xlane.f32.xlu0 %v2631
      %v2633 = vpop.xlane.xlu0 %2632
      %v2634 = vsel %vm912, %v2621, -inf
      %2635 = vmax.xlane.f32.xlu0 %v2634
      %v2636 = vpop.xlane.xlu0 %2635
      %v2637 = vsel %vm912, %v2626, -inf
      %2638 = vmax.xlane.f32.xlu0 %v2637
      %v2639 = vpop.xlane.xlu0 %2638
      %v2640 = vsub.f32 %v2618, %v2633
      %v2641 = vsub.f32 %v2621, %v2636
      %v2642 = vsub.f32 %v2626, %v2639
      %v2643 = vmul.f32 %v2640, 1.442695
      %v2644 = vpow.pop %v2643
      %v2645 = vmul.f32 %v2641, 1.442695
      %v2646 = vpow.pop %v2645
      %v2647 = vmul.f32 %v2642, 1.442695
      %v2648 = vpow.pop %v2647
      %v2649 = vsel %vm912, %v2644, 0.0
      %2650 = vadd.xlane.f32.xlu0 %v2649
      %v2651 = vpop.xlane.xlu0 %2650
      %v2652 = vsel %vm912, %v2646, 0.0
      %2653 = vadd.xlane.f32.xlu0 %v2652
      %v2654 = vpop.xlane.xlu0 %2653
      %v2655 = vsel %vm912, %v2648, 0.0
      %2656 = vadd.xlane.f32.xlu0 %v2655
      %v2657 = vpop.xlane.xlu0 %2656
      %v2658 = vrcp.pop %v2651
      %v2659 = vmul.f32 %v2644, %v2658
      %v2660 = vrcp.pop %v2654
      %v2661 = vmul.f32 %v2646, %v2660
      %v2662 = vrcp.pop %v2657
      %v2663 = vmul.f32 %v2648, %v2662
      %v2664 = vpack.c.bf16 %v2661, %v2659
      %v2665 = vpack.c.bf16 %v2663, %v2663
      %2666 = vrot.lane.b32.xlu0 %v2068, 40
      %v2667 = vpop.permute.xlu0 %2666
      %2668 = vrot.lane.b32.xlu0 %v2069, 40
      %v2669 = vpop.permute.xlu0 %2668
      %v2672 = vsel %vm912, %v2664, 0
      %v2675 = vsel %vm912, %v2665, 0
      %v2678 = vsel %vm959, %v2669, 0
      %2680 = vmatprep.subr.bf16.mxu0 0
      %2681 = vmatpush1.bf16.msra.mxu0 %v2667
      %2682 = vmatprep.subr.bf16.mxu0 0
      %2683 = vmatpush1.bf16.msra.mxu0 %v2678
      %2684 = vmatprep.subr.bf16.mxu0 0
      %2685 = vmatpush1.bf16.msra.mxu0 0
      %2686 = vmatprep.subr.bf16.mxu0 0
      %2687 = vmatpush1.bf16.msra.mxu0 0
      %2688 = vmatprep.subr.bf16.mxu0 0
      %2689 = vmatpush1.bf16.msra.mxu0 0
      %2690 = vmatprep.subr.bf16.mxu0 0
      %2691 = vmatpush1.bf16.msra.mxu0 0
      %2692 = vmatprep.subr.bf16.mxu0 0
      %2693 = vmatpush1.bf16.msra.mxu0 0
      %2694 = vmatprep.subr.bf16.mxu0 0
      %2695 = vmatpush1.bf16.msra.mxu0 0
      %2696 = vmatprep.subr.bf16.mxu0 0
      %2697 = vmatpush1.bf16.msra.mxu0 0
      %2698 = vmatprep.subr.bf16.mxu0 0
      %2699 = vmatpush1.bf16.msra.mxu0 0
      %2700 = vmatprep.subr.bf16.mxu0 0
      %2701 = vmatpush1.bf16.msra.mxu0 0
      %2702 = vmatprep.subr.bf16.mxu0 0
      %2703 = vmatpush1.bf16.msra.mxu0 0
      %2704 = vmatprep.subr.bf16.mxu0 0
      %2705 = vmatpush1.bf16.msra.mxu0 0
      %2706 = vmatprep.subr.bf16.mxu0 0
      %2707 = vmatpush1.bf16.msra.mxu0 0
      %2708 = vmatprep.subr.bf16.mxu0 0
      %2709 = vmatpush1.bf16.msra.mxu0 0
      %2710 = vmatprep.subr.bf16.mxu0 0
      %2711 = vmatpush1.bf16.msra.mxu0 0
      %2712 = vmatprep.mubr.bf16.mxu0 0
      %2713 = vmatmul.mubr.bf16.gmra.mrb[0].mxu0 %v2672
      %v2714 = vpop.f32.mrb[0].mxu0
      %v2715 = vadd.f32 0.0, %v2714
      %v2716 = vpop.f32.mrb[0].mxu0
      %v2717 = vpop.f32.mrb[0].mxu0
      %v2718 = vadd.f32 0.0, %v2717
      %v2719 = vpop.f32.mrb[0].mxu0
      %2720 = vmatprep.mubr.bf16.mxu0 0
      %2721 = vmatmul.mubr.bf16.gmra.mrb[0].mxu0 %v2675
      %v2722 = vpop.f32.mrb[0].mxu0
      %v2723 = vadd.f32 0.0, %v2722
      %v2724 = vpop.f32.mrb[0].mxu0
      %v2725 = vpop.f32.mrb[0].mxu0
      %v2726 = vpop.f32.mrb[0].mxu0
      %2727 = vdwg.mxu0
      %2731 = vrot.lane.b32.xlu0 %v2385, 8
      %v2732 = vpop.permute.xlu0 %2731
      %2733 = vrot.lane.b32.xlu0 %v2388, 8
      %v2734 = vpop.permute.xlu0 %2733
      %2735 = vrot.lane.b32.xlu0 %v2393, 8
      %v2736 = vpop.permute.xlu0 %2735
      %2743 = vrot.lane.b32.xlu0 %v2550, 16
      %v2744 = vpop.permute.xlu0 %2743
      %2745 = vrot.lane.b32.xlu0 %v2553, 16
      %v2746 = vpop.permute.xlu0 %2745
      %2747 = vrot.lane.b32.xlu0 %v2558, 16
      %v2748 = vpop.permute.xlu0 %2747
      %2755 = vrot.lane.b32.xlu0 %v2715, 24
      %v2756 = vpop.permute.xlu0 %2755
      %2757 = vrot.lane.b32.xlu0 %v2718, 24
      %v2758 = vpop.permute.xlu0 %2757
      %2759 = vrot.lane.b32.xlu0 %v2723, 24
      %v2760 = vpop.permute.xlu0 %2759
      %v2764 = vsel %vm851, %v2220, %v2732
      %v2765 = vsel %vm851, %v2223, %v2734
      %v2766 = vsel %vm851, %v2228, %v2736
      %v2767 = vsel %vm1545, %v2764, %v2744
      %v2768 = vsel %vm1545, %v2765, %v2746
      %v2769 = vsel %vm1545, %v2766, %v2748
      %v2770 = vsel %vm912, %v2767, %v2756
      %v2771 = vsel %vm912, %v2768, %v2758
      %v2772 = vsel %vm912, %v2769, %v2760
      %v2773 = vpack.c.bf16 %v2771, %v2770
      %v2774 = vpack.c.bf16 %v2772, %v2772
      %s2775 = scalar_lea.vmem %s8, 16
      %v2776 = vld [vmem:[%s2775] sm:$0xf]
      %v2777 = vld [vmem:[%s2775 + $0x4] sm:$0xf]
      %v2778 = vld [vmem:[%s2775 + $0x8] sm:$0xf]
      %v2779 = vld [vmem:[%s2775 + $0xc] sm:$0xf]
      %v2784 = vunpack.c.l.b16 %v2776
      %v2785 = vunpack.c.l.b16 %v2777
      %v2786 = vunpack.c.l.b16 %v2778
      %v2787 = vunpack.c.l.b16 %v2779
      %v2788 = vpack.c.b16 %v2785, %v2784
      %v2789 = vpack.c.b16 %v2787, %v2786
      %v2793 = vsel %vm705, %v2773, 0
      %v2796 = vsel %vm705, %v2774, 0
      %2798 = vmatprep.subr.bf16.mxu0 0
      %2799 = vmatpush1.bf16.msra.mxu0 %v2788
      %2800 = vmatprep.subr.bf16.mxu0 0
      %2801 = vmatpush1.bf16.msra.mxu0 %v2789
      %2802 = vmatprep.subr.bf16.mxu0 0
      %2803 = vmatpush1.bf16.msra.mxu0 0
      %2804 = vmatprep.subr.bf16.mxu0 0
      %2805 = vmatpush1.bf16.msra.mxu0 0
      %2806 = vmatprep.subr.bf16.mxu0 0
      %2807 = vmatpush1.bf16.msra.mxu0 0
      %2808 = vmatprep.subr.bf16.mxu0 0
      %2809 = vmatpush1.bf16.msra.mxu0 0
      %2810 = vmatprep.subr.bf16.mxu0 0
      %2811 = vmatpush1.bf16.msra.mxu0 0
      %2812 = vmatprep.subr.bf16.mxu0 0
      %2813 = vmatpush1.bf16.msra.mxu0 0
      %2814 = vmatprep.subr.bf16.mxu0 0
      %2815 = vmatpush1.bf16.msra.mxu0 0
      %2816 = vmatprep.subr.bf16.mxu0 0
      %2817 = vmatpush1.bf16.msra.mxu0 0
      %2818 = vmatprep.subr.bf16.mxu0 0
      %2819 = vmatpush1.bf16.msra.mxu0 0
      %2820 = vmatprep.subr.bf16.mxu0 0
      %2821 = vmatpush1.bf16.msra.mxu0 0
      %2822 = vmatprep.subr.bf16.mxu0 0
      %2823 = vmatpush1.bf16.msra.mxu0 0
      %2824 = vmatprep.subr.bf16.mxu0 0
      %2825 = vmatpush1.bf16.msra.mxu0 0
      %2826 = vmatprep.subr.bf16.mxu0 0
      %2827 = vmatpush1.bf16.msra.mxu0 0
      %2828 = vmatprep.subr.bf16.mxu0 0
      %2829 = vmatpush1.bf16.msra.mxu0 0
      %2830 = vmatprep.mubr.bf16.mxu0 0
      %2831 = vmatmul.mubr.bf16.gmra.mrb[0].mxu0 %v2793
      %v2832 = vpop.f32.mrb[0].mxu0
      %v2833 = vadd.f32 0.0, %v2832
      %v2834 = vpop.f32.mrb[0].mxu0
      %v2835 = vpop.f32.mrb[0].mxu0
      %v2836 = vadd.f32 0.0, %v2835
      %v2837 = vpop.f32.mrb[0].mxu0
      %2838 = vmatprep.mubr.bf16.mxu0 0
      %2839 = vmatmul.mubr.bf16.gmra.mrb[0].mxu0 %v2796
      %v2840 = vpop.f32.mrb[0].mxu0
      %v2841 = vadd.f32 0.0, %v2840
      %v2842 = vpop.f32.mrb[0].mxu0
      %v2843 = vpop.f32.mrb[0].mxu0
      %v2844 = vpop.f32.mrb[0].mxu0
      %2845 = vdwg.mxu0
      %v2846 = vadd.f32 %v1923, %v2833
      %v2847 = vadd.f32 %v1924, %v2836
      %v2848 = vadd.f32 %v1925, %v2841
      %s2849 = scalar_lea.vmem %s9, 1
      %v2850 = vld [vmem:[%s2849] sm:$0x1]
      %v2852 = vlaneseq
      %v2853 = vshrl.u32 %v2852, 7
      %v2854 = vsub.s32 0, %v2853
      %v2855 = vrot.slane %v2850, %v2854
      %v2857 = vadd.f32 %v2846, %v2855
      %v2858 = vadd.f32 %v2847, %v2855
      %v2859 = vadd.f32 %v2848, %v2855
      %s2860 = scalar_lea.vmem %s10, 1
      %v2861 = vld [vmem:[%s2860] sm:$0x1]
      %s2862 = scalar_lea.vmem %s11, 1
      %v2863 = vld [vmem:[%s2862] sm:$0x1]
      %v2864 = vsel %vm705, %v2857, 0.0
      %2865 = vadd.xlane.f32.xlu0 %v2864
      %v2866 = vpop.xlane.xlu0 %2865
      %v2867 = vsel %vm705, %v2858, 0.0
      %2868 = vadd.xlane.f32.xlu0 %v2867
      %v2869 = vpop.xlane.xlu0 %2868
      %v2870 = vsel %vm705, %v2859, 0.0
      %2871 = vadd.xlane.f32.xlu0 %v2870
      %v2872 = vpop.xlane.xlu0 %2871
      %v2873 = vmul.f32 %v2866, %v715
      %v2874 = vmul.f32 %v2869, %v715
      %v2875 = vmul.f32 %v2872, %v715
      %v2876 = vsub.f32 %v2857, %v2873
      %v2877 = vsub.f32 %v2858, %v2874
      %v2878 = vsub.f32 %v2859, %v2875
      %v2879 = vmul.f32 %v2876, %v2876
      %v2880 = vmul.f32 %v2877, %v2877
      %v2881 = vmul.f32 %v2878, %v2878
      %v2882 = vsel %vm705, %v2879, 0.0
      %2883 = vadd.xlane.f32.xlu0 %v2882
      %v2884 = vpop.xlane.xlu0 %2883
      %v2885 = vsel %vm705, %v2880, 0.0
      %2886 = vadd.xlane.f32.xlu0 %v2885
      %v2887 = vpop.xlane.xlu0 %2886
      %v2888 = vsel %vm705, %v2881, 0.0
      %2889 = vadd.xlane.f32.xlu0 %v2888
      %v2890 = vpop.xlane.xlu0 %2889
      %v2891 = vmul.f32 %v2884, %v715
      %v2892 = vmul.f32 %v2887, %v715
      %v2893 = vmul.f32 %v2890, %v715
      %v2894 = vadd.f32 %v2891, 1e-06
      %v2895 = vadd.f32 %v2892, 1e-06
      %v2896 = vadd.f32 %v2893, 1e-06
      %v2897 = vrsqrt.pop %v2894
      %v2898 = vrsqrt.pop %v2895
      %v2899 = vrsqrt.pop %v2896
      %v2900 = vmul.f32 %v2876, %v2897
      %v2901 = vmul.f32 %v2877, %v2898
      %v2902 = vmul.f32 %v2878, %v2899
      %v2904 = vlaneseq
      %v2905 = vshrl.u32 %v2904, 7
      %v2906 = vsub.s32 0, %v2905
      %v2907 = vrot.slane %v2861, %v2906
      %v2909 = vmul.f32 %v2900, %v2907
      %v2910 = vmul.f32 %v2901, %v2907
      %v2911 = vmul.f32 %v2902, %v2907
      %v2913 = vlaneseq
      %v2914 = vshrl.u32 %v2913, 7
      %v2915 = vsub.s32 0, %v2914
      %v2916 = vrot.slane %v2863, %v2915
      %v2918 = vadd.f32 %v2909, %v2916
      %v2919 = vadd.f32 %v2910, %v2916
      %v2920 = vadd.f32 %v2911, %v2916
      %v2921 = vpack.c.bf16 %v2919, %v2918
      %v2922 = vpack.c.bf16 %v2920, %v2920
      %s2923 = scalar_lea.vmem %s12, 16
      %v2924 = vld [vmem:[%s2923] sm:$0xf]
      %v2925 = vld [vmem:[%s2923 + $0x4] sm:$0xf]
      %v2926 = vld [vmem:[%s2923 + $0x8] sm:$0xf]
      %v2927 = vld [vmem:[%s2923 + $0xc] sm:$0xf]
      %s2928 = scalar_lea.vmem %s13, 1
      %v2929 = vld [vmem:[%s2928] sm:$0x1]
      %v2931 = vlaneseq
      %v2932 = vshrl.u32 %v2931, 7
      %v2933 = vsub.s32 0, %v2932
      %v2934 = vrot.slane %v2929, %v2933
      %v2940 = vunpack.c.l.b16 %v2924
      %v2941 = vunpack.c.l.b16 %v2925
      %v2942 = vunpack.c.l.b16 %v2926
      %v2943 = vunpack.c.l.b16 %v2927
      %v2944 = vpack.c.b16 %v2941, %v2940
      %v2945 = vpack.c.b16 %v2943, %v2942
      %v2949 = vsel %vm705, %v2921, 0
      %v2952 = vsel %vm705, %v2922, 0
      %2954 = vmatprep.subr.bf16.mxu0 0
      %2955 = vmatpush1.bf16.msra.mxu0 %v2944
      %2956 = vmatprep.subr.bf16.mxu0 0
      %2957 = vmatpush1.bf16.msra.mxu0 %v2945
      %2958 = vmatprep.subr.bf16.mxu0 0
      %2959 = vmatpush1.bf16.msra.mxu0 0
      %2960 = vmatprep.subr.bf16.mxu0 0
      %2961 = vmatpush1.bf16.msra.mxu0 0
      %2962 = vmatprep.subr.bf16.mxu0 0
      %2963 = vmatpush1.bf16.msra.mxu0 0
      %2964 = vmatprep.subr.bf16.mxu0 0
      %2965 = vmatpush1.bf16.msra.mxu0 0
      %2966 = vmatprep.subr.bf16.mxu0 0
      %2967 = vmatpush1.bf16.msra.mxu0 0
      %2968 = vmatprep.subr.bf16.mxu0 0
      %2969 = vmatpush1.bf16.msra.mxu0 0
      %2970 = vmatprep.subr.bf16.mxu0 0
      %2971 = vmatpush1.bf16.msra.mxu0 0
      %2972 = vmatprep.subr.bf16.mxu0 0
      %2973 = vmatpush1.bf16.msra.mxu0 0
      %2974 = vmatprep.subr.bf16.mxu0 0
      %2975 = vmatpush1.bf16.msra.mxu0 0
      %2976 = vmatprep.subr.bf16.mxu0 0
      %2977 = vmatpush1.bf16.msra.mxu0 0
      %2978 = vmatprep.subr.bf16.mxu0 0
      %2979 = vmatpush1.bf16.msra.mxu0 0
      %2980 = vmatprep.subr.bf16.mxu0 0
      %2981 = vmatpush1.bf16.msra.mxu0 0
      %2982 = vmatprep.subr.bf16.mxu0 0
      %2983 = vmatpush1.bf16.msra.mxu0 0
      %2984 = vmatprep.subr.bf16.mxu0 0
      %2985 = vmatpush1.bf16.msra.mxu0 0
      %2986 = vmatprep.mubr.bf16.mxu0 0
      %2987 = vmatmul.mubr.bf16.gmra.mrb[0].mxu0 %v2949
      %v2988 = vpop.f32.mrb[0].mxu0
      %v2989 = vadd.f32 %v2934, %v2988
      %v2990 = vpop.f32.mrb[0].mxu0
      %v2991 = vpop.f32.mrb[0].mxu0
      %v2992 = vadd.f32 %v2934, %v2991
      %v2993 = vpop.f32.mrb[0].mxu0
      %2994 = vmatprep.mubr.bf16.mxu0 0
      %2995 = vmatmul.mubr.bf16.gmra.mrb[0].mxu0 %v2952
      %v2996 = vpop.f32.mrb[0].mxu0
      %v2997 = vadd.f32 %v2934, %v2996
      %v2998 = vpop.f32.mrb[0].mxu0
      %v2999 = vpop.f32.mrb[0].mxu0
      %v3000 = vpop.f32.mrb[0].mxu0
      %3001 = vdwg.mxu0
      %v3002 = vmul.f32 %v2989, %v2989
      %v3003 = vmul.f32 %v2992, %v2992
      %v3004 = vmul.f32 %v2997, %v2997
      %v3005 = vmul.f32 %v2989, %v3002
      %v3006 = vmul.f32 %v2992, %v3003
      %v3007 = vmul.f32 %v2997, %v3004
      %v3008 = vmul.f32 %v3005, 0.044715
      %v3009 = vmul.f32 %v3006, 0.044715
      %v3010 = vmul.f32 %v3007, 0.044715
      %v3011 = vadd.f32 %v2989, %v3008
      %v3012 = vadd.f32 %v2992, %v3009
      %v3013 = vadd.f32 %v2997, %v3010
      %v3014 = vmul.f32 %v3011, 0.7978846
      %v3015 = vmul.f32 %v3012, 0.7978846
      %v3016 = vmul.f32 %v3013, 0.7978846
      %v3017 = vtanh.pop %v3014
      %v3018 = vtanh.pop %v3015
      %v3019 = vtanh.pop %v3016
      %v3020 = vadd.f32 %v3017, 1.0
      %v3021 = vadd.f32 %v3018, 1.0
      %v3022 = vadd.f32 %v3019, 1.0
      %v3023 = vmul.f32 %v3020, 0.5
      %v3024 = vmul.f32 %v3021, 0.5
      %v3025 = vmul.f32 %v3022, 0.5
      %v3026 = vmul.f32 %v2989, %v3023
      %v3027 = vmul.f32 %v2992, %v3024
      %v3028 = vmul.f32 %v2997, %v3025
      %v3029 = vpack.c.bf16 %v3027, %v3026
      %v3030 = vpack.c.bf16 %v3028, %v3028
      %s3031 = scalar_lea.vmem %s14, 64
      %v3032 = vld [vmem:[%s3031] sm:$0xf]
      %v3033 = vld [vmem:[%s3031 + $0x4] sm:$0xf]
      %v3034 = vld [vmem:[%s3031 + $0x8] sm:$0xf]
      %v3035 = vld [vmem:[%s3031 + $0xc] sm:$0xf]
      %v3036 = vld [vmem:[%s3031 + $0x10] sm:$0xf]
      %v3037 = vld [vmem:[%s3031 + $0x14] sm:$0xf]
      %v3038 = vld [vmem:[%s3031 + $0x18] sm:$0xf]
      %v3039 = vld [vmem:[%s3031 + $0x1c] sm:$0xf]
      %v3040 = vld [vmem:[%s3031 + $0x20] sm:$0xf]
      %v3041 = vld [vmem:[%s3031 + $0x24] sm:$0xf]
      %v3042 = vld [vmem:[%s3031 + $0x28] sm:$0xf]
      %v3043 = vld [vmem:[%s3031 + $0x2c] sm:$0xf]
      %v3044 = vld [vmem:[%s3031 + $0x30] sm:$0xf]
      %v3045 = vld [vmem:[%s3031 + $0x34] sm:$0xf]
      %v3046 = vld [vmem:[%s3031 + $0x38] sm:$0xf]
      %v3047 = vld [vmem:[%s3031 + $0x3c] sm:$0xf]
      %s3048 = scalar_lea.vmem %s15, 1
      %v3049 = vld [vmem:[%s3048] sm:$0x1]
      %v3051 = vlaneseq
      %v3052 = vshrl.u32 %v3051, 7
      %v3053 = vsub.s32 0, %v3052
      %v3054 = vrot.slane %v3049, %v3053
      %v3072 = vunpack.c.l.b16 %v3032
      %v3073 = vunpack.c.l.b16 %v3033
      %v3074 = vunpack.c.l.b16 %v3034
      %v3075 = vunpack.c.l.b16 %v3035
      %v3076 = vunpack.c.l.b16 %v3036
      %v3077 = vunpack.c.l.b16 %v3037
      %v3078 = vunpack.c.l.b16 %v3038
      %v3079 = vunpack.c.l.b16 %v3039
      %v3080 = vunpack.c.l.b16 %v3040
      %v3081 = vunpack.c.l.b16 %v3041
      %v3082 = vunpack.c.l.b16 %v3042
      %v3083 = vunpack.c.l.b16 %v3043
      %v3084 = vunpack.c.l.b16 %v3044
      %v3085 = vunpack.c.l.b16 %v3045
      %v3086 = vunpack.c.l.b16 %v3046
      %v3087 = vunpack.c.l.b16 %v3047
      %v3088 = vpack.c.b16 %v3073, %v3072
      %v3089 = vpack.c.b16 %v3075, %v3074
      %v3090 = vpack.c.b16 %v3077, %v3076
      %v3091 = vpack.c.b16 %v3079, %v3078
      %v3092 = vpack.c.b16 %v3081, %v3080
      %v3093 = vpack.c.b16 %v3083, %v3082
      %v3094 = vpack.c.b16 %v3085, %v3084
      %v3095 = vpack.c.b16 %v3087, %v3086
      %3104 = vmatprep.subr.bf16.mxu0 0
      %3105 = vmatpush1.bf16.msra.mxu0 %v3088
      %3106 = vmatprep.subr.bf16.mxu0 0
      %3107 = vmatpush1.bf16.msra.mxu0 %v3089
      %3108 = vmatprep.subr.bf16.mxu0 0
      %3109 = vmatpush1.bf16.msra.mxu0 %v3090
      %3110 = vmatprep.subr.bf16.mxu0 0
      %3111 = vmatpush1.bf16.msra.mxu0 %v3091
      %3112 = vmatprep.subr.bf16.mxu0 0
      %3113 = vmatpush1.bf16.msra.mxu0 %v3092
      %3114 = vmatprep.subr.bf16.mxu0 0
      %3115 = vmatpush1.bf16.msra.mxu0 %v3093
      %3116 = vmatprep.subr.bf16.mxu0 0
      %3117 = vmatpush1.bf16.msra.mxu0 %v3094
      %3118 = vmatprep.subr.bf16.mxu0 0
      %3119 = vmatpush1.bf16.msra.mxu0 %v3095
      %3120 = vmatprep.subr.bf16.mxu0 0
      %3121 = vmatpush1.bf16.msra.mxu0 0
      %3122 = vmatprep.subr.bf16.mxu0 0
      %3123 = vmatpush1.bf16.msra.mxu0 0
      %3124 = vmatprep.subr.bf16.mxu0 0
      %3125 = vmatpush1.bf16.msra.mxu0 0
      %3126 = vmatprep.subr.bf16.mxu0 0
      %3127 = vmatpush1.bf16.msra.mxu0 0
      %3128 = vmatprep.subr.bf16.mxu0 0
      %3129 = vmatpush1.bf16.msra.mxu0 0
      %3130 = vmatprep.subr.bf16.mxu0 0
      %3131 = vmatpush1.bf16.msra.mxu0 0
      %3132 = vmatprep.subr.bf16.mxu0 0
      %3133 = vmatpush1.bf16.msra.mxu0 0
      %3134 = vmatprep.subr.bf16.mxu0 0
      %3135 = vmatpush1.bf16.msra.mxu0 0
      %3136 = vmatprep.mubr.bf16.mxu0 0
      %3137 = vmatmul.mubr.bf16.gmra.mrb[0].mxu0 %v3029
      %v3138 = vpop.f32.mrb[0].mxu0
      %v3139 = vadd.f32 %v3054, %v3138
      %v3140 = vpop.f32.mrb[0].mxu0
      %v3141 = vpop.f32.mrb[0].mxu0
      %v3142 = vadd.f32 %v3054, %v3141
      %v3143 = vpop.f32.mrb[0].mxu0
      %3144 = vmatprep.mubr.bf16.mxu0 0
      %3145 = vmatmul.mubr.bf16.gmra.mrb[0].mxu0 %v3030
      %v3146 = vpop.f32.mrb[0].mxu0
      %v3147 = vadd.f32 %v3054, %v3146
      %v3148 = vpop.f32.mrb[0].mxu0
      %v3149 = vpop.f32.mrb[0].mxu0
      %v3150 = vpop.f32.mrb[0].mxu0
      %3151 = vdwg.mxu0
      %v3152 = vadd.f32 %v2857, %v3139
      %v3153 = vadd.f32 %v2858, %v3142
      %v3154 = vadd.f32 %v2859, %v3147
      %v3155 = vld [vmem:[%s16] sm:$0x1]
      %v3156 = vld [vmem:[%s17] sm:$0x1]
      %v3157 = vsel %vm705, %v3152, 0.0
      %3158 = vadd.xlane.f32.xlu0 %v3157
      %v3159 = vpop.xlane.xlu0 %3158
      %v3160 = vsel %vm705, %v3153, 0.0
      %3161 = vadd.xlane.f32.xlu0 %v3160
      %v3162 = vpop.xlane.xlu0 %3161
      %v3163 = vsel %vm705, %v3154, 0.0
      %3164 = vadd.xlane.f32.xlu0 %v3163
      %v3165 = vpop.xlane.xlu0 %3164
      %v3166 = vmul.f32 %v3159, %v715
      %v3167 = vmul.f32 %v3162, %v715
      %v3168 = vmul.f32 %v3165, %v715
      %v3169 = vsub.f32 %v3152, %v3166
      %v3170 = vsub.f32 %v3153, %v3167
      %v3171 = vsub.f32 %v3154, %v3168
      %v3172 = vmul.f32 %v3169, %v3169
      %v3173 = vmul.f32 %v3170, %v3170
      %v3174 = vmul.f32 %v3171, %v3171
      %v3175 = vsel %vm705, %v3172, 0.0
      %3176 = vadd.xlane.f32.xlu0 %v3175
      %v3177 = vpop.xlane.xlu0 %3176
      %v3178 = vsel %vm705, %v3173, 0.0
      %3179 = vadd.xlane.f32.xlu0 %v3178
      %v3180 = vpop.xlane.xlu0 %3179
      %v3181 = vsel %vm705, %v3174, 0.0
      %3182 = vadd.xlane.f32.xlu0 %v3181
      %v3183 = vpop.xlane.xlu0 %3182
      %v3184 = vmul.f32 %v3177, %v715
      %v3185 = vmul.f32 %v3180, %v715
      %v3186 = vmul.f32 %v3183, %v715
      %v3187 = vadd.f32 %v3184, 1e-06
      %v3188 = vadd.f32 %v3185, 1e-06
      %v3189 = vadd.f32 %v3186, 1e-06
      %v3190 = vrsqrt.pop %v3187
      %v3191 = vrsqrt.pop %v3188
      %v3192 = vrsqrt.pop %v3189
      %v3193 = vmul.f32 %v3169, %v3190
      %v3194 = vmul.f32 %v3170, %v3191
      %v3195 = vmul.f32 %v3171, %v3192
      %v3197 = vlaneseq
      %v3198 = vshrl.u32 %v3197, 7
      %v3199 = vsub.s32 0, %v3198
      %v3200 = vrot.slane %v3155, %v3199
      %v3202 = vmul.f32 %v3193, %v3200
      %v3203 = vmul.f32 %v3194, %v3200
      %v3204 = vmul.f32 %v3195, %v3200
      %v3206 = vlaneseq
      %v3207 = vshrl.u32 %v3206, 7
      %v3208 = vsub.s32 0, %v3207
      %v3209 = vrot.slane %v3156, %v3208
      %v3211 = vadd.f32 %v3202, %v3209
      %v3212 = vadd.f32 %v3203, %v3209
      %v3213 = vadd.f32 %v3204, %v3209
      %3214 = vst.msk [vmem:[%s599] sm:$0xff] %vm705, %v3211
      %3215 = vst.msk [vmem:[%s599 + $0x8] sm:$0xff] %vm705, %v3212
      %3216 = vst.msk [vmem:[%s599 + $0x10] sm:$0xff] %vm705, %v3213
      %s3217 = smul.u32 3, %s29
      %p3218 = scmp.lt.s32.totalorder %s3217, 5
      %s3219 = scalar_select %p3218, %s3217, 5
      %s3220 = smul.addr %s3219, 8
      %s3221 = scalar_lea.vmem %s18, %s3220
      // Predicated region
      $region93: #{_encoder_forward.1} parent=91 // pred_check
        %p3222 = pneg %p435
      $region94: #{_encoder_forward.1} parent=91 // pred_check_branch
        %3224 = sbr.rel (%p3222) target = $region96
      $region95: #{_encoder_forward.1} parent=91 // pred_region
        %s3225 = smul.u32 3, %s29
      $region96: #{_encoder_forward.1} parent=91 // pred_fallthru
        _
    $region92: #{_encoder_forward.1} parent=5 // pred_fallthru
      _
    %p3226 = scmp.le.s32.totalorder 2, %s24
    // Predicated region
    $region97: #{_encoder_forward.1} parent=5 // pred_check
      %p3227 = pneg %p3226
    $region98: #{_encoder_forward.1} parent=5 // pred_check_branch
      %3229 = sbr.rel (%p3227) target = $region100
    $region99: #{_encoder_forward.1} parent=5 // pred_region
      %s3230 = ssub.s32 %s24, 2
      // Predicated region
      $region101: #{_encoder_forward.1} parent=99 // pred_check
        %p3231 = pneg %p441
      $region102: #{_encoder_forward.1} parent=99 // pred_check_branch
        %3233 = sbr.rel (%p3231) target = $region104
      $region103: #{_encoder_forward.1} parent=99 // pred_region
        %s3234 = smul.u32 3, %s30
        %p3235 = scmp.lt.s32.totalorder %s3234, 5
        %s3236 = scalar_select %p3235, %s3234, 5
        %s3237 = smul.addr %s3236, 8
        %s3238 = scalar_lea.vmem %s18, %s3237
      $region104: #{_encoder_forward.1} parent=99 // pred_fallthru
        _
    $region100: #{_encoder_forward.1} parent=5 // pred_fallthru
      _
  $region6: #{_encoder_forward.1} parent=0 // loop_footer
    %s28 = sadd.s32 1, %s24
  $region7: #{_encoder_forward.1} parent=0 // loop_footer_branch
    %23 = sbr.rel target = $region3
  $region8: #{_encoder_forward.1} parent=0 // loop_exit
    _

</llo_original>
